<compile_context>
chip_gen: v7x
topology: tpu7x:2x2x1
jax: 0.10.0
libtpu: 0.0.40
codegen_flags: <defaults>
</compile_context>

<pallas_src>
import math
import jax
import jax.numpy as jnp
from jax import lax
from jax.experimental import pallas as pl
from jax.experimental.pallas import tpu as pltpu

# ----------------------- small, module-consistent config -----------------------
B = 2                 # batch
S = 8                 # sequence length
E = 32                # n_embd (divisible by n_multihead * n_head)
VOCAB = 64            # vocab_size (small synthetic)
BLOCK_SIZE = 16       # block_size >= S
D_FF = 4              # d_ff_factor
TAGS = ("head_current", "child_current")   # transformer_description layer tags
N_MULTIHEAD = len(TAGS)                    # 2
N_HEAD = 1
MH = N_MULTIHEAD * N_HEAD                  # 2
HS = E // MH                               # head_size = 16
H_LSTM = E                                 # LSTM hidden size == n_embd
BS = B * S
EPS = 1e-5                                 # LayerNorm eps (torch default)

# ----------------------- packed-parameter slab row offsets ---------------------
# slab p32: every tensor whose natural last dim is E (=32)
R32_WTE   = 0
R32_WPE   = R32_WTE + VOCAB            # 64  (only wpe[:S] is packed)
R32_LN    = R32_WPE + S                # 72  (8-row block of LayerNorm vectors)
LN_T1G, LN_T1B, LN_T2G, LN_T2B, LN_L1G, LN_L2G = 0, 1, 2, 3, 4, 5
R32_WQ    = R32_LN + 8                 # 80   [E, E]  (per-head columns, pre-scaled by 1/HS)
R32_WK    = R32_WQ + E                 # 112
R32_WV    = R32_WK + E                 # 144
R32_WPROJ = R32_WV + E                 # 176  [E, E]  (per-head row blocks)
R32_TFF2  = R32_WPROJ + E              # 208  [4E, E]
R32_LFF2  = R32_TFF2 + D_FF * E        # 336  [4E, E]
ROWS32    = R32_LFF2 + D_FF * E        # 464

# slab p128: every tensor whose natural last dim is 4*H (=128)
R128_WIH  = 0                          # [E, 4H]   gate order i,f,g,o along lanes
R128_WHH  = R128_WIH + E               # 32  [H, 4H]
R128_B    = R128_WHH + H_LSTM          # 64  (8-row block, row 0 = b_ih + b_hh)
R128_TFF1 = R128_B + 8                 # 72  [E, 4E]
R128_LFF1 = R128_TFF1 + E              # 104 [E, 4E]
ROWS128   = R128_LFF1 + E              # 136


# ----------------------------- in-kernel helpers ------------------------------
def _layernorm(x, gamma, beta=None):
    mu = jnp.mean(x, axis=-1, keepdims=True)
    xc = x - mu
    var = jnp.mean(xc * xc, axis=-1, keepdims=True)
    y = xc * lax.rsqrt(var + EPS)
    y = y * gamma
    if beta is not None:
        y = y + beta
    return y


def _erf(x):
    # TODO(synk): switch to lax.erf once its Mosaic lowering is confirmed; A&S 7.1.26
    # polynomial (~1.5e-7 abs err) keeps parity with torch GELU(approximate='none').
    a1, a2, a3, a4, a5 = 0.254829592, -0.284496736, 1.421413741, -1.453152027, 1.061405429
    p = 0.3275911
    sgn = jnp.where(x >= 0.0, 1.0, -1.0)
    ax = jnp.abs(x)
    t = 1.0 / (1.0 + p * ax)
    poly = ((((a5 * t + a4) * t + a3) * t + a2) * t + a1) * t
    return sgn * (1.0 - poly * jnp.exp(-ax * ax))


def _gelu(x):
    # exact (erf-based) GELU as in torch.nn.GELU(approximate='none')
    return 0.5 * x * (1.0 + _erf(x * (1.0 / math.sqrt(2.0))))


def _sigmoid(x):
    # single EUP op (tanh); exact, so no approx error compounds through the recurrence.
    return 0.5 * (jnp.tanh(0.5 * x) + 1.0)


# ------------------------------- fused Pallas kernel ----------------------------
def mitransformer_kernel(ids_ref, p32_ref, p128_ref, x_out_ref, logits_ref):
    f32 = jnp.float32

    # ---- embeddings: tok = wte[ids] via one-hot matmul (MXU, VOCAB=64), + wpe[:S] ----
    # (At a real vocab size this should become a scalar-prefetch gather: ids in SMEM +
    #  pl.Element row BlockSpec on wte — especially on v7x with 64 MiB VMEM.)
    ids = ids_ref[...]                                              # [BS, 1] int32
    wte = p32_ref[pl.ds(R32_WTE, VOCAB), :]                         # [64, 32]
    vocab_iota = lax.broadcasted_iota(jnp.int32, (BS, VOCAB), 1)
    onehot = jnp.where(vocab_iota == ids, 1.0, 0.0).astype(f32)
    tok = jnp.dot(onehot, wte, preferred_element_type=f32)          # [BS, E]
    wpe_s = p32_ref[pl.ds(R32_WPE, S), :]                           # [S, E]
    x = (tok.reshape(B, S, E) + wpe_s[None]).reshape(BS, E)         # embd_dropout = identity

    # ---- x = x + LSTM(LN1(x)) ---------------------------------------------------
    g1 = p32_ref[pl.ds(R32_LN + LN_T1G, 1), :]
    b1 = p32_ref[pl.ds(R32_LN + LN_T1B, 1), :]
    h_ln = _layernorm(x, g1, b1)                                    # [BS, E]

    wih = p128_ref[pl.ds(R128_WIH, E), :]                           # [E, 4H]
    whh = p128_ref[pl.ds(R128_WHH, H_LSTM), :]                      # [H, 4H]
    b_lstm = p128_ref[pl.ds(R128_B, 1), :]                          # [1, 4H]
    # single fused input-gate projection -> lane-dense [BS, 128]
    zx = (jnp.dot(h_ln, wih, preferred_element_type=f32) + b_lstm).reshape(B, S, 4 * H_LSTM)

    h = jnp.zeros((B, H_LSTM), f32)
    c = jnp.zeros((B, H_LSTM), f32)
    y = jnp.zeros((B, S, H_LSTM), f32)                              # register-resident
    t_iota = lax.broadcasted_iota(jnp.int32, (1, S, 1), 1)
    for t in range(S):          # static unroll: S is tiny, avoids dynamic sublane indexing
        # ONE recurrent matmul per step ([2,32] x [32,128]); gates = static 32-lane views.
        z = zx[:, t, :] + jnp.dot(h, whh, preferred_element_type=f32)       # [B, 4H]
        i_g = _sigmoid(z[:, 0 * H_LSTM:1 * H_LSTM])
        f_g = _sigmoid(z[:, 1 * H_LSTM:2 * H_LSTM])
        g_g = jnp.tanh(z[:, 2 * H_LSTM:3 * H_LSTM])
        o_g = _sigmoid(z[:, 3 * H_LSTM:4 * H_LSTM])
        c = f_g * c + i_g * g_g
        h = o_g * jnp.tanh(c)
        # off-critical-path select into the [B,S,H] slab (no VMEM scratch round-trip)
        y = jnp.where(t_iota == t, h[:, None, :], y)
    x = x + y.reshape(BS, H_LSTM)                                   # lstm_dropout = identity

    # ---- x = x + FF(LN2(x)) -----------------------------------------------------
    g2 = p32_ref[pl.ds(R32_LN + LN_T2G, 1), :]
    b2 = p32_ref[pl.ds(R32_LN + LN_T2B, 1), :]
    h2 = _layernorm(x, g2, b2)
    tw1 = p128_ref[pl.ds(R128_TFF1, E), :]                          # [E, 4E]
    tw2 = p32_ref[pl.ds(R32_TFF2, D_FF * E), :]                     # [4E, E]
    x = x + jnp.dot(_gelu(jnp.dot(h2, tw1, preferred_element_type=f32)),
                    tw2, preferred_element_type=f32)

    # ---- MILayer: x = x + MIAttention(LN(x)) ------------------------------------
    lg1 = p32_ref[pl.ds(R32_LN + LN_L1G, 1), :]
    ha = _layernorm(x, lg1)                                         # ln bias=False
    wq = p32_ref[pl.ds(R32_WQ, E), :]                               # pre-scaled by 1/HS
    wk = p32_ref[pl.ds(R32_WK, E), :]
    wv = p32_ref[pl.ds(R32_WV, E), :]
    # q/k/v fused across heads: three [16,32]x[32,32] matmuls, per-head static lane views.
    q_all = jnp.dot(ha, wq, preferred_element_type=f32)             # [BS, E]
    k_all = jnp.dot(ha, wk, preferred_element_type=f32)
    v_all = jnp.dot(ha, wv, preferred_element_type=f32)

    row = lax.broadcasted_iota(jnp.int32, (S, S), 0)
    col = lax.broadcasted_iota(jnp.int32, (S, S), 1)
    causal = (col <= row)[None, :, :]                               # overlay_causal=True
    neg_inf = jnp.float32(-jnp.inf)

    att_heads = []
    attn_acc = jnp.zeros((BS, E), f32)
    for m in range(MH):                                             # static unroll over heads
        lo = m * HS
        qm = q_all[:, lo:lo + HS].reshape(B, S, HS)
        km = k_all[:, lo:lo + HS].reshape(B, S, HS)
        vm = v_all[:, lo:lo + HS].reshape(B, S, HS)

        att = jnp.einsum('bqe,bke->bqk', qm, km, preferred_element_type=f32)
        att = jnp.where(causal, att, neg_inf)                       # causal fill with -inf
        att_heads.append(att)                                       # pre-softmax logits

        amax = jnp.max(att, axis=-1, keepdims=True)
        pr = jnp.exp(att - amax)
        pr = pr * pl.reciprocal(jnp.sum(pr, axis=-1, keepdims=True), approx=True)
        o_m = jnp.einsum('bqk,bke->bqe', pr, vm, preferred_element_type=f32)
        # accumulate each head directly into the projection result (avoids a lane concat)
        wproj_m = p32_ref[pl.ds(R32_WPROJ + lo, HS), :]             # [HS, E] row block
        attn_acc = attn_acc + jnp.dot(o_m.reshape(BS, HS), wproj_m,
                                      preferred_element_type=f32)

    # single store of all logits in the final [M, H, B, S, S] layout (tiny, ~1 KB)
    logits_ref[...] = jnp.stack(att_heads, axis=0).reshape(N_MULTIHEAD, N_HEAD, B, S, S)

    x = x + attn_acc                                                # resid_dropout = identity

    # ---- x = x + FF(LN(x)) ------------------------------------------------------
    lg2 = p32_ref[pl.ds(R32_LN + LN_L2G, 1), :]
    h3 = _layernorm(x, lg2)                                         # ln bias=False
    fw1 = p128_ref[pl.ds(R128_LFF1, E), :]
    fw2 = p32_ref[pl.ds(R32_LFF2, D_FF * E), :]
    x = x + jnp.dot(_gelu(jnp.dot(h3, fw1, preferred_element_type=f32)),
                    fw2, preferred_element_type=f32)

    x_out_ref[...] = x.reshape(B, S, E)


# ------------------------------ pallas_call glue -------------------------------
def _full_spec(shape):
    zeros = (0,) * len(shape)
    return pl.BlockSpec(shape, lambda i, z=zeros: z)


def mitransformer_forward(packed, input_ids):
    ids = input_ids.reshape(BS, 1).astype(jnp.int32)

    # Total resident weights + activations < 200 KB f32: far below the scoped-VMEM default
    # on v5e/v6e (128 MiB phys) and v7x (64 MiB phys) — no vmem_limit_bytes override needed.
    x, logits = pl.pallas_call(
        mitransformer_kernel,
        out_shape=(jax.ShapeDtypeStruct((B, S, E), jnp.float32),
                   jax.ShapeDtypeStruct((N_MULTIHEAD, N_HEAD, B, S, S), jnp.float32)),
        grid=(1,),
        in_specs=[_full_spec((BS, 1)),
                  _full_spec((ROWS32, E)),
                  _full_spec((ROWS128, 4 * H_LSTM))],
        out_specs=(_full_spec((B, S, E)),
                   _full_spec((N_MULTIHEAD, N_HEAD, B, S, S))),
        compiler_params=pltpu.CompilerParams(dimension_semantics=("arbitrary",)),
    )(ids, packed['p32'], packed['p128'])

    # combine_scores: {tag: [n_head, B, S, S]}; use_input_mask=False -> masks=None
    scores = {tag: logits[m] for m, tag in enumerate(TAGS)}
    return x, scores


# ------------------------------- parameter init --------------------------------
def init_params(key):
    ks = jax.random.split(key, 16)

    def nrm(k, shape, std=0.02):
        return (std * jax.random.normal(k, shape)).astype(jnp.float32)

    k_lim = 1.0 / math.sqrt(H_LSTM)

    def uni(k, shape):
        return jax.random.uniform(k, shape, jnp.float32, -k_lim, k_lim)

    p = {
        'wte': nrm(ks[0], (VOCAB, E)),
        'wpe': nrm(ks[1], (BLOCK_SIZE, E)),
        # top-level LSTM block (ln_1 / ln_2 have bias=True, ff has bias=False)
        'top_ln1_g': jnp.ones((1, E), jnp.float32),
        'top_ln1_b': jnp.zeros((1, E), jnp.float32),
        'top_ln2_g': jnp.ones((1, E), jnp.float32),
        'top_ln2_b': jnp.zeros((1, E), jnp.float32),
        # LSTM weights, fused over gates (i, f, g, o) along columns, pre-transposed to [in, 4*out]
        'lstm_wih': uni(ks[2], (E, 4 * H_LSTM)),
        'lstm_whh': uni(ks[3], (H_LSTM, 4 * H_LSTM)),
        'lstm_b': uni(ks[4], (1, 4 * H_LSTM)) + uni(ks[5], (1, 4 * H_LSTM)),   # b_ih + b_hh
        'top_ff_w1_T': nrm(ks[6], (E, D_FF * E)),
        'top_ff_w2_T': nrm(ks[7], (D_FF * E, E)),
        # MILayer 0 (bias=False everywhere, LayerNorm weight-only)
        'l0_ln1_g': jnp.ones((1, E), jnp.float32),
        # fused [E, E] weights, per-head HS-wide column blocks (head-major, torch order);
        # q pre-scaled by combined attention factor 1/HS (reference applies HS**-0.5 twice).
        # NOTE: loading a real checkpoint requires applying this scale at load time.
        'l0_wq': nrm(ks[8], (E, E)) * (1.0 / HS),
        'l0_wk': nrm(ks[9], (E, E)),
        'l0_wv': nrm(ks[10], (E, E)),
        'l0_wproj': nrm(ks[11], (E, E), std=0.02 / math.sqrt(2 * 1)),
        'l0_ln2_g': jnp.ones((1, E), jnp.float32),
        'l0_ff_w1_T': nrm(ks[12], (E, D_FF * E)),
        'l0_ff_w2_T': nrm(ks[13], (D_FF * E, E)),
    }
    return jax.tree_util.tree_map(lambda a: jnp.asarray(a, jnp.float32), p)


def pack_params(p):
    """Pack all parameters into two flat slabs (done once, outside jit):
    p32 [ROWS32, E] for last-dim-32 tensors, p128 [ROWS128, 4H] for last-dim-128 tensors."""
    ln_block = jnp.concatenate(
        [p['top_ln1_g'], p['top_ln1_b'], p['top_ln2_g'], p['top_ln2_b'],
         p['l0_ln1_g'], p['l0_ln2_g'], jnp.zeros((2, E), jnp.float32)], axis=0)      # [8, E]
    p32 = jnp.concatenate(
        [p['wte'],                      # rows   0..63
         p['wpe'][:S],                  # rows  64..71
         ln_block,                      # rows  72..79
         p['l0_wq'], p['l0_wk'], p['l0_wv'], p['l0_wproj'],   # rows 80..207
         p['top_ff_w2_T'],              # rows 208..335
         p['l0_ff_w2_T']], axis=0)      # rows 336..463
    assert p32.shape == (ROWS32, E)

    b_block = jnp.concatenate(
        [p['lstm_b'], jnp.zeros((7, 4 * H_LSTM), jnp.float32)], axis=0)              # [8, 4H]
    p128 = jnp.concatenate(
        [p['lstm_wih'],                 # rows   0..31
         p['lstm_whh'],                 # rows  32..63
         b_block,                       # rows  64..71
         p['top_ff_w1_T'],              # rows  72..103
         p['l0_ff_w1_T']], axis=0)      # rows 104..135
    assert p128.shape == (ROWS128, 4 * H_LSTM)
    return {'p32': p32, 'p128': p128}


# ------------------------------------ main --------------------------------------
if __name__ == "__main__":
    key = jax.random.PRNGKey(0)
    kp, ki = jax.random.split(key)
    params = init_params(kp)
    packed = pack_params(params)
    input_ids = jax.random.randint(ki, (B, S), 0, VOCAB, dtype=jnp.int32)

    fwd = jax.jit(mitransformer_forward)
    x_out, score_dict = fwd(packed, input_ids)

    jax.block_until_ready(x_out)
    jax.block_until_ready(score_dict)

    assert x_out.shape == (B, S, E)
    for tag in TAGS:
        assert score_dict[tag].shape == (N_HEAD, B, S, S)
    print("KERNEL_OK")
</pallas_src>

<mosaic_0001>
module attributes {stable_mosaic.version = 11 : i64} {
  func.func @mitransformer_kernel(%arg0: i32, %arg1: memref<16x1xi32, #tpu.memory_space<vmem>>, %arg2: memref<464x32xf32, #tpu.memory_space<vmem>>, %arg3: memref<136x128xf32, #tpu.memory_space<vmem>>, %arg4: memref<2x8x32xf32, #tpu.memory_space<vmem>>, %arg5: memref<2x1x2x8x8xf32, #tpu.memory_space<vmem>>) attributes {dimension_semantics = [#tpu.dimension_semantics<arbitrary>], iteration_bounds = array<i64: 1>, scalar_prefetch = 0 : i64, scratch_operands = 0 : i64, tpu.core_type = #tpu.core_type<tc>, window_params = [{pipeline_mode = #tpu.pipeline_mode<synchronous>, transform_indices = @transform_0, window_bounds = array<i64: 16, 1>}, {pipeline_mode = #tpu.pipeline_mode<synchronous>, transform_indices = @transform_1, window_bounds = array<i64: 464, 32>}, {pipeline_mode = #tpu.pipeline_mode<synchronous>, transform_indices = @transform_2, window_bounds = array<i64: 136, 128>}, {pipeline_mode = #tpu.pipeline_mode<synchronous>, transform_indices = @transform_3, window_bounds = array<i64: 2, 8, 32>}, {pipeline_mode = #tpu.pipeline_mode<synchronous>, transform_indices = @transform_4, window_bounds = array<i64: 2, 1, 2, 8, 8>}]} {
    %c0 = arith.constant 0 : index
    %c0_0 = arith.constant 0 : index
    %0 = vector.load %arg1[%c0, %c0_0] : memref<16x1xi32, #tpu.memory_space<vmem>>, vector<16x1xi32>
    %c0_1 = arith.constant 0 : index
    %c0_2 = arith.constant 0 : index
    %1 = vector.load %arg2[%c0_1, %c0_2] : memref<464x32xf32, #tpu.memory_space<vmem>>, vector<64x32xf32>
    %2 = tpu.iota {dimensions = array<i32: 1>} : vector<16x64xi32>
    %3 = vector.broadcast %0 : vector<16x1xi32> to vector<16x64xi32>
    %4 = arith.cmpi eq, %2, %3 : vector<16x64xi32>
    %cst = arith.constant 1.000000e+00 : f32
    %cst_3 = arith.constant 0.000000e+00 : f32
    %5 = vector.broadcast %cst : f32 to vector<16x64xf32>
    %6 = vector.broadcast %cst_3 : f32 to vector<16x64xf32>
    %7 = arith.select %4, %5, %6 : vector<16x64xi1>, vector<16x64xf32>
    %cst_4 = arith.constant dense<0.000000e+00> : vector<16x32xf32>
    %8 = tpu.matmul %7, %1, %cst_4 {dimension_numbers = #tpu.dot_dimension_numbers<[1], [0], [0], [1], [0, 0, 1, 1], [], []>} : vector<16x64xf32>, vector<64x32xf32>, vector<16x32xf32> -> vector<16x32xf32>
    %c64 = arith.constant 64 : index
    %c0_5 = arith.constant 0 : index
    %9 = vector.load %arg2[%c64, %c0_5] : memref<464x32xf32, #tpu.memory_space<vmem>>, vector<8x32xf32>
    %10 = vector.shape_cast %8 : vector<16x32xf32> to vector<2x8x32xf32>
    %11 = vector.shape_cast %9 : vector<8x32xf32> to vector<1x8x32xf32>
    %12 = vector.broadcast %11 : vector<1x8x32xf32> to vector<2x8x32xf32>
    %13 = arith.addf %10, %12 : vector<2x8x32xf32>
    %14 = vector.shape_cast %13 : vector<2x8x32xf32> to vector<16x32xf32>
    %c72 = arith.constant 72 : index
    %c0_6 = arith.constant 0 : index
    %15 = vector.load %arg2[%c72, %c0_6] : memref<464x32xf32, #tpu.memory_space<vmem>>, vector<1x32xf32>
    %c73 = arith.constant 73 : index
    %c0_7 = arith.constant 0 : index
    %16 = vector.load %arg2[%c73, %c0_7] : memref<464x32xf32, #tpu.memory_space<vmem>>, vector<1x32xf32>
    %cst_8 = arith.constant dense<0.000000e+00> : vector<16xf32>
    %17 = vector.multi_reduction <add>, %14, %cst_8 [1] : vector<16x32xf32> to vector<16xf32>
    %18 = vector.shape_cast %17 : vector<16xf32> to vector<16x1xf32>
    %cst_9 = arith.constant 3.200000e+01 : f32
    %19 = vector.broadcast %cst_9 : f32 to vector<16x1xf32>
    %20 = arith.divf %18, %19 : vector<16x1xf32>
    %21 = vector.broadcast %20 : vector<16x1xf32> to vector<16x32xf32>
    %22 = arith.subf %14, %21 : vector<16x32xf32>
    %23 = arith.mulf %22, %22 : vector<16x32xf32>
    %cst_10 = arith.constant dense<0.000000e+00> : vector<16xf32>
    %24 = vector.multi_reduction <add>, %23, %cst_10 [1] : vector<16x32xf32> to vector<16xf32>
    %25 = vector.shape_cast %24 : vector<16xf32> to vector<16x1xf32>
    %cst_11 = arith.constant 3.200000e+01 : f32
    %26 = vector.broadcast %cst_11 : f32 to vector<16x1xf32>
    %27 = arith.divf %25, %26 : vector<16x1xf32>
    %cst_12 = arith.constant 9.99999974E-6 : f32
    %28 = vector.broadcast %cst_12 : f32 to vector<16x1xf32>
    %29 = arith.addf %27, %28 : vector<16x1xf32>
    %30 = math.rsqrt %29 : vector<16x1xf32>
    %31 = vector.broadcast %30 : vector<16x1xf32> to vector<16x32xf32>
    %32 = arith.mulf %22, %31 : vector<16x32xf32>
    %33 = vector.broadcast %15 : vector<1x32xf32> to vector<16x32xf32>
    %34 = arith.mulf %32, %33 : vector<16x32xf32>
    %35 = vector.broadcast %16 : vector<1x32xf32> to vector<16x32xf32>
    %36 = arith.addf %34, %35 : vector<16x32xf32>
    %c0_13 = arith.constant 0 : index
    %c0_14 = arith.constant 0 : index
    %37 = vector.load %arg3[%c0_13, %c0_14] : memref<136x128xf32, #tpu.memory_space<vmem>>, vector<32x128xf32>
    %c32 = arith.constant 32 : index
    %c0_15 = arith.constant 0 : index
    %38 = vector.load %arg3[%c32, %c0_15] : memref<136x128xf32, #tpu.memory_space<vmem>>, vector<32x128xf32>
    %c64_16 = arith.constant 64 : index
    %c0_17 = arith.constant 0 : index
    %39 = vector.load %arg3[%c64_16, %c0_17] : memref<136x128xf32, #tpu.memory_space<vmem>>, vector<1x128xf32>
    %cst_18 = arith.constant dense<0.000000e+00> : vector<16x128xf32>
    %40 = tpu.matmul %36, %37, %cst_18 {dimension_numbers = #tpu.dot_dimension_numbers<[1], [0], [0], [1], [0, 0, 1, 1], [], []>} : vector<16x32xf32>, vector<32x128xf32>, vector<16x128xf32> -> vector<16x128xf32>
    %41 = vector.broadcast %39 : vector<1x128xf32> to vector<16x128xf32>
    %42 = arith.addf %40, %41 : vector<16x128xf32>
    %43 = vector.shape_cast %42 : vector<16x128xf32> to vector<2x8x128xf32>
    %cst_19 = arith.constant 0.000000e+00 : f32
    %44 = vector.broadcast %cst_19 : f32 to vector<2x32xf32>
    %cst_20 = arith.constant 0.000000e+00 : f32
    %45 = vector.broadcast %cst_20 : f32 to vector<2x32xf32>
    %cst_21 = arith.constant 0.000000e+00 : f32
    %46 = vector.broadcast %cst_21 : f32 to vector<2x8x32xf32>
    %47 = tpu.iota {dimensions = array<i32: 1>} : vector<1x8x1xi32>
    %48 = vector.extract_strided_slice %43 {offsets = [0, 0, 0], sizes = [2, 1, 128], strides = [1, 1, 1]} : vector<2x8x128xf32> to vector<2x1x128xf32>
    %49 = vector.shape_cast %48 : vector<2x1x128xf32> to vector<2x128xf32>
    %cst_22 = arith.constant dense<0.000000e+00> : vector<2x128xf32>
    %50 = tpu.matmul %44, %38, %cst_22 {dimension_numbers = #tpu.dot_dimension_numbers<[1], [0], [0], [1], [0, 0, 1, 1], [], []>} : vector<2x32xf32>, vector<32x128xf32>, vector<2x128xf32> -> vector<2x128xf32>
    %51 = arith.addf %49, %50 : vector<2x128xf32>
    %52 = vector.extract_strided_slice %51 {offsets = [0, 0], sizes = [2, 32], strides = [1, 1]} : vector<2x128xf32> to vector<2x32xf32>
    %cst_23 = arith.constant 5.000000e-01 : f32
    %53 = vector.broadcast %cst_23 : f32 to vector<2x32xf32>
    %54 = arith.mulf %53, %52 : vector<2x32xf32>
    %55 = math.tanh %54 : vector<2x32xf32>
    %cst_24 = arith.constant 1.000000e+00 : f32
    %56 = vector.broadcast %cst_24 : f32 to vector<2x32xf32>
    %57 = arith.addf %55, %56 : vector<2x32xf32>
    %cst_25 = arith.constant 5.000000e-01 : f32
    %58 = vector.broadcast %cst_25 : f32 to vector<2x32xf32>
    %59 = arith.mulf %58, %57 : vector<2x32xf32>
    %60 = vector.extract_strided_slice %51 {offsets = [0, 32], sizes = [2, 32], strides = [1, 1]} : vector<2x128xf32> to vector<2x32xf32>
    %cst_26 = arith.constant 5.000000e-01 : f32
    %61 = vector.broadcast %cst_26 : f32 to vector<2x32xf32>
    %62 = arith.mulf %61, %60 : vector<2x32xf32>
    %63 = math.tanh %62 : vector<2x32xf32>
    %cst_27 = arith.constant 1.000000e+00 : f32
    %64 = vector.broadcast %cst_27 : f32 to vector<2x32xf32>
    %65 = arith.addf %63, %64 : vector<2x32xf32>
    %cst_28 = arith.constant 5.000000e-01 : f32
    %66 = vector.broadcast %cst_28 : f32 to vector<2x32xf32>
    %67 = arith.mulf %66, %65 : vector<2x32xf32>
    %68 = vector.extract_strided_slice %51 {offsets = [0, 64], sizes = [2, 32], strides = [1, 1]} : vector<2x128xf32> to vector<2x32xf32>
    %69 = math.tanh %68 : vector<2x32xf32>
    %70 = vector.extract_strided_slice %51 {offsets = [0, 96], sizes = [2, 32], strides = [1, 1]} : vector<2x128xf32> to vector<2x32xf32>
    %cst_29 = arith.constant 5.000000e-01 : f32
    %71 = vector.broadcast %cst_29 : f32 to vector<2x32xf32>
    %72 = arith.mulf %71, %70 : vector<2x32xf32>
    %73 = math.tanh %72 : vector<2x32xf32>
    %cst_30 = arith.constant 1.000000e+00 : f32
    %74 = vector.broadcast %cst_30 : f32 to vector<2x32xf32>
    %75 = arith.addf %73, %74 : vector<2x32xf32>
    %cst_31 = arith.constant 5.000000e-01 : f32
    %76 = vector.broadcast %cst_31 : f32 to vector<2x32xf32>
    %77 = arith.mulf %76, %75 : vector<2x32xf32>
    %78 = arith.mulf %67, %45 : vector<2x32xf32>
    %79 = arith.mulf %59, %69 : vector<2x32xf32>
    %80 = arith.addf %78, %79 : vector<2x32xf32>
    %81 = math.tanh %80 : vector<2x32xf32>
    %82 = arith.mulf %77, %81 : vector<2x32xf32>
    %c0_i32 = arith.constant 0 : i32
    %83 = vector.broadcast %c0_i32 : i32 to vector<1x8x1xi32>
    %84 = arith.cmpi eq, %47, %83 : vector<1x8x1xi32>
    %85 = vector.shape_cast %82 : vector<2x32xf32> to vector<2x1x32xf32>
    %86 = vector.shape_cast %84 : vector<1x8x1xi1> to vector<1x8x1xi1>
    %87 = vector.broadcast %86 : vector<1x8x1xi1> to vector<2x8x32xi1>
    %88 = vector.shape_cast %85 : vector<2x1x32xf32> to vector<2x1x32xf32>
    %89 = vector.broadcast %88 : vector<2x1x32xf32> to vector<2x8x32xf32>
    %90 = arith.select %87, %89, %46 : vector<2x8x32xi1>, vector<2x8x32xf32>
    %91 = vector.extract_strided_slice %43 {offsets = [0, 1, 0], sizes = [2, 1, 128], strides = [1, 1, 1]} : vector<2x8x128xf32> to vector<2x1x128xf32>
    %92 = vector.shape_cast %91 : vector<2x1x128xf32> to vector<2x128xf32>
    %cst_32 = arith.constant dense<0.000000e+00> : vector<2x128xf32>
    %93 = tpu.matmul %82, %38, %cst_32 {dimension_numbers = #tpu.dot_dimension_numbers<[1], [0], [0], [1], [0, 0, 1, 1], [], []>} : vector<2x32xf32>, vector<32x128xf32>, vector<2x128xf32> -> vector<2x128xf32>
    %94 = arith.addf %92, %93 : vector<2x128xf32>
    %95 = vector.extract_strided_slice %94 {offsets = [0, 0], sizes = [2, 32], strides = [1, 1]} : vector<2x128xf32> to vector<2x32xf32>
    %cst_33 = arith.constant 5.000000e-01 : f32
    %96 = vector.broadcast %cst_33 : f32 to vector<2x32xf32>
    %97 = arith.mulf %96, %95 : vector<2x32xf32>
    %98 = math.tanh %97 : vector<2x32xf32>
    %cst_34 = arith.constant 1.000000e+00 : f32
    %99 = vector.broadcast %cst_34 : f32 to vector<2x32xf32>
    %100 = arith.addf %98, %99 : vector<2x32xf32>
    %cst_35 = arith.constant 5.000000e-01 : f32
    %101 = vector.broadcast %cst_35 : f32 to vector<2x32xf32>
    %102 = arith.mulf %101, %100 : vector<2x32xf32>
    %103 = vector.extract_strided_slice %94 {offsets = [0, 32], sizes = [2, 32], strides = [1, 1]} : vector<2x128xf32> to vector<2x32xf32>
    %cst_36 = arith.constant 5.000000e-01 : f32
    %104 = vector.broadcast %cst_36 : f32 to vector<2x32xf32>
    %105 = arith.mulf %104, %103 : vector<2x32xf32>
    %106 = math.tanh %105 : vector<2x32xf32>
    %cst_37 = arith.constant 1.000000e+00 : f32
    %107 = vector.broadcast %cst_37 : f32 to vector<2x32xf32>
    %108 = arith.addf %106, %107 : vector<2x32xf32>
    %cst_38 = arith.constant 5.000000e-01 : f32
    %109 = vector.broadcast %cst_38 : f32 to vector<2x32xf32>
    %110 = arith.mulf %109, %108 : vector<2x32xf32>
    %111 = vector.extract_strided_slice %94 {offsets = [0, 64], sizes = [2, 32], strides = [1, 1]} : vector<2x128xf32> to vector<2x32xf32>
    %112 = math.tanh %111 : vector<2x32xf32>
    %113 = vector.extract_strided_slice %94 {offsets = [0, 96], sizes = [2, 32], strides = [1, 1]} : vector<2x128xf32> to vector<2x32xf32>
    %cst_39 = arith.constant 5.000000e-01 : f32
    %114 = vector.broadcast %cst_39 : f32 to vector<2x32xf32>
    %115 = arith.mulf %114, %113 : vector<2x32xf32>
    %116 = math.tanh %115 : vector<2x32xf32>
    %cst_40 = arith.constant 1.000000e+00 : f32
    %117 = vector.broadcast %cst_40 : f32 to vector<2x32xf32>
    %118 = arith.addf %116, %117 : vector<2x32xf32>
    %cst_41 = arith.constant 5.000000e-01 : f32
    %119 = vector.broadcast %cst_41 : f32 to vector<2x32xf32>
    %120 = arith.mulf %119, %118 : vector<2x32xf32>
    %121 = arith.mulf %110, %80 : vector<2x32xf32>
    %122 = arith.mulf %102, %112 : vector<2x32xf32>
    %123 = arith.addf %121, %122 : vector<2x32xf32>
    %124 = math.tanh %123 : vector<2x32xf32>
    %125 = arith.mulf %120, %124 : vector<2x32xf32>
    %c1_i32 = arith.constant 1 : i32
    %126 = vector.broadcast %c1_i32 : i32 to vector<1x8x1xi32>
    %127 = arith.cmpi eq, %47, %126 : vector<1x8x1xi32>
    %128 = vector.shape_cast %125 : vector<2x32xf32> to vector<2x1x32xf32>
    %129 = vector.shape_cast %127 : vector<1x8x1xi1> to vector<1x8x1xi1>
    %130 = vector.broadcast %129 : vector<1x8x1xi1> to vector<2x8x32xi1>
    %131 = vector.shape_cast %128 : vector<2x1x32xf32> to vector<2x1x32xf32>
    %132 = vector.broadcast %131 : vector<2x1x32xf32> to vector<2x8x32xf32>
    %133 = arith.select %130, %132, %90 : vector<2x8x32xi1>, vector<2x8x32xf32>
    %134 = vector.extract_strided_slice %43 {offsets = [0, 2, 0], sizes = [2, 1, 128], strides = [1, 1, 1]} : vector<2x8x128xf32> to vector<2x1x128xf32>
    %135 = vector.shape_cast %134 : vector<2x1x128xf32> to vector<2x128xf32>
    %cst_42 = arith.constant dense<0.000000e+00> : vector<2x128xf32>
    %136 = tpu.matmul %125, %38, %cst_42 {dimension_numbers = #tpu.dot_dimension_numbers<[1], [0], [0], [1], [0, 0, 1, 1], [], []>} : vector<2x32xf32>, vector<32x128xf32>, vector<2x128xf32> -> vector<2x128xf32>
    %137 = arith.addf %135, %136 : vector<2x128xf32>
    %138 = vector.extract_strided_slice %137 {offsets = [0, 0], sizes = [2, 32], strides = [1, 1]} : vector<2x128xf32> to vector<2x32xf32>
    %cst_43 = arith.constant 5.000000e-01 : f32
    %139 = vector.broadcast %cst_43 : f32 to vector<2x32xf32>
    %140 = arith.mulf %139, %138 : vector<2x32xf32>
    %141 = math.tanh %140 : vector<2x32xf32>
    %cst_44 = arith.constant 1.000000e+00 : f32
    %142 = vector.broadcast %cst_44 : f32 to vector<2x32xf32>
    %143 = arith.addf %141, %142 : vector<2x32xf32>
    %cst_45 = arith.constant 5.000000e-01 : f32
    %144 = vector.broadcast %cst_45 : f32 to vector<2x32xf32>
    %145 = arith.mulf %144, %143 : vector<2x32xf32>
    %146 = vector.extract_strided_slice %137 {offsets = [0, 32], sizes = [2, 32], strides = [1, 1]} : vector<2x128xf32> to vector<2x32xf32>
    %cst_46 = arith.constant 5.000000e-01 : f32
    %147 = vector.broadcast %cst_46 : f32 to vector<2x32xf32>
    %148 = arith.mulf %147, %146 : vector<2x32xf32>
    %149 = math.tanh %148 : vector<2x32xf32>
    %cst_47 = arith.constant 1.000000e+00 : f32
    %150 = vector.broadcast %cst_47 : f32 to vector<2x32xf32>
    %151 = arith.addf %149, %150 : vector<2x32xf32>
    %cst_48 = arith.constant 5.000000e-01 : f32
    %152 = vector.broadcast %cst_48 : f32 to vector<2x32xf32>
    %153 = arith.mulf %152, %151 : vector<2x32xf32>
    %154 = vector.extract_strided_slice %137 {offsets = [0, 64], sizes = [2, 32], strides = [1, 1]} : vector<2x128xf32> to vector<2x32xf32>
    %155 = math.tanh %154 : vector<2x32xf32>
    %156 = vector.extract_strided_slice %137 {offsets = [0, 96], sizes = [2, 32], strides = [1, 1]} : vector<2x128xf32> to vector<2x32xf32>
    %cst_49 = arith.constant 5.000000e-01 : f32
    %157 = vector.broadcast %cst_49 : f32 to vector<2x32xf32>
    %158 = arith.mulf %157, %156 : vector<2x32xf32>
    %159 = math.tanh %158 : vector<2x32xf32>
    %cst_50 = arith.constant 1.000000e+00 : f32
    %160 = vector.broadcast %cst_50 : f32 to vector<2x32xf32>
    %161 = arith.addf %159, %160 : vector<2x32xf32>
    %cst_51 = arith.constant 5.000000e-01 : f32
    %162 = vector.broadcast %cst_51 : f32 to vector<2x32xf32>
    %163 = arith.mulf %162, %161 : vector<2x32xf32>
    %164 = arith.mulf %153, %123 : vector<2x32xf32>
    %165 = arith.mulf %145, %155 : vector<2x32xf32>
    %166 = arith.addf %164, %165 : vector<2x32xf32>
    %167 = math.tanh %166 : vector<2x32xf32>
    %168 = arith.mulf %163, %167 : vector<2x32xf32>
    %c2_i32 = arith.constant 2 : i32
    %169 = vector.broadcast %c2_i32 : i32 to vector<1x8x1xi32>
    %170 = arith.cmpi eq, %47, %169 : vector<1x8x1xi32>
    %171 = vector.shape_cast %168 : vector<2x32xf32> to vector<2x1x32xf32>
    %172 = vector.shape_cast %170 : vector<1x8x1xi1> to vector<1x8x1xi1>
    %173 = vector.broadcast %172 : vector<1x8x1xi1> to vector<2x8x32xi1>
    %174 = vector.shape_cast %171 : vector<2x1x32xf32> to vector<2x1x32xf32>
    %175 = vector.broadcast %174 : vector<2x1x32xf32> to vector<2x8x32xf32>
    %176 = arith.select %173, %175, %133 : vector<2x8x32xi1>, vector<2x8x32xf32>
    %177 = vector.extract_strided_slice %43 {offsets = [0, 3, 0], sizes = [2, 1, 128], strides = [1, 1, 1]} : vector<2x8x128xf32> to vector<2x1x128xf32>
    %178 = vector.shape_cast %177 : vector<2x1x128xf32> to vector<2x128xf32>
    %cst_52 = arith.constant dense<0.000000e+00> : vector<2x128xf32>
    %179 = tpu.matmul %168, %38, %cst_52 {dimension_numbers = #tpu.dot_dimension_numbers<[1], [0], [0], [1], [0, 0, 1, 1], [], []>} : vector<2x32xf32>, vector<32x128xf32>, vector<2x128xf32> -> vector<2x128xf32>
    %180 = arith.addf %178, %179 : vector<2x128xf32>
    %181 = vector.extract_strided_slice %180 {offsets = [0, 0], sizes = [2, 32], strides = [1, 1]} : vector<2x128xf32> to vector<2x32xf32>
    %cst_53 = arith.constant 5.000000e-01 : f32
    %182 = vector.broadcast %cst_53 : f32 to vector<2x32xf32>
    %183 = arith.mulf %182, %181 : vector<2x32xf32>
    %184 = math.tanh %183 : vector<2x32xf32>
    %cst_54 = arith.constant 1.000000e+00 : f32
    %185 = vector.broadcast %cst_54 : f32 to vector<2x32xf32>
    %186 = arith.addf %184, %185 : vector<2x32xf32>
    %cst_55 = arith.constant 5.000000e-01 : f32
    %187 = vector.broadcast %cst_55 : f32 to vector<2x32xf32>
    %188 = arith.mulf %187, %186 : vector<2x32xf32>
    %189 = vector.extract_strided_slice %180 {offsets = [0, 32], sizes = [2, 32], strides = [1, 1]} : vector<2x128xf32> to vector<2x32xf32>
    %cst_56 = arith.constant 5.000000e-01 : f32
    %190 = vector.broadcast %cst_56 : f32 to vector<2x32xf32>
    %191 = arith.mulf %190, %189 : vector<2x32xf32>
    %192 = math.tanh %191 : vector<2x32xf32>
    %cst_57 = arith.constant 1.000000e+00 : f32
    %193 = vector.broadcast %cst_57 : f32 to vector<2x32xf32>
    %194 = arith.addf %192, %193 : vector<2x32xf32>
    %cst_58 = arith.constant 5.000000e-01 : f32
    %195 = vector.broadcast %cst_58 : f32 to vector<2x32xf32>
    %196 = arith.mulf %195, %194 : vector<2x32xf32>
    %197 = vector.extract_strided_slice %180 {offsets = [0, 64], sizes = [2, 32], strides = [1, 1]} : vector<2x128xf32> to vector<2x32xf32>
    %198 = math.tanh %197 : vector<2x32xf32>
    %199 = vector.extract_strided_slice %180 {offsets = [0, 96], sizes = [2, 32], strides = [1, 1]} : vector<2x128xf32> to vector<2x32xf32>
    %cst_59 = arith.constant 5.000000e-01 : f32
    %200 = vector.broadcast %cst_59 : f32 to vector<2x32xf32>
    %201 = arith.mulf %200, %199 : vector<2x32xf32>
    %202 = math.tanh %201 : vector<2x32xf32>
    %cst_60 = arith.constant 1.000000e+00 : f32
    %203 = vector.broadcast %cst_60 : f32 to vector<2x32xf32>
    %204 = arith.addf %202, %203 : vector<2x32xf32>
    %cst_61 = arith.constant 5.000000e-01 : f32
    %205 = vector.broadcast %cst_61 : f32 to vector<2x32xf32>
    %206 = arith.mulf %205, %204 : vector<2x32xf32>
    %207 = arith.mulf %196, %166 : vector<2x32xf32>
    %208 = arith.mulf %188, %198 : vector<2x32xf32>
    %209 = arith.addf %207, %208 : vector<2x32xf32>
    %210 = math.tanh %209 : vector<2x32xf32>
    %211 = arith.mulf %206, %210 : vector<2x32xf32>
    %c3_i32 = arith.constant 3 : i32
    %212 = vector.broadcast %c3_i32 : i32 to vector<1x8x1xi32>
    %213 = arith.cmpi eq, %47, %212 : vector<1x8x1xi32>
    %214 = vector.shape_cast %211 : vector<2x32xf32> to vector<2x1x32xf32>
    %215 = vector.shape_cast %213 : vector<1x8x1xi1> to vector<1x8x1xi1>
    %216 = vector.broadcast %215 : vector<1x8x1xi1> to vector<2x8x32xi1>
    %217 = vector.shape_cast %214 : vector<2x1x32xf32> to vector<2x1x32xf32>
    %218 = vector.broadcast %217 : vector<2x1x32xf32> to vector<2x8x32xf32>
    %219 = arith.select %216, %218, %176 : vector<2x8x32xi1>, vector<2x8x32xf32>
    %220 = vector.extract_strided_slice %43 {offsets = [0, 4, 0], sizes = [2, 1, 128], strides = [1, 1, 1]} : vector<2x8x128xf32> to vector<2x1x128xf32>
    %221 = vector.shape_cast %220 : vector<2x1x128xf32> to vector<2x128xf32>
    %cst_62 = arith.constant dense<0.000000e+00> : vector<2x128xf32>
    %222 = tpu.matmul %211, %38, %cst_62 {dimension_numbers = #tpu.dot_dimension_numbers<[1], [0], [0], [1], [0, 0, 1, 1], [], []>} : vector<2x32xf32>, vector<32x128xf32>, vector<2x128xf32> -> vector<2x128xf32>
    %223 = arith.addf %221, %222 : vector<2x128xf32>
    %224 = vector.extract_strided_slice %223 {offsets = [0, 0], sizes = [2, 32], strides = [1, 1]} : vector<2x128xf32> to vector<2x32xf32>
    %cst_63 = arith.constant 5.000000e-01 : f32
    %225 = vector.broadcast %cst_63 : f32 to vector<2x32xf32>
    %226 = arith.mulf %225, %224 : vector<2x32xf32>
    %227 = math.tanh %226 : vector<2x32xf32>
    %cst_64 = arith.constant 1.000000e+00 : f32
    %228 = vector.broadcast %cst_64 : f32 to vector<2x32xf32>
    %229 = arith.addf %227, %228 : vector<2x32xf32>
    %cst_65 = arith.constant 5.000000e-01 : f32
    %230 = vector.broadcast %cst_65 : f32 to vector<2x32xf32>
    %231 = arith.mulf %230, %229 : vector<2x32xf32>
    %232 = vector.extract_strided_slice %223 {offsets = [0, 32], sizes = [2, 32], strides = [1, 1]} : vector<2x128xf32> to vector<2x32xf32>
    %cst_66 = arith.constant 5.000000e-01 : f32
    %233 = vector.broadcast %cst_66 : f32 to vector<2x32xf32>
    %234 = arith.mulf %233, %232 : vector<2x32xf32>
    %235 = math.tanh %234 : vector<2x32xf32>
    %cst_67 = arith.constant 1.000000e+00 : f32
    %236 = vector.broadcast %cst_67 : f32 to vector<2x32xf32>
    %237 = arith.addf %235, %236 : vector<2x32xf32>
    %cst_68 = arith.constant 5.000000e-01 : f32
    %238 = vector.broadcast %cst_68 : f32 to vector<2x32xf32>
    %239 = arith.mulf %238, %237 : vector<2x32xf32>
    %240 = vector.extract_strided_slice %223 {offsets = [0, 64], sizes = [2, 32], strides = [1, 1]} : vector<2x128xf32> to vector<2x32xf32>
    %241 = math.tanh %240 : vector<2x32xf32>
    %242 = vector.extract_strided_slice %223 {offsets = [0, 96], sizes = [2, 32], strides = [1, 1]} : vector<2x128xf32> to vector<2x32xf32>
    %cst_69 = arith.constant 5.000000e-01 : f32
    %243 = vector.broadcast %cst_69 : f32 to vector<2x32xf32>
    %244 = arith.mulf %243, %242 : vector<2x32xf32>
    %245 = math.tanh %244 : vector<2x32xf32>
    %cst_70 = arith.constant 1.000000e+00 : f32
    %246 = vector.broadcast %cst_70 : f32 to vector<2x32xf32>
    %247 = arith.addf %245, %246 : vector<2x32xf32>
    %cst_71 = arith.constant 5.000000e-01 : f32
    %248 = vector.broadcast %cst_71 : f32 to vector<2x32xf32>
    %249 = arith.mulf %248, %247 : vector<2x32xf32>
    %250 = arith.mulf %239, %209 : vector<2x32xf32>
    %251 = arith.mulf %231, %241 : vector<2x32xf32>
    %252 = arith.addf %250, %251 : vector<2x32xf32>
    %253 = math.tanh %252 : vector<2x32xf32>
    %254 = arith.mulf %249, %253 : vector<2x32xf32>
    %c4_i32 = arith.constant 4 : i32
    %255 = vector.broadcast %c4_i32 : i32 to vector<1x8x1xi32>
    %256 = arith.cmpi eq, %47, %255 : vector<1x8x1xi32>
    %257 = vector.shape_cast %254 : vector<2x32xf32> to vector<2x1x32xf32>
    %258 = vector.shape_cast %256 : vector<1x8x1xi1> to vector<1x8x1xi1>
    %259 = vector.broadcast %258 : vector<1x8x1xi1> to vector<2x8x32xi1>
    %260 = vector.shape_cast %257 : vector<2x1x32xf32> to vector<2x1x32xf32>
    %261 = vector.broadcast %260 : vector<2x1x32xf32> to vector<2x8x32xf32>
    %262 = arith.select %259, %261, %219 : vector<2x8x32xi1>, vector<2x8x32xf32>
    %263 = vector.extract_strided_slice %43 {offsets = [0, 5, 0], sizes = [2, 1, 128], strides = [1, 1, 1]} : vector<2x8x128xf32> to vector<2x1x128xf32>
    %264 = vector.shape_cast %263 : vector<2x1x128xf32> to vector<2x128xf32>
    %cst_72 = arith.constant dense<0.000000e+00> : vector<2x128xf32>
    %265 = tpu.matmul %254, %38, %cst_72 {dimension_numbers = #tpu.dot_dimension_numbers<[1], [0], [0], [1], [0, 0, 1, 1], [], []>} : vector<2x32xf32>, vector<32x128xf32>, vector<2x128xf32> -> vector<2x128xf32>
    %266 = arith.addf %264, %265 : vector<2x128xf32>
    %267 = vector.extract_strided_slice %266 {offsets = [0, 0], sizes = [2, 32], strides = [1, 1]} : vector<2x128xf32> to vector<2x32xf32>
    %cst_73 = arith.constant 5.000000e-01 : f32
    %268 = vector.broadcast %cst_73 : f32 to vector<2x32xf32>
    %269 = arith.mulf %268, %267 : vector<2x32xf32>
    %270 = math.tanh %269 : vector<2x32xf32>
    %cst_74 = arith.constant 1.000000e+00 : f32
    %271 = vector.broadcast %cst_74 : f32 to vector<2x32xf32>
    %272 = arith.addf %270, %271 : vector<2x32xf32>
    %cst_75 = arith.constant 5.000000e-01 : f32
    %273 = vector.broadcast %cst_75 : f32 to vector<2x32xf32>
    %274 = arith.mulf %273, %272 : vector<2x32xf32>
    %275 = vector.extract_strided_slice %266 {offsets = [0, 32], sizes = [2, 32], strides = [1, 1]} : vector<2x128xf32> to vector<2x32xf32>
    %cst_76 = arith.constant 5.000000e-01 : f32
    %276 = vector.broadcast %cst_76 : f32 to vector<2x32xf32>
    %277 = arith.mulf %276, %275 : vector<2x32xf32>
    %278 = math.tanh %277 : vector<2x32xf32>
    %cst_77 = arith.constant 1.000000e+00 : f32
    %279 = vector.broadcast %cst_77 : f32 to vector<2x32xf32>
    %280 = arith.addf %278, %279 : vector<2x32xf32>
    %cst_78 = arith.constant 5.000000e-01 : f32
    %281 = vector.broadcast %cst_78 : f32 to vector<2x32xf32>
    %282 = arith.mulf %281, %280 : vector<2x32xf32>
    %283 = vector.extract_strided_slice %266 {offsets = [0, 64], sizes = [2, 32], strides = [1, 1]} : vector<2x128xf32> to vector<2x32xf32>
    %284 = math.tanh %283 : vector<2x32xf32>
    %285 = vector.extract_strided_slice %266 {offsets = [0, 96], sizes = [2, 32], strides = [1, 1]} : vector<2x128xf32> to vector<2x32xf32>
    %cst_79 = arith.constant 5.000000e-01 : f32
    %286 = vector.broadcast %cst_79 : f32 to vector<2x32xf32>
    %287 = arith.mulf %286, %285 : vector<2x32xf32>
    %288 = math.tanh %287 : vector<2x32xf32>
    %cst_80 = arith.constant 1.000000e+00 : f32
    %289 = vector.broadcast %cst_80 : f32 to vector<2x32xf32>
    %290 = arith.addf %288, %289 : vector<2x32xf32>
    %cst_81 = arith.constant 5.000000e-01 : f32
    %291 = vector.broadcast %cst_81 : f32 to vector<2x32xf32>
    %292 = arith.mulf %291, %290 : vector<2x32xf32>
    %293 = arith.mulf %282, %252 : vector<2x32xf32>
    %294 = arith.mulf %274, %284 : vector<2x32xf32>
    %295 = arith.addf %293, %294 : vector<2x32xf32>
    %296 = math.tanh %295 : vector<2x32xf32>
    %297 = arith.mulf %292, %296 : vector<2x32xf32>
    %c5_i32 = arith.constant 5 : i32
    %298 = vector.broadcast %c5_i32 : i32 to vector<1x8x1xi32>
    %299 = arith.cmpi eq, %47, %298 : vector<1x8x1xi32>
    %300 = vector.shape_cast %297 : vector<2x32xf32> to vector<2x1x32xf32>
    %301 = vector.shape_cast %299 : vector<1x8x1xi1> to vector<1x8x1xi1>
    %302 = vector.broadcast %301 : vector<1x8x1xi1> to vector<2x8x32xi1>
    %303 = vector.shape_cast %300 : vector<2x1x32xf32> to vector<2x1x32xf32>
    %304 = vector.broadcast %303 : vector<2x1x32xf32> to vector<2x8x32xf32>
    %305 = arith.select %302, %304, %262 : vector<2x8x32xi1>, vector<2x8x32xf32>
    %306 = vector.extract_strided_slice %43 {offsets = [0, 6, 0], sizes = [2, 1, 128], strides = [1, 1, 1]} : vector<2x8x128xf32> to vector<2x1x128xf32>
    %307 = vector.shape_cast %306 : vector<2x1x128xf32> to vector<2x128xf32>
    %cst_82 = arith.constant dense<0.000000e+00> : vector<2x128xf32>
    %308 = tpu.matmul %297, %38, %cst_82 {dimension_numbers = #tpu.dot_dimension_numbers<[1], [0], [0], [1], [0, 0, 1, 1], [], []>} : vector<2x32xf32>, vector<32x128xf32>, vector<2x128xf32> -> vector<2x128xf32>
    %309 = arith.addf %307, %308 : vector<2x128xf32>
    %310 = vector.extract_strided_slice %309 {offsets = [0, 0], sizes = [2, 32], strides = [1, 1]} : vector<2x128xf32> to vector<2x32xf32>
    %cst_83 = arith.constant 5.000000e-01 : f32
    %311 = vector.broadcast %cst_83 : f32 to vector<2x32xf32>
    %312 = arith.mulf %311, %310 : vector<2x32xf32>
    %313 = math.tanh %312 : vector<2x32xf32>
    %cst_84 = arith.constant 1.000000e+00 : f32
    %314 = vector.broadcast %cst_84 : f32 to vector<2x32xf32>
    %315 = arith.addf %313, %314 : vector<2x32xf32>
    %cst_85 = arith.constant 5.000000e-01 : f32
    %316 = vector.broadcast %cst_85 : f32 to vector<2x32xf32>
    %317 = arith.mulf %316, %315 : vector<2x32xf32>
    %318 = vector.extract_strided_slice %309 {offsets = [0, 32], sizes = [2, 32], strides = [1, 1]} : vector<2x128xf32> to vector<2x32xf32>
    %cst_86 = arith.constant 5.000000e-01 : f32
    %319 = vector.broadcast %cst_86 : f32 to vector<2x32xf32>
    %320 = arith.mulf %319, %318 : vector<2x32xf32>
    %321 = math.tanh %320 : vector<2x32xf32>
    %cst_87 = arith.constant 1.000000e+00 : f32
    %322 = vector.broadcast %cst_87 : f32 to vector<2x32xf32>
    %323 = arith.addf %321, %322 : vector<2x32xf32>
    %cst_88 = arith.constant 5.000000e-01 : f32
    %324 = vector.broadcast %cst_88 : f32 to vector<2x32xf32>
    %325 = arith.mulf %324, %323 : vector<2x32xf32>
    %326 = vector.extract_strided_slice %309 {offsets = [0, 64], sizes = [2, 32], strides = [1, 1]} : vector<2x128xf32> to vector<2x32xf32>
    %327 = math.tanh %326 : vector<2x32xf32>
    %328 = vector.extract_strided_slice %309 {offsets = [0, 96], sizes = [2, 32], strides = [1, 1]} : vector<2x128xf32> to vector<2x32xf32>
    %cst_89 = arith.constant 5.000000e-01 : f32
    %329 = vector.broadcast %cst_89 : f32 to vector<2x32xf32>
    %330 = arith.mulf %329, %328 : vector<2x32xf32>
    %331 = math.tanh %330 : vector<2x32xf32>
    %cst_90 = arith.constant 1.000000e+00 : f32
    %332 = vector.broadcast %cst_90 : f32 to vector<2x32xf32>
    %333 = arith.addf %331, %332 : vector<2x32xf32>
    %cst_91 = arith.constant 5.000000e-01 : f32
    %334 = vector.broadcast %cst_91 : f32 to vector<2x32xf32>
    %335 = arith.mulf %334, %333 : vector<2x32xf32>
    %336 = arith.mulf %325, %295 : vector<2x32xf32>
    %337 = arith.mulf %317, %327 : vector<2x32xf32>
    %338 = arith.addf %336, %337 : vector<2x32xf32>
    %339 = math.tanh %338 : vector<2x32xf32>
    %340 = arith.mulf %335, %339 : vector<2x32xf32>
    %c6_i32 = arith.constant 6 : i32
    %341 = vector.broadcast %c6_i32 : i32 to vector<1x8x1xi32>
    %342 = arith.cmpi eq, %47, %341 : vector<1x8x1xi32>
    %343 = vector.shape_cast %340 : vector<2x32xf32> to vector<2x1x32xf32>
    %344 = vector.shape_cast %342 : vector<1x8x1xi1> to vector<1x8x1xi1>
    %345 = vector.broadcast %344 : vector<1x8x1xi1> to vector<2x8x32xi1>
    %346 = vector.shape_cast %343 : vector<2x1x32xf32> to vector<2x1x32xf32>
    %347 = vector.broadcast %346 : vector<2x1x32xf32> to vector<2x8x32xf32>
    %348 = arith.select %345, %347, %305 : vector<2x8x32xi1>, vector<2x8x32xf32>
    %349 = vector.extract_strided_slice %43 {offsets = [0, 7, 0], sizes = [2, 1, 128], strides = [1, 1, 1]} : vector<2x8x128xf32> to vector<2x1x128xf32>
    %350 = vector.shape_cast %349 : vector<2x1x128xf32> to vector<2x128xf32>
    %cst_92 = arith.constant dense<0.000000e+00> : vector<2x128xf32>
    %351 = tpu.matmul %340, %38, %cst_92 {dimension_numbers = #tpu.dot_dimension_numbers<[1], [0], [0], [1], [0, 0, 1, 1], [], []>} : vector<2x32xf32>, vector<32x128xf32>, vector<2x128xf32> -> vector<2x128xf32>
    %352 = arith.addf %350, %351 : vector<2x128xf32>
    %353 = vector.extract_strided_slice %352 {offsets = [0, 0], sizes = [2, 32], strides = [1, 1]} : vector<2x128xf32> to vector<2x32xf32>
    %cst_93 = arith.constant 5.000000e-01 : f32
    %354 = vector.broadcast %cst_93 : f32 to vector<2x32xf32>
    %355 = arith.mulf %354, %353 : vector<2x32xf32>
    %356 = math.tanh %355 : vector<2x32xf32>
    %cst_94 = arith.constant 1.000000e+00 : f32
    %357 = vector.broadcast %cst_94 : f32 to vector<2x32xf32>
    %358 = arith.addf %356, %357 : vector<2x32xf32>
    %cst_95 = arith.constant 5.000000e-01 : f32
    %359 = vector.broadcast %cst_95 : f32 to vector<2x32xf32>
    %360 = arith.mulf %359, %358 : vector<2x32xf32>
    %361 = vector.extract_strided_slice %352 {offsets = [0, 32], sizes = [2, 32], strides = [1, 1]} : vector<2x128xf32> to vector<2x32xf32>
    %cst_96 = arith.constant 5.000000e-01 : f32
    %362 = vector.broadcast %cst_96 : f32 to vector<2x32xf32>
    %363 = arith.mulf %362, %361 : vector<2x32xf32>
    %364 = math.tanh %363 : vector<2x32xf32>
    %cst_97 = arith.constant 1.000000e+00 : f32
    %365 = vector.broadcast %cst_97 : f32 to vector<2x32xf32>
    %366 = arith.addf %364, %365 : vector<2x32xf32>
    %cst_98 = arith.constant 5.000000e-01 : f32
    %367 = vector.broadcast %cst_98 : f32 to vector<2x32xf32>
    %368 = arith.mulf %367, %366 : vector<2x32xf32>
    %369 = vector.extract_strided_slice %352 {offsets = [0, 64], sizes = [2, 32], strides = [1, 1]} : vector<2x128xf32> to vector<2x32xf32>
    %370 = math.tanh %369 : vector<2x32xf32>
    %371 = vector.extract_strided_slice %352 {offsets = [0, 96], sizes = [2, 32], strides = [1, 1]} : vector<2x128xf32> to vector<2x32xf32>
    %cst_99 = arith.constant 5.000000e-01 : f32
    %372 = vector.broadcast %cst_99 : f32 to vector<2x32xf32>
    %373 = arith.mulf %372, %371 : vector<2x32xf32>
    %374 = math.tanh %373 : vector<2x32xf32>
    %cst_100 = arith.constant 1.000000e+00 : f32
    %375 = vector.broadcast %cst_100 : f32 to vector<2x32xf32>
    %376 = arith.addf %374, %375 : vector<2x32xf32>
    %cst_101 = arith.constant 5.000000e-01 : f32
    %377 = vector.broadcast %cst_101 : f32 to vector<2x32xf32>
    %378 = arith.mulf %377, %376 : vector<2x32xf32>
    %379 = arith.mulf %368, %338 : vector<2x32xf32>
    %380 = arith.mulf %360, %370 : vector<2x32xf32>
    %381 = arith.addf %379, %380 : vector<2x32xf32>
    %382 = math.tanh %381 : vector<2x32xf32>
    %383 = arith.mulf %378, %382 : vector<2x32xf32>
    %c7_i32 = arith.constant 7 : i32
    %384 = vector.broadcast %c7_i32 : i32 to vector<1x8x1xi32>
    %385 = arith.cmpi eq, %47, %384 : vector<1x8x1xi32>
    %386 = vector.shape_cast %383 : vector<2x32xf32> to vector<2x1x32xf32>
    %387 = vector.shape_cast %385 : vector<1x8x1xi1> to vector<1x8x1xi1>
    %388 = vector.broadcast %387 : vector<1x8x1xi1> to vector<2x8x32xi1>
    %389 = vector.shape_cast %386 : vector<2x1x32xf32> to vector<2x1x32xf32>
    %390 = vector.broadcast %389 : vector<2x1x32xf32> to vector<2x8x32xf32>
    %391 = arith.select %388, %390, %348 : vector<2x8x32xi1>, vector<2x8x32xf32>
    %392 = vector.shape_cast %391 : vector<2x8x32xf32> to vector<16x32xf32>
    %393 = arith.addf %14, %392 : vector<16x32xf32>
    %c74 = arith.constant 74 : index
    %c0_102 = arith.constant 0 : index
    %394 = vector.load %arg2[%c74, %c0_102] : memref<464x32xf32, #tpu.memory_space<vmem>>, vector<1x32xf32>
    %c75 = arith.constant 75 : index
    %c0_103 = arith.constant 0 : index
    %395 = vector.load %arg2[%c75, %c0_103] : memref<464x32xf32, #tpu.memory_space<vmem>>, vector<1x32xf32>
    %cst_104 = arith.constant dense<0.000000e+00> : vector<16xf32>
    %396 = vector.multi_reduction <add>, %393, %cst_104 [1] : vector<16x32xf32> to vector<16xf32>
    %397 = vector.shape_cast %396 : vector<16xf32> to vector<16x1xf32>
    %cst_105 = arith.constant 3.200000e+01 : f32
    %398 = vector.broadcast %cst_105 : f32 to vector<16x1xf32>
    %399 = arith.divf %397, %398 : vector<16x1xf32>
    %400 = vector.broadcast %399 : vector<16x1xf32> to vector<16x32xf32>
    %401 = arith.subf %393, %400 : vector<16x32xf32>
    %402 = arith.mulf %401, %401 : vector<16x32xf32>
    %cst_106 = arith.constant dense<0.000000e+00> : vector<16xf32>
    %403 = vector.multi_reduction <add>, %402, %cst_106 [1] : vector<16x32xf32> to vector<16xf32>
    %404 = vector.shape_cast %403 : vector<16xf32> to vector<16x1xf32>
    %cst_107 = arith.constant 3.200000e+01 : f32
    %405 = vector.broadcast %cst_107 : f32 to vector<16x1xf32>
    %406 = arith.divf %404, %405 : vector<16x1xf32>
    %cst_108 = arith.constant 9.99999974E-6 : f32
    %407 = vector.broadcast %cst_108 : f32 to vector<16x1xf32>
    %408 = arith.addf %406, %407 : vector<16x1xf32>
    %409 = math.rsqrt %408 : vector<16x1xf32>
    %410 = vector.broadcast %409 : vector<16x1xf32> to vector<16x32xf32>
    %411 = arith.mulf %401, %410 : vector<16x32xf32>
    %412 = vector.broadcast %394 : vector<1x32xf32> to vector<16x32xf32>
    %413 = arith.mulf %411, %412 : vector<16x32xf32>
    %414 = vector.broadcast %395 : vector<1x32xf32> to vector<16x32xf32>
    %415 = arith.addf %413, %414 : vector<16x32xf32>
    %c72_109 = arith.constant 72 : index
    %c0_110 = arith.constant 0 : index
    %416 = vector.load %arg3[%c72_109, %c0_110] : memref<136x128xf32, #tpu.memory_space<vmem>>, vector<32x128xf32>
    %c208 = arith.constant 208 : index
    %c0_111 = arith.constant 0 : index
    %417 = vector.load %arg2[%c208, %c0_111] : memref<464x32xf32, #tpu.memory_space<vmem>>, vector<128x32xf32>
    %cst_112 = arith.constant dense<0.000000e+00> : vector<16x128xf32>
    %418 = tpu.matmul %415, %416, %cst_112 {dimension_numbers = #tpu.dot_dimension_numbers<[1], [0], [0], [1], [0, 0, 1, 1], [], []>} : vector<16x32xf32>, vector<32x128xf32>, vector<16x128xf32> -> vector<16x128xf32>
    %cst_113 = arith.constant 5.000000e-01 : f32
    %419 = vector.broadcast %cst_113 : f32 to vector<16x128xf32>
    %420 = arith.mulf %419, %418 : vector<16x128xf32>
    %cst_114 = arith.constant 0.707106769 : f32
    %421 = vector.broadcast %cst_114 : f32 to vector<16x128xf32>
    %422 = arith.mulf %418, %421 : vector<16x128xf32>
    %cst_115 = arith.constant 0.000000e+00 : f32
    %423 = vector.broadcast %cst_115 : f32 to vector<16x128xf32>
    %424 = arith.cmpf oge, %422, %423 : vector<16x128xf32>
    %cst_116 = arith.constant 1.000000e+00 : f32
    %cst_117 = arith.constant -1.000000e+00 : f32
    %425 = vector.broadcast %cst_116 : f32 to vector<16x128xf32>
    %426 = vector.broadcast %cst_117 : f32 to vector<16x128xf32>
    %427 = arith.select %424, %425, %426 : vector<16x128xi1>, vector<16x128xf32>
    %428 = math.absf %422 : vector<16x128xf32>
    %cst_118 = arith.constant 0.327591091 : f32
    %429 = vector.broadcast %cst_118 : f32 to vector<16x128xf32>
    %430 = arith.mulf %429, %428 : vector<16x128xf32>
    %cst_119 = arith.constant 1.000000e+00 : f32
    %431 = vector.broadcast %cst_119 : f32 to vector<16x128xf32>
    %432 = arith.addf %431, %430 : vector<16x128xf32>
    %cst_120 = arith.constant 1.000000e+00 : f32
    %433 = vector.broadcast %cst_120 : f32 to vector<16x128xf32>
    %434 = arith.divf %433, %432 : vector<16x128xf32>
    %cst_121 = arith.constant 1.06140542 : f32
    %435 = vector.broadcast %cst_121 : f32 to vector<16x128xf32>
    %436 = arith.mulf %435, %434 : vector<16x128xf32>
    %cst_122 = arith.constant -1.45315206 : f32
    %437 = vector.broadcast %cst_122 : f32 to vector<16x128xf32>
    %438 = arith.addf %436, %437 : vector<16x128xf32>
    %439 = arith.mulf %438, %434 : vector<16x128xf32>
    %cst_123 = arith.constant 1.42141378 : f32
    %440 = vector.broadcast %cst_123 : f32 to vector<16x128xf32>
    %441 = arith.addf %439, %440 : vector<16x128xf32>
    %442 = arith.mulf %441, %434 : vector<16x128xf32>
    %cst_124 = arith.constant -0.284496725 : f32
    %443 = vector.broadcast %cst_124 : f32 to vector<16x128xf32>
    %444 = arith.addf %442, %443 : vector<16x128xf32>
    %445 = arith.mulf %444, %434 : vector<16x128xf32>
    %cst_125 = arith.constant 0.254829586 : f32
    %446 = vector.broadcast %cst_125 : f32 to vector<16x128xf32>
    %447 = arith.addf %445, %446 : vector<16x128xf32>
    %448 = arith.mulf %447, %434 : vector<16x128xf32>
    %cst_126 = arith.constant 0.000000e+00 : f32
    %449 = vector.broadcast %cst_126 : f32 to vector<16x128xf32>
    %450 = arith.subf %449, %428 : vector<16x128xf32>
    %451 = arith.mulf %450, %428 : vector<16x128xf32>
    %452 = math.exp %451 : vector<16x128xf32>
    %453 = arith.mulf %448, %452 : vector<16x128xf32>
    %cst_127 = arith.constant 1.000000e+00 : f32
    %454 = vector.broadcast %cst_127 : f32 to vector<16x128xf32>
    %455 = arith.subf %454, %453 : vector<16x128xf32>
    %456 = arith.mulf %427, %455 : vector<16x128xf32>
    %cst_128 = arith.constant 1.000000e+00 : f32
    %457 = vector.broadcast %cst_128 : f32 to vector<16x128xf32>
    %458 = arith.addf %457, %456 : vector<16x128xf32>
    %459 = arith.mulf %420, %458 : vector<16x128xf32>
    %cst_129 = arith.constant dense<0.000000e+00> : vector<16x32xf32>
    %460 = tpu.matmul %459, %417, %cst_129 {dimension_numbers = #tpu.dot_dimension_numbers<[1], [0], [0], [1], [0, 0, 1, 1], [], []>} : vector<16x128xf32>, vector<128x32xf32>, vector<16x32xf32> -> vector<16x32xf32>
    %461 = arith.addf %393, %460 : vector<16x32xf32>
    %c76 = arith.constant 76 : index
    %c0_130 = arith.constant 0 : index
    %462 = vector.load %arg2[%c76, %c0_130] : memref<464x32xf32, #tpu.memory_space<vmem>>, vector<1x32xf32>
    %cst_131 = arith.constant dense<0.000000e+00> : vector<16xf32>
    %463 = vector.multi_reduction <add>, %461, %cst_131 [1] : vector<16x32xf32> to vector<16xf32>
    %464 = vector.shape_cast %463 : vector<16xf32> to vector<16x1xf32>
    %cst_132 = arith.constant 3.200000e+01 : f32
    %465 = vector.broadcast %cst_132 : f32 to vector<16x1xf32>
    %466 = arith.divf %464, %465 : vector<16x1xf32>
    %467 = vector.broadcast %466 : vector<16x1xf32> to vector<16x32xf32>
    %468 = arith.subf %461, %467 : vector<16x32xf32>
    %469 = arith.mulf %468, %468 : vector<16x32xf32>
    %cst_133 = arith.constant dense<0.000000e+00> : vector<16xf32>
    %470 = vector.multi_reduction <add>, %469, %cst_133 [1] : vector<16x32xf32> to vector<16xf32>
    %471 = vector.shape_cast %470 : vector<16xf32> to vector<16x1xf32>
    %cst_134 = arith.constant 3.200000e+01 : f32
    %472 = vector.broadcast %cst_134 : f32 to vector<16x1xf32>
    %473 = arith.divf %471, %472 : vector<16x1xf32>
    %cst_135 = arith.constant 9.99999974E-6 : f32
    %474 = vector.broadcast %cst_135 : f32 to vector<16x1xf32>
    %475 = arith.addf %473, %474 : vector<16x1xf32>
    %476 = math.rsqrt %475 : vector<16x1xf32>
    %477 = vector.broadcast %476 : vector<16x1xf32> to vector<16x32xf32>
    %478 = arith.mulf %468, %477 : vector<16x32xf32>
    %479 = vector.broadcast %462 : vector<1x32xf32> to vector<16x32xf32>
    %480 = arith.mulf %478, %479 : vector<16x32xf32>
    %c80 = arith.constant 80 : index
    %c0_136 = arith.constant 0 : index
    %481 = vector.load %arg2[%c80, %c0_136] : memref<464x32xf32, #tpu.memory_space<vmem>>, vector<32x32xf32>
    %c112 = arith.constant 112 : index
    %c0_137 = arith.constant 0 : index
    %482 = vector.load %arg2[%c112, %c0_137] : memref<464x32xf32, #tpu.memory_space<vmem>>, vector<32x32xf32>
    %c144 = arith.constant 144 : index
    %c0_138 = arith.constant 0 : index
    %483 = vector.load %arg2[%c144, %c0_138] : memref<464x32xf32, #tpu.memory_space<vmem>>, vector<32x32xf32>
    %cst_139 = arith.constant dense<0.000000e+00> : vector<16x32xf32>
    %484 = tpu.matmul %480, %481, %cst_139 {dimension_numbers = #tpu.dot_dimension_numbers<[1], [0], [0], [1], [0, 0, 1, 1], [], []>} : vector<16x32xf32>, vector<32x32xf32>, vector<16x32xf32> -> vector<16x32xf32>
    %cst_140 = arith.constant dense<0.000000e+00> : vector<16x32xf32>
    %485 = tpu.matmul %480, %482, %cst_140 {dimension_numbers = #tpu.dot_dimension_numbers<[1], [0], [0], [1], [0, 0, 1, 1], [], []>} : vector<16x32xf32>, vector<32x32xf32>, vector<16x32xf32> -> vector<16x32xf32>
    %cst_141 = arith.constant dense<0.000000e+00> : vector<16x32xf32>
    %486 = tpu.matmul %480, %483, %cst_141 {dimension_numbers = #tpu.dot_dimension_numbers<[1], [0], [0], [1], [0, 0, 1, 1], [], []>} : vector<16x32xf32>, vector<32x32xf32>, vector<16x32xf32> -> vector<16x32xf32>
    %487 = tpu.iota {dimensions = array<i32: 0>} : vector<8x8xi32>
    %488 = tpu.iota {dimensions = array<i32: 1>} : vector<8x8xi32>
    %489 = arith.cmpi sle, %488, %487 : vector<8x8xi32>
    %490 = vector.shape_cast %489 : vector<8x8xi1> to vector<1x8x8xi1>
    %cst_142 = arith.constant 0.000000e+00 : f32
    %491 = vector.broadcast %cst_142 : f32 to vector<16x32xf32>
    %492 = vector.extract_strided_slice %484 {offsets = [0, 0], sizes = [16, 16], strides = [1, 1]} : vector<16x32xf32> to vector<16x16xf32>
    %493 = vector.shape_cast %492 : vector<16x16xf32> to vector<2x8x16xf32>
    %494 = vector.extract_strided_slice %485 {offsets = [0, 0], sizes = [16, 16], strides = [1, 1]} : vector<16x32xf32> to vector<16x16xf32>
    %495 = vector.shape_cast %494 : vector<16x16xf32> to vector<2x8x16xf32>
    %496 = vector.extract_strided_slice %486 {offsets = [0, 0], sizes = [16, 16], strides = [1, 1]} : vector<16x32xf32> to vector<16x16xf32>
    %497 = vector.shape_cast %496 : vector<16x16xf32> to vector<2x8x16xf32>
    "tpu.trace_start"() <{level = 10 : i32, message = "bqe,bke->bqk"}> : () -> ()
    %cst_143 = arith.constant dense<0.000000e+00> : vector<2x8x8xf32>
    %498 = tpu.matmul %493, %495, %cst_143 {dimension_numbers = #tpu.dot_dimension_numbers<[2], [2], [1], [1], [0, 0, 0, 1, 1, 1], [0], [0]>} : vector<2x8x16xf32>, vector<2x8x16xf32>, vector<2x8x8xf32> -> vector<2x8x8xf32>
    %cst_144 = arith.constant 0xFF800000 : f32
    "tpu.trace_stop"() : () -> ()
    %499 = vector.shape_cast %490 : vector<1x8x8xi1> to vector<1x8x8xi1>
    %500 = vector.broadcast %499 : vector<1x8x8xi1> to vector<2x8x8xi1>
    %501 = vector.broadcast %cst_144 : f32 to vector<2x8x8xf32>
    %502 = arith.select %500, %498, %501 : vector<2x8x8xi1>, vector<2x8x8xf32>
    %cst_145 = arith.constant dense<0xFF800000> : vector<2x8xf32>
    %503 = vector.multi_reduction <maximumf>, %502, %cst_145 [2] : vector<2x8x8xf32> to vector<2x8xf32>
    %504 = vector.shape_cast %503 : vector<2x8xf32> to vector<2x8x1xf32>
    %505 = vector.broadcast %504 : vector<2x8x1xf32> to vector<2x8x8xf32>
    %506 = arith.subf %502, %505 : vector<2x8x8xf32>
    %507 = math.exp %506 : vector<2x8x8xf32>
    %cst_146 = arith.constant dense<0.000000e+00> : vector<2x8xf32>
    %508 = vector.multi_reduction <add>, %507, %cst_146 [2] : vector<2x8x8xf32> to vector<2x8xf32>
    %509 = vector.shape_cast %508 : vector<2x8xf32> to vector<2x8x1xf32>
    %510 = tpu.reciprocal %509 {approx = true} : vector<2x8x1xf32> -> vector<2x8x1xf32>
    %511 = vector.broadcast %510 : vector<2x8x1xf32> to vector<2x8x8xf32>
    %512 = arith.mulf %507, %511 : vector<2x8x8xf32>
    "tpu.trace_start"() <{level = 10 : i32, message = "bqk,bke->bqe"}> : () -> ()
    %cst_147 = arith.constant dense<0.000000e+00> : vector<2x8x16xf32>
    %513 = tpu.matmul %512, %497, %cst_147 {dimension_numbers = #tpu.dot_dimension_numbers<[2], [1], [1], [2], [0, 0, 0, 1, 1, 2], [0], [0]>} : vector<2x8x8xf32>, vector<2x8x16xf32>, vector<2x8x16xf32> -> vector<2x8x16xf32>
    "tpu.trace_stop"() : () -> ()
    %c176 = arith.constant 176 : index
    %c0_148 = arith.constant 0 : index
    %514 = vector.load %arg2[%c176, %c0_148] : memref<464x32xf32, #tpu.memory_space<vmem>>, vector<16x32xf32>
    %515 = vector.shape_cast %513 : vector<2x8x16xf32> to vector<16x16xf32>
    %cst_149 = arith.constant dense<0.000000e+00> : vector<16x32xf32>
    %516 = tpu.matmul %515, %514, %cst_149 {dimension_numbers = #tpu.dot_dimension_numbers<[1], [0], [0], [1], [0, 0, 1, 1], [], []>} : vector<16x16xf32>, vector<16x32xf32>, vector<16x32xf32> -> vector<16x32xf32>
    %517 = arith.addf %491, %516 : vector<16x32xf32>
    %518 = vector.extract_strided_slice %484 {offsets = [0, 16], sizes = [16, 16], strides = [1, 1]} : vector<16x32xf32> to vector<16x16xf32>
    %519 = vector.shape_cast %518 : vector<16x16xf32> to vector<2x8x16xf32>
    %520 = vector.extract_strided_slice %485 {offsets = [0, 16], sizes = [16, 16], strides = [1, 1]} : vector<16x32xf32> to vector<16x16xf32>
    %521 = vector.shape_cast %520 : vector<16x16xf32> to vector<2x8x16xf32>
    %522 = vector.extract_strided_slice %486 {offsets = [0, 16], sizes = [16, 16], strides = [1, 1]} : vector<16x32xf32> to vector<16x16xf32>
    %523 = vector.shape_cast %522 : vector<16x16xf32> to vector<2x8x16xf32>
    "tpu.trace_start"() <{level = 10 : i32, message = "bqe,bke->bqk"}> : () -> ()
    %cst_150 = arith.constant dense<0.000000e+00> : vector<2x8x8xf32>
    %524 = tpu.matmul %519, %521, %cst_150 {dimension_numbers = #tpu.dot_dimension_numbers<[2], [2], [1], [1], [0, 0, 0, 1, 1, 1], [0], [0]>} : vector<2x8x16xf32>, vector<2x8x16xf32>, vector<2x8x8xf32> -> vector<2x8x8xf32>
    %cst_151 = arith.constant 0xFF800000 : f32
    "tpu.trace_stop"() : () -> ()
    %525 = vector.shape_cast %490 : vector<1x8x8xi1> to vector<1x8x8xi1>
    %526 = vector.broadcast %525 : vector<1x8x8xi1> to vector<2x8x8xi1>
    %527 = vector.broadcast %cst_151 : f32 to vector<2x8x8xf32>
    %528 = arith.select %526, %524, %527 : vector<2x8x8xi1>, vector<2x8x8xf32>
    %cst_152 = arith.constant dense<0xFF800000> : vector<2x8xf32>
    %529 = vector.multi_reduction <maximumf>, %528, %cst_152 [2] : vector<2x8x8xf32> to vector<2x8xf32>
    %530 = vector.shape_cast %529 : vector<2x8xf32> to vector<2x8x1xf32>
    %531 = vector.broadcast %530 : vector<2x8x1xf32> to vector<2x8x8xf32>
    %532 = arith.subf %528, %531 : vector<2x8x8xf32>
    %533 = math.exp %532 : vector<2x8x8xf32>
    %cst_153 = arith.constant dense<0.000000e+00> : vector<2x8xf32>
    %534 = vector.multi_reduction <add>, %533, %cst_153 [2] : vector<2x8x8xf32> to vector<2x8xf32>
    %535 = vector.shape_cast %534 : vector<2x8xf32> to vector<2x8x1xf32>
    %536 = tpu.reciprocal %535 {approx = true} : vector<2x8x1xf32> -> vector<2x8x1xf32>
    %537 = vector.broadcast %536 : vector<2x8x1xf32> to vector<2x8x8xf32>
    %538 = arith.mulf %533, %537 : vector<2x8x8xf32>
    "tpu.trace_start"() <{level = 10 : i32, message = "bqk,bke->bqe"}> : () -> ()
    %cst_154 = arith.constant dense<0.000000e+00> : vector<2x8x16xf32>
    %539 = tpu.matmul %538, %523, %cst_154 {dimension_numbers = #tpu.dot_dimension_numbers<[2], [1], [1], [2], [0, 0, 0, 1, 1, 2], [0], [0]>} : vector<2x8x8xf32>, vector<2x8x16xf32>, vector<2x8x16xf32> -> vector<2x8x16xf32>
    "tpu.trace_stop"() : () -> ()
    %c192 = arith.constant 192 : index
    %c0_155 = arith.constant 0 : index
    %540 = vector.load %arg2[%c192, %c0_155] : memref<464x32xf32, #tpu.memory_space<vmem>>, vector<16x32xf32>
    %541 = vector.shape_cast %539 : vector<2x8x16xf32> to vector<16x16xf32>
    %cst_156 = arith.constant dense<0.000000e+00> : vector<16x32xf32>
    %542 = tpu.matmul %541, %540, %cst_156 {dimension_numbers = #tpu.dot_dimension_numbers<[1], [0], [0], [1], [0, 0, 1, 1], [], []>} : vector<16x16xf32>, vector<16x32xf32>, vector<16x32xf32> -> vector<16x32xf32>
    %543 = arith.addf %517, %542 : vector<16x32xf32>
    %544 = vector.shape_cast %502 : vector<2x8x8xf32> to vector<1x2x8x8xf32>
    %545 = vector.shape_cast %528 : vector<2x8x8xf32> to vector<1x2x8x8xf32>
    %546 = tpu.concatenate %544, %545 in 0 : vector<1x2x8x8xf32>, vector<1x2x8x8xf32> -> vector<2x2x8x8xf32>
    %547 = vector.shape_cast %546 : vector<2x2x8x8xf32> to vector<2x1x2x8x8xf32>
    %c0_157 = arith.constant 0 : index
    %c0_158 = arith.constant 0 : index
    %c0_159 = arith.constant 0 : index
    %c0_160 = arith.constant 0 : index
    %c0_161 = arith.constant 0 : index
    %548 = vector.load %arg5[%c0_157, %c0_158, %c0_159, %c0_160, %c0_161] : memref<2x1x2x8x8xf32, #tpu.memory_space<vmem>>, vector<2x1x2x8x8xf32>
    tpu.vector_store %arg5[%c0_157, %c0_158, %c0_159, %c0_160, %c0_161], %547 {strides = array<i32>} : memref<2x1x2x8x8xf32, #tpu.memory_space<vmem>>, vector<2x1x2x8x8xf32>,
    %549 = arith.addf %461, %543 : vector<16x32xf32>
    %c77 = arith.constant 77 : index
    %c0_162 = arith.constant 0 : index
    %550 = vector.load %arg2[%c77, %c0_162] : memref<464x32xf32, #tpu.memory_space<vmem>>, vector<1x32xf32>
    %cst_163 = arith.constant dense<0.000000e+00> : vector<16xf32>
    %551 = vector.multi_reduction <add>, %549, %cst_163 [1] : vector<16x32xf32> to vector<16xf32>
    %552 = vector.shape_cast %551 : vector<16xf32> to vector<16x1xf32>
    %cst_164 = arith.constant 3.200000e+01 : f32
    %553 = vector.broadcast %cst_164 : f32 to vector<16x1xf32>
    %554 = arith.divf %552, %553 : vector<16x1xf32>
    %555 = vector.broadcast %554 : vector<16x1xf32> to vector<16x32xf32>
    %556 = arith.subf %549, %555 : vector<16x32xf32>
    %557 = arith.mulf %556, %556 : vector<16x32xf32>
    %cst_165 = arith.constant dense<0.000000e+00> : vector<16xf32>
    %558 = vector.multi_reduction <add>, %557, %cst_165 [1] : vector<16x32xf32> to vector<16xf32>
    %559 = vector.shape_cast %558 : vector<16xf32> to vector<16x1xf32>
    %cst_166 = arith.constant 3.200000e+01 : f32
    %560 = vector.broadcast %cst_166 : f32 to vector<16x1xf32>
    %561 = arith.divf %559, %560 : vector<16x1xf32>
    %cst_167 = arith.constant 9.99999974E-6 : f32
    %562 = vector.broadcast %cst_167 : f32 to vector<16x1xf32>
    %563 = arith.addf %561, %562 : vector<16x1xf32>
    %564 = math.rsqrt %563 : vector<16x1xf32>
    %565 = vector.broadcast %564 : vector<16x1xf32> to vector<16x32xf32>
    %566 = arith.mulf %556, %565 : vector<16x32xf32>
    %567 = vector.broadcast %550 : vector<1x32xf32> to vector<16x32xf32>
    %568 = arith.mulf %566, %567 : vector<16x32xf32>
    %c104 = arith.constant 104 : index
    %c0_168 = arith.constant 0 : index
    %569 = vector.load %arg3[%c104, %c0_168] : memref<136x128xf32, #tpu.memory_space<vmem>>, vector<32x128xf32>
    %c336 = arith.constant 336 : index
    %c0_169 = arith.constant 0 : index
    %570 = vector.load %arg2[%c336, %c0_169] : memref<464x32xf32, #tpu.memory_space<vmem>>, vector<128x32xf32>
    %cst_170 = arith.constant dense<0.000000e+00> : vector<16x128xf32>
    %571 = tpu.matmul %568, %569, %cst_170 {dimension_numbers = #tpu.dot_dimension_numbers<[1], [0], [0], [1], [0, 0, 1, 1], [], []>} : vector<16x32xf32>, vector<32x128xf32>, vector<16x128xf32> -> vector<16x128xf32>
    %cst_171 = arith.constant 5.000000e-01 : f32
    %572 = vector.broadcast %cst_171 : f32 to vector<16x128xf32>
    %573 = arith.mulf %572, %571 : vector<16x128xf32>
    %cst_172 = arith.constant 0.707106769 : f32
    %574 = vector.broadcast %cst_172 : f32 to vector<16x128xf32>
    %575 = arith.mulf %571, %574 : vector<16x128xf32>
    %cst_173 = arith.constant 0.000000e+00 : f32
    %576 = vector.broadcast %cst_173 : f32 to vector<16x128xf32>
    %577 = arith.cmpf oge, %575, %576 : vector<16x128xf32>
    %cst_174 = arith.constant 1.000000e+00 : f32
    %cst_175 = arith.constant -1.000000e+00 : f32
    %578 = vector.broadcast %cst_174 : f32 to vector<16x128xf32>
    %579 = vector.broadcast %cst_175 : f32 to vector<16x128xf32>
    %580 = arith.select %577, %578, %579 : vector<16x128xi1>, vector<16x128xf32>
    %581 = math.absf %575 : vector<16x128xf32>
    %cst_176 = arith.constant 0.327591091 : f32
    %582 = vector.broadcast %cst_176 : f32 to vector<16x128xf32>
    %583 = arith.mulf %582, %581 : vector<16x128xf32>
    %cst_177 = arith.constant 1.000000e+00 : f32
    %584 = vector.broadcast %cst_177 : f32 to vector<16x128xf32>
    %585 = arith.addf %584, %583 : vector<16x128xf32>
    %cst_178 = arith.constant 1.000000e+00 : f32
    %586 = vector.broadcast %cst_178 : f32 to vector<16x128xf32>
    %587 = arith.divf %586, %585 : vector<16x128xf32>
    %cst_179 = arith.constant 1.06140542 : f32
    %588 = vector.broadcast %cst_179 : f32 to vector<16x128xf32>
    %589 = arith.mulf %588, %587 : vector<16x128xf32>
    %cst_180 = arith.constant -1.45315206 : f32
    %590 = vector.broadcast %cst_180 : f32 to vector<16x128xf32>
    %591 = arith.addf %589, %590 : vector<16x128xf32>
    %592 = arith.mulf %591, %587 : vector<16x128xf32>
    %cst_181 = arith.constant 1.42141378 : f32
    %593 = vector.broadcast %cst_181 : f32 to vector<16x128xf32>
    %594 = arith.addf %592, %593 : vector<16x128xf32>
    %595 = arith.mulf %594, %587 : vector<16x128xf32>
    %cst_182 = arith.constant -0.284496725 : f32
    %596 = vector.broadcast %cst_182 : f32 to vector<16x128xf32>
    %597 = arith.addf %595, %596 : vector<16x128xf32>
    %598 = arith.mulf %597, %587 : vector<16x128xf32>
    %cst_183 = arith.constant 0.254829586 : f32
    %599 = vector.broadcast %cst_183 : f32 to vector<16x128xf32>
    %600 = arith.addf %598, %599 : vector<16x128xf32>
    %601 = arith.mulf %600, %587 : vector<16x128xf32>
    %cst_184 = arith.constant 0.000000e+00 : f32
    %602 = vector.broadcast %cst_184 : f32 to vector<16x128xf32>
    %603 = arith.subf %602, %581 : vector<16x128xf32>
    %604 = arith.mulf %603, %581 : vector<16x128xf32>
    %605 = math.exp %604 : vector<16x128xf32>
    %606 = arith.mulf %601, %605 : vector<16x128xf32>
    %cst_185 = arith.constant 1.000000e+00 : f32
    %607 = vector.broadcast %cst_185 : f32 to vector<16x128xf32>
    %608 = arith.subf %607, %606 : vector<16x128xf32>
    %609 = arith.mulf %580, %608 : vector<16x128xf32>
    %cst_186 = arith.constant 1.000000e+00 : f32
    %610 = vector.broadcast %cst_186 : f32 to vector<16x128xf32>
    %611 = arith.addf %610, %609 : vector<16x128xf32>
    %612 = arith.mulf %573, %611 : vector<16x128xf32>
    %cst_187 = arith.constant dense<0.000000e+00> : vector<16x32xf32>
    %613 = tpu.matmul %612, %570, %cst_187 {dimension_numbers = #tpu.dot_dimension_numbers<[1], [0], [0], [1], [0, 0, 1, 1], [], []>} : vector<16x128xf32>, vector<128x32xf32>, vector<16x32xf32> -> vector<16x32xf32>
    %614 = arith.addf %549, %613 : vector<16x32xf32>
    %615 = vector.shape_cast %614 : vector<16x32xf32> to vector<2x8x32xf32>
    %c0_188 = arith.constant 0 : index
    %c0_189 = arith.constant 0 : index
    %c0_190 = arith.constant 0 : index
    %616 = vector.load %arg4[%c0_188, %c0_189, %c0_190] : memref<2x8x32xf32, #tpu.memory_space<vmem>>, vector<2x8x32xf32>
    tpu.vector_store %arg4[%c0_188, %c0_189, %c0_190], %615 {strides = array<i32>} : memref<2x8x32xf32, #tpu.memory_space<vmem>>, vector<2x8x32xf32>,
    return
  }
  func.func @transform_0(%arg0: i32) -> (i32, i32) {
    %c0_i32 = arith.constant 0 : i32
    %c0_i32_0 = arith.constant 0 : i32
    %c0_i32_1 = arith.constant 0 : i32
    return %c0_i32, %c0_i32_0 : i32, i32
  }
  func.func @transform_1(%arg0: i32) -> (i32, i32) {
    %c0_i32 = arith.constant 0 : i32
    %c0_i32_0 = arith.constant 0 : i32
    %c0_i32_1 = arith.constant 0 : i32
    return %c0_i32, %c0_i32_0 : i32, i32
  }
  func.func @transform_2(%arg0: i32) -> (i32, i32) {
    %c0_i32 = arith.constant 0 : i32
    %c0_i32_0 = arith.constant 0 : i32
    %c0_i32_1 = arith.constant 0 : i32
    return %c0_i32, %c0_i32_0 : i32, i32
  }
  func.func @transform_3(%arg0: i32) -> (i32, i32, i32) {
    %c0_i32 = arith.constant 0 : i32
    %c0_i32_0 = arith.constant 0 : i32
    %c0_i32_1 = arith.constant 0 : i32
    %c0_i32_2 = arith.constant 0 : i32
    return %c0_i32, %c0_i32_0, %c0_i32_1 : i32, i32, i32
  }
  func.func @transform_4(%arg0: i32) -> (i32, i32, i32, i32, i32) {
    %c0_i32 = arith.constant 0 : i32
    %c0_i32_0 = arith.constant 0 : i32
    %c0_i32_1 = arith.constant 0 : i32
    %c0_i32_2 = arith.constant 0 : i32
    %c0_i32_3 = arith.constant 0 : i32
    %c0_i32_4 = arith.constant 0 : i32
    return %c0_i32, %c0_i32_0, %c0_i32_1, %c0_i32_2, %c0_i32_3 : i32, i32, i32, i32, i32
  }
}

</mosaic_0001>

<llo_original>
// kernel: mitransformer_forward.1
$region0: #{mitransformer_forward.1}
  #allocation0 [shape = 'u32[]', space=smem, size = 0x4, offset = 0x4, fixed_abs, tag = 'smem constant byte address 0x4 - core index']
  #allocation1 [shape = 'u32[144,128]{1,0:T(1,128)}', space=vmem, size = 0x12000, scoped, tag = 'internal scratch']
  %s0 = inlined_call_operand.vmem [shape: s32[16,1], index: 0, kind: input, shape index: {}]
  %s1 = inlined_call_operand.vmem [shape: f32[464,32], index: 1, kind: input, shape index: {}]
  %s2 = inlined_call_operand.vmem [shape: f32[136,128], index: 2, kind: input, shape index: {}]
  %s3 = inlined_call_operand.hbm [shape: f32[2,8,32], index: 3, kind: output, shape index: {0}]
  %s4 = inlined_call_operand.vmem [shape: f32[2,1,2,8,8], index: 4, kind: output, shape index: {1}]
  %5 = xla_tuple %s3, %s4
  %s6 = sld [smem:[#allocation0]]
  $region30: #{mitransformer_forward.1} parent=0
    _
  %s8 = ssub.s32 1, %s6
  %s9 = scalar_select 0, %s8, %s6
  $region1: #{mitransformer_forward.1} parent=0
    #allocation2 [shape = 'u8[8192]{0}', space=vmem, size = 0x2000, scoped, tag = 'output window, operand 0, single buffered']
    #allocation3 [shape = 's32[1]{0}', space=sflag, size = 0x4, scoped, tag = 'scoped memory for mitransformer_forward.1']
    %10 = vsyncpa [#allocation3], 0
    // Predicated region
    $region2: #{mitransformer_forward.1} parent=1 // pred_check
      _
    $region3: #{mitransformer_forward.1} parent=1 // pred_check_branch
      %12 = sbr.rel (0) target = $region5
    $region4: #{mitransformer_forward.1} parent=1 // pred_region
      _
    $region5: #{mitransformer_forward.1} parent=1 // pred_fallthru
      _
    // Predicated region
    $region6: #{mitransformer_forward.1} parent=1 // pred_check
      _
    $region7: #{mitransformer_forward.1} parent=1 // pred_check_branch
      %14 = sbr.rel (0) target = $region9
    $region8: #{mitransformer_forward.1} parent=1 // pred_region
      _
    $region9: #{mitransformer_forward.1} parent=1 // pred_fallthru
      _
    // Predicated region
    $region10: #{mitransformer_forward.1} parent=1 // pred_check
      _
    $region11: #{mitransformer_forward.1} parent=1 // pred_check_branch
      %16 = sbr.rel (0) target = $region13
    $region12: #{mitransformer_forward.1} parent=1 // pred_region
      _
    $region13: #{mitransformer_forward.1} parent=1 // pred_fallthru
      _
    %v17 = vld [vmem:[%s0] sm:$0xff]
    %v18 = vld [vmem:[%s0 + $0x8] sm:$0xff]
    %v19 = vld [vmem:[%s1] sm:$0xff]
    %v20 = vld [vmem:[%s1 + $0x8] sm:$0xff]
    %v21 = vld [vmem:[%s1 + $0x10] sm:$0xff]
    %v22 = vld [vmem:[%s1 + $0x18] sm:$0xff]
    %v23 = vld [vmem:[%s1 + $0x20] sm:$0xff]
    %v24 = vld [vmem:[%s1 + $0x28] sm:$0xff]
    %v25 = vld [vmem:[%s1 + $0x30] sm:$0xff]
    %v26 = vld [vmem:[%s1 + $0x38] sm:$0xff]
    %v27 = vlaneseq
    %v28 = vand.u32 %v27, 127
    %29 = vset.pattern.permute.xlu0 0
    %30 = vperm.xlu0 %29, %v17
    %v31 = vpop.permute.xlu0 %30
    %32 = vset.pattern.permute.xlu0 0
    %33 = vperm.xlu0 %32, %v18
    %v34 = vpop.permute.xlu0 %33
    %vm35 = vcmp.eq.s32.totalorder %v28, %v31
    %vm36 = vcmp.eq.s32.totalorder %v28, %v34
    %v37 = vsel %vm35, 1.0, 0.0
    %v38 = vsel %vm36, 1.0, 0.0
    %vm39 = vcmask 523264
    %v41 = vsel %vm39, %v37, 0
    %v44 = vsel %vm39, %v38, 0
    %46 = vmatprep.subr.mxu0 0.0
    %47 = vmatpush1.msra.mxu0 %v19
    %48 = vmatprep.subr.mxu0 0.0
    %49 = vmatpush1.msra.mxu0 %v20
    %50 = vmatprep.subr.mxu0 0.0
    %51 = vmatpush1.msra.mxu0 %v21
    %52 = vmatprep.subr.mxu0 0.0
    %53 = vmatpush1.msra.mxu0 %v22
    %54 = vmatprep.subr.mxu0 0.0
    %55 = vmatpush1.msra.mxu0 %v23
    %56 = vmatprep.subr.mxu0 0.0
    %57 = vmatpush1.msra.mxu0 %v24
    %58 = vmatprep.subr.mxu0 0.0
    %59 = vmatpush1.msra.mxu0 %v25
    %60 = vmatprep.subr.mxu0 0.0
    %61 = vmatpush1.msra.mxu0 %v26
    %62 = vmatprep.subr.mxu0 0.0
    %63 = vmatpush1.msra.mxu0 0.0
    %64 = vmatprep.subr.mxu0 0.0
    %65 = vmatpush1.msra.mxu0 0.0
    %66 = vmatprep.subr.mxu0 0.0
    %67 = vmatpush1.msra.mxu0 0.0
    %68 = vmatprep.subr.mxu0 0.0
    %69 = vmatpush1.msra.mxu0 0.0
    %70 = vmatprep.subr.mxu0 0.0
    %71 = vmatpush1.msra.mxu0 0.0
    %72 = vmatprep.subr.mxu0 0.0
    %73 = vmatpush1.msra.mxu0 0.0
    %74 = vmatprep.subr.mxu0 0.0
    %75 = vmatpush1.msra.mxu0 0.0
    %76 = vmatprep.subr.mxu0 0.0
    %77 = vmatpush1.msra.mxu0 0.0
    %78 = vmatprep.subr.mxu0 0.0
    %79 = vmatpush1.msra.mxu0 0.0
    %80 = vmatprep.subr.mxu0 0.0
    %81 = vmatpush1.msra.mxu0 0.0
    %82 = vmatprep.subr.mxu0 0.0
    %83 = vmatpush1.msra.mxu0 0.0
    %84 = vmatprep.subr.mxu0 0.0
    %85 = vmatpush1.msra.mxu0 0.0
    %86 = vmatprep.subr.mxu0 0.0
    %87 = vmatpush1.msra.mxu0 0.0
    %88 = vmatprep.subr.mxu0 0.0
    %89 = vmatpush1.msra.mxu0 0.0
    %90 = vmatprep.subr.mxu0 0.0
    %91 = vmatpush1.msra.mxu0 0.0
    %92 = vmatprep.subr.mxu0 0.0
    %93 = vmatpush1.msra.mxu0 0.0
    %94 = vmatprep.subr.mxu0 0.0
    %95 = vmatpush1.msra.mxu0 0.0
    %96 = vmatprep.subr.mxu0 0.0
    %97 = vmatpush1.msra.mxu0 0.0
    %98 = vmatprep.subr.mxu0 0.0
    %99 = vmatpush1.msra.mxu0 0.0
    %100 = vmatprep.subr.mxu0 0.0
    %101 = vmatpush1.msra.mxu0 0.0
    %102 = vmatprep.subr.mxu0 0.0
    %103 = vmatpush1.msra.mxu0 0.0
    %104 = vmatprep.subr.mxu0 0.0
    %105 = vmatpush1.msra.mxu0 0.0
    %106 = vmatprep.subr.mxu0 0.0
    %107 = vmatpush1.msra.mxu0 0.0
    %108 = vmatprep.subr.mxu0 0.0
    %109 = vmatpush1.msra.mxu0 0.0
    %110 = vmatprep.mubr.f32.mxu0 0.0
    %111 = vmatmul.mubr.f32.gmra.mrb[0].mxu0 %v41
    %v112 = vpop.f32.mrb[0].mxu0
    %v113 = vadd.f32 0.0, %v112
    %v114 = vpop.f32.mrb[0].mxu0
    %115 = vmatprep.mubr.f32.mxu0 0.0
    %116 = vmatmul.mubr.f32.gmra.mrb[0].mxu0 %v44
    %v117 = vpop.f32.mrb[0].mxu0
    %v118 = vadd.f32 0.0, %v117
    %v119 = vpop.f32.mrb[0].mxu0
    %120 = vdwg.mxu0
    %v121 = vld [vmem:[%s1 + $0x40] sm:$0xff]
    %v122 = vadd.f32 %v113, %v121
    %v123 = vadd.f32 %v118, %v121
    %v124 = vld [vmem:[%s1 + $0x48] sm:$0x1]
    %v125 = vld [vmem:[%s1 + $0x49] sm:$0x1]
    %vm126 = vcmask 261120
    %v127 = vsel %vm126, %v122, 0.0
    %128 = vadd.xlane.f32.xlu0 %v127
    %v129 = vpop.xlane.xlu0 %128
    %v130 = vsel %vm126, %v123, 0.0
    %131 = vadd.xlane.f32.xlu0 %v130
    %v132 = vpop.xlane.xlu0 %131
    %v133 = vrcp.pop 32.0
    %v134 = vmul.f32 %v129, %v133
    %v135 = vmul.f32 %v132, %v133
    %v136 = vsub.f32 %v122, %v134
    %v137 = vsub.f32 %v123, %v135
    %v138 = vmul.f32 %v136, %v136
    %v139 = vmul.f32 %v137, %v137
    %v140 = vsel %vm126, %v138, 0.0
    %141 = vadd.xlane.f32.xlu0 %v140
    %v142 = vpop.xlane.xlu0 %141
    %v143 = vsel %vm126, %v139, 0.0
    %144 = vadd.xlane.f32.xlu0 %v143
    %v145 = vpop.xlane.xlu0 %144
    %v146 = vmul.f32 %v142, %v133
    %v147 = vmul.f32 %v145, %v133
    %v148 = vadd.f32 %v146, 1e-05
    %v149 = vadd.f32 %v147, 1e-05
    %v150 = vrsqrt.pop %v148
    %v151 = vrsqrt.pop %v149
    %v152 = vmul.f32 %v136, %v150
    %v153 = vmul.f32 %v137, %v151
    %v154 = vlaneseq
    %v155 = vshrl.u32 %v154, 7
    %v156 = vsub.s32 0, %v155
    %v157 = vrot.slane %v124, %v156
    %v158 = vmul.f32 %v152, %v157
    %v159 = vmul.f32 %v153, %v157
    %v160 = vlaneseq
    %v161 = vshrl.u32 %v160, 7
    %v162 = vsub.s32 0, %v161
    %v163 = vrot.slane %v125, %v162
    %v164 = vadd.f32 %v158, %v163
    %v165 = vadd.f32 %v159, %v163
    %v166 = vld [vmem:[%s2] sm:$0xff]
    %v167 = vld [vmem:[%s2 + $0x8] sm:$0xff]
    %v168 = vld [vmem:[%s2 + $0x10] sm:$0xff]
    %v169 = vld [vmem:[%s2 + $0x18] sm:$0xff]
    %v170 = vld [vmem:[%s2 + $0x20] sm:$0xff]
    %v171 = vld [vmem:[%s2 + $0x28] sm:$0xff]
    %v172 = vld [vmem:[%s2 + $0x30] sm:$0xff]
    %v173 = vld [vmem:[%s2 + $0x38] sm:$0xff]
    %v174 = vld [vmem:[%s2 + $0x40] sm:$0x1]
    %v175 = vlaneseq
    %v176 = vshrl.u32 %v175, 7
    %v177 = vsub.s32 0, %v176
    %v178 = vrot.slane %v174, %v177
    %v180 = vsel %vm126, %v164, 0
    %v183 = vsel %vm126, %v165, 0
    %185 = vmatprep.subr.mxu0 0.0
    %186 = vmatpush1.msra.mxu0 %v166
    %187 = vmatprep.subr.mxu0 0.0
    %188 = vmatpush1.msra.mxu0 %v167
    %189 = vmatprep.subr.mxu0 0.0
    %190 = vmatpush1.msra.mxu0 %v168
    %191 = vmatprep.subr.mxu0 0.0
    %192 = vmatpush1.msra.mxu0 %v169
    %193 = vmatprep.subr.mxu0 0.0
    %194 = vmatpush1.msra.mxu0 0.0
    %195 = vmatprep.subr.mxu0 0.0
    %196 = vmatpush1.msra.mxu0 0.0
    %197 = vmatprep.subr.mxu0 0.0
    %198 = vmatpush1.msra.mxu0 0.0
    %199 = vmatprep.subr.mxu0 0.0
    %200 = vmatpush1.msra.mxu0 0.0
    %201 = vmatprep.subr.mxu0 0.0
    %202 = vmatpush1.msra.mxu0 0.0
    %203 = vmatprep.subr.mxu0 0.0
    %204 = vmatpush1.msra.mxu0 0.0
    %205 = vmatprep.subr.mxu0 0.0
    %206 = vmatpush1.msra.mxu0 0.0
    %207 = vmatprep.subr.mxu0 0.0
    %208 = vmatpush1.msra.mxu0 0.0
    %209 = vmatprep.subr.mxu0 0.0
    %210 = vmatpush1.msra.mxu0 0.0
    %211 = vmatprep.subr.mxu0 0.0
    %212 = vmatpush1.msra.mxu0 0.0
    %213 = vmatprep.subr.mxu0 0.0
    %214 = vmatpush1.msra.mxu0 0.0
    %215 = vmatprep.subr.mxu0 0.0
    %216 = vmatpush1.msra.mxu0 0.0
    %217 = vmatprep.subr.mxu0 0.0
    %218 = vmatpush1.msra.mxu0 0.0
    %219 = vmatprep.subr.mxu0 0.0
    %220 = vmatpush1.msra.mxu0 0.0
    %221 = vmatprep.subr.mxu0 0.0
    %222 = vmatpush1.msra.mxu0 0.0
    %223 = vmatprep.subr.mxu0 0.0
    %224 = vmatpush1.msra.mxu0 0.0
    %225 = vmatprep.subr.mxu0 0.0
    %226 = vmatpush1.msra.mxu0 0.0
    %227 = vmatprep.subr.mxu0 0.0
    %228 = vmatpush1.msra.mxu0 0.0
    %229 = vmatprep.subr.mxu0 0.0
    %230 = vmatpush1.msra.mxu0 0.0
    %231 = vmatprep.subr.mxu0 0.0
    %232 = vmatpush1.msra.mxu0 0.0
    %233 = vmatprep.subr.mxu0 0.0
    %234 = vmatpush1.msra.mxu0 0.0
    %235 = vmatprep.subr.mxu0 0.0
    %236 = vmatpush1.msra.mxu0 0.0
    %237 = vmatprep.subr.mxu0 0.0
    %238 = vmatpush1.msra.mxu0 0.0
    %239 = vmatprep.subr.mxu0 0.0
    %240 = vmatpush1.msra.mxu0 0.0
    %241 = vmatprep.subr.mxu0 0.0
    %242 = vmatpush1.msra.mxu0 0.0
    %243 = vmatprep.subr.mxu0 0.0
    %244 = vmatpush1.msra.mxu0 0.0
    %245 = vmatprep.subr.mxu0 0.0
    %246 = vmatpush1.msra.mxu0 0.0
    %247 = vmatprep.subr.mxu0 0.0
    %248 = vmatpush1.msra.mxu0 0.0
    %249 = vmatprep.mubr.f32.mxu0 0.0
    %250 = vmatmul.mubr.f32.gmra.mrb[0].mxu0 %v180
    %v251 = vpop.f32.mrb[0].mxu0
    %v252 = vadd.f32 %v178, %v251
    %v253 = vpop.f32.mrb[0].mxu0
    %254 = vmatprep.mubr.f32.mxu0 0.0
    %255 = vmatmul.mubr.f32.gmra.mrb[0].mxu0 %v183
    %v256 = vpop.f32.mrb[0].mxu0
    %v257 = vadd.f32 %v178, %v256
    %v258 = vpop.f32.mrb[0].mxu0
    %259 = vdwg.mxu0
    %v260 = vlaneseq
    %v261 = vshrl.u32 %v260, 7
    %v263 = vsel %vm126, 0.0, 0
    %265 = vmatprep.subr.mxu0 0.0
    %266 = vmatpush1.msra.mxu0 %v170
    %267 = vmatprep.subr.mxu0 0.0
    %268 = vmatpush1.msra.mxu0 %v171
    %269 = vmatprep.subr.mxu0 0.0
    %270 = vmatpush1.msra.mxu0 %v172
    %271 = vmatprep.subr.mxu0 0.0
    %272 = vmatpush1.msra.mxu0 %v173
    %273 = vmatprep.subr.mxu0 0.0
    %274 = vmatpush1.msra.mxu0 0.0
    %275 = vmatprep.subr.mxu0 0.0
    %276 = vmatpush1.msra.mxu0 0.0
    %277 = vmatprep.subr.mxu0 0.0
    %278 = vmatpush1.msra.mxu0 0.0
    %279 = vmatprep.subr.mxu0 0.0
    %280 = vmatpush1.msra.mxu0 0.0
    %281 = vmatprep.subr.mxu0 0.0
    %282 = vmatpush1.msra.mxu0 0.0
    %283 = vmatprep.subr.mxu0 0.0
    %284 = vmatpush1.msra.mxu0 0.0
    %285 = vmatprep.subr.mxu0 0.0
    %286 = vmatpush1.msra.mxu0 0.0
    %287 = vmatprep.subr.mxu0 0.0
    %288 = vmatpush1.msra.mxu0 0.0
    %289 = vmatprep.subr.mxu0 0.0
    %290 = vmatpush1.msra.mxu0 0.0
    %291 = vmatprep.subr.mxu0 0.0
    %292 = vmatpush1.msra.mxu0 0.0
    %293 = vmatprep.subr.mxu0 0.0
    %294 = vmatpush1.msra.mxu0 0.0
    %295 = vmatprep.subr.mxu0 0.0
    %296 = vmatpush1.msra.mxu0 0.0
    %297 = vmatprep.subr.mxu0 0.0
    %298 = vmatpush1.msra.mxu0 0.0
    %299 = vmatprep.subr.mxu0 0.0
    %300 = vmatpush1.msra.mxu0 0.0
    %301 = vmatprep.subr.mxu0 0.0
    %302 = vmatpush1.msra.mxu0 0.0
    %303 = vmatprep.subr.mxu0 0.0
    %304 = vmatpush1.msra.mxu0 0.0
    %305 = vmatprep.subr.mxu0 0.0
    %306 = vmatpush1.msra.mxu0 0.0
    %307 = vmatprep.subr.mxu0 0.0
    %308 = vmatpush1.msra.mxu0 0.0
    %309 = vmatprep.subr.mxu0 0.0
    %310 = vmatpush1.msra.mxu0 0.0
    %311 = vmatprep.subr.mxu0 0.0
    %312 = vmatpush1.msra.mxu0 0.0
    %313 = vmatprep.subr.mxu0 0.0
    %314 = vmatpush1.msra.mxu0 0.0
    %315 = vmatprep.subr.mxu0 0.0
    %316 = vmatpush1.msra.mxu0 0.0
    %317 = vmatprep.subr.mxu0 0.0
    %318 = vmatpush1.msra.mxu0 0.0
    %319 = vmatprep.subr.mxu0 0.0
    %320 = vmatpush1.msra.mxu0 0.0
    %321 = vmatprep.subr.mxu0 0.0
    %322 = vmatpush1.msra.mxu0 0.0
    %323 = vmatprep.subr.mxu0 0.0
    %324 = vmatpush1.msra.mxu0 0.0
    %325 = vmatprep.subr.mxu0 0.0
    %326 = vmatpush1.msra.mxu0 0.0
    %327 = vmatprep.subr.mxu0 0.0
    %328 = vmatpush1.msra.mxu0 0.0
    %329 = vmatprep.mubr.f32.mxu0 0.0
    %330 = vmatmul.mubr.f32.gmra.mrb[0].mxu0 %v263
    %v331 = vpop.f32.mrb[0].mxu0
    %v332 = vadd.f32 0.0, %v331
    %v333 = vpop.f32.mrb[0].mxu0
    %334 = vdwg.mxu0
    %v336 = vrot.slane %v332, 1
    %v339 = vadd.f32 %v252, %v332
    %v340 = vadd.f32 %v257, %v336
    %v341 = vmul.f32 %v339, 0.5
    %v342 = vmul.f32 %v340, 0.5
    %v343 = vtanh.pop %v341
    %v344 = vtanh.pop %v342
    %v345 = vadd.f32 %v343, 1.0
    %v346 = vadd.f32 %v344, 1.0
    %v347 = vmul.f32 %v345, 0.5
    %v348 = vmul.f32 %v346, 0.5
    %v349 = vtanh.pop %v339
    %v350 = vtanh.pop %v340
    %v351 = vmul.f32 %v347, 0.0
    %v352 = vmul.f32 %v348, 0.0
    %355 = vrot.lane.b32.xlu0 %v349, 64
    %v356 = vpop.permute.xlu0 %355
    %357 = vrot.lane.b32.xlu0 %v350, 64
    %v358 = vpop.permute.xlu0 %357
    %v361 = vmul.f32 %v347, %v356
    %v362 = vmul.f32 %v348, %v358
    %365 = vrot.lane.b32.xlu0 %v361, 32
    %v366 = vpop.permute.xlu0 %365
    %367 = vrot.lane.b32.xlu0 %v362, 32
    %v368 = vpop.permute.xlu0 %367
    %v371 = vadd.f32 %v351, %v366
    %v372 = vadd.f32 %v352, %v368
    %v373 = vtanh.pop %v371
    %v374 = vtanh.pop %v372
    %377 = vrot.lane.b32.xlu0 %v373, 64
    %v378 = vpop.permute.xlu0 %377
    %379 = vrot.lane.b32.xlu0 %v374, 64
    %v380 = vpop.permute.xlu0 %379
    %v383 = vmul.f32 %v347, %v378
    %v384 = vmul.f32 %v348, %v380
    %vm385 = vcmp.eq.s32.totalorder %v261, 0
    %v386 = vsel %vm385, 1, 0
    %vm387 = vcmp.eq.s32.totalorder %v386, 1
    %v388 = vlaneseq
    %v389 = vshrl.u32 %v388, 7
    %v390 = vsub.s32 0, %v389
    %v391 = vrot.slane %v383, %v390
    %v392 = vlaneseq
    %v393 = vshrl.u32 %v392, 7
    %v394 = vsub.s32 0, %v393
    %v395 = vrot.slane %v384, %v394
    %v396 = vsel %vm387, %v391, 0.0
    %v397 = vsel %vm387, %v395, 0.0
    %v400 = vrot.slane %v384, 7
    %vm401 = vcmask 1041409
    %v402 = vsel %vm401, %v400, %v383
    %403 = vrot.lane.b32.xlu0 %v402, 32
    %v404 = vpop.permute.xlu0 %403
    %v405 = vsel %vm126, %v404, 0
    %407 = vmatprep.subr.mxu0 0.0
    %408 = vmatpush1.msra.mxu0 %v170
    %409 = vmatprep.subr.mxu0 0.0
    %410 = vmatpush1.msra.mxu0 %v171
    %411 = vmatprep.subr.mxu0 0.0
    %412 = vmatpush1.msra.mxu0 %v172
    %413 = vmatprep.subr.mxu0 0.0
    %414 = vmatpush1.msra.mxu0 %v173
    %415 = vmatprep.subr.mxu0 0.0
    %416 = vmatpush1.msra.mxu0 0.0
    %417 = vmatprep.subr.mxu0 0.0
    %418 = vmatpush1.msra.mxu0 0.0
    %419 = vmatprep.subr.mxu0 0.0
    %420 = vmatpush1.msra.mxu0 0.0
    %421 = vmatprep.subr.mxu0 0.0
    %422 = vmatpush1.msra.mxu0 0.0
    %423 = vmatprep.subr.mxu0 0.0
    %424 = vmatpush1.msra.mxu0 0.0
    %425 = vmatprep.subr.mxu0 0.0
    %426 = vmatpush1.msra.mxu0 0.0
    %427 = vmatprep.subr.mxu0 0.0
    %428 = vmatpush1.msra.mxu0 0.0
    %429 = vmatprep.subr.mxu0 0.0
    %430 = vmatpush1.msra.mxu0 0.0
    %431 = vmatprep.subr.mxu0 0.0
    %432 = vmatpush1.msra.mxu0 0.0
    %433 = vmatprep.subr.mxu0 0.0
    %434 = vmatpush1.msra.mxu0 0.0
    %435 = vmatprep.subr.mxu0 0.0
    %436 = vmatpush1.msra.mxu0 0.0
    %437 = vmatprep.subr.mxu0 0.0
    %438 = vmatpush1.msra.mxu0 0.0
    %439 = vmatprep.subr.mxu0 0.0
    %440 = vmatpush1.msra.mxu0 0.0
    %441 = vmatprep.subr.mxu0 0.0
    %442 = vmatpush1.msra.mxu0 0.0
    %443 = vmatprep.subr.mxu0 0.0
    %444 = vmatpush1.msra.mxu0 0.0
    %445 = vmatprep.subr.mxu0 0.0
    %446 = vmatpush1.msra.mxu0 0.0
    %447 = vmatprep.subr.mxu0 0.0
    %448 = vmatpush1.msra.mxu0 0.0
    %449 = vmatprep.subr.mxu0 0.0
    %450 = vmatpush1.msra.mxu0 0.0
    %451 = vmatprep.subr.mxu0 0.0
    %452 = vmatpush1.msra.mxu0 0.0
    %453 = vmatprep.subr.mxu0 0.0
    %454 = vmatpush1.msra.mxu0 0.0
    %455 = vmatprep.subr.mxu0 0.0
    %456 = vmatpush1.msra.mxu0 0.0
    %457 = vmatprep.subr.mxu0 0.0
    %458 = vmatpush1.msra.mxu0 0.0
    %459 = vmatprep.subr.mxu0 0.0
    %460 = vmatpush1.msra.mxu0 0.0
    %461 = vmatprep.subr.mxu0 0.0
    %462 = vmatpush1.msra.mxu0 0.0
    %463 = vmatprep.subr.mxu0 0.0
    %464 = vmatpush1.msra.mxu0 0.0
    %465 = vmatprep.subr.mxu0 0.0
    %466 = vmatpush1.msra.mxu0 0.0
    %467 = vmatprep.subr.mxu0 0.0
    %468 = vmatpush1.msra.mxu0 0.0
    %469 = vmatprep.subr.mxu0 0.0
    %470 = vmatpush1.msra.mxu0 0.0
    %471 = vmatprep.mubr.f32.mxu0 0.0
    %472 = vmatmul.mubr.f32.gmra.mrb[0].mxu0 %v405
    %v473 = vpop.f32.mrb[0].mxu0
    %v474 = vadd.f32 0.0, %v473
    %v475 = vpop.f32.mrb[0].mxu0
    %476 = vdwg.mxu0
    %v478 = vrot.slane %v474, 7
    %v481 = vadd.f32 %v252, %v478
    %v482 = vadd.f32 %v257, %v474
    %v483 = vmul.f32 %v481, 0.5
    %v484 = vmul.f32 %v482, 0.5
    %v485 = vtanh.pop %v483
    %v486 = vtanh.pop %v484
    %v487 = vadd.f32 %v485, 1.0
    %v488 = vadd.f32 %v486, 1.0
    %v489 = vmul.f32 %v487, 0.5
    %v490 = vmul.f32 %v488, 0.5
    %v491 = vtanh.pop %v481
    %v492 = vtanh.pop %v482
    %v495 = vrot.slane %v371, 7
    %v496 = vrot.slane %v372, 7
    %v499 = vmul.f32 %v489, %v495
    %v500 = vmul.f32 %v490, %v496
    %503 = vrot.lane.b32.xlu0 %v491, 64
    %v504 = vpop.permute.xlu0 %503
    %505 = vrot.lane.b32.xlu0 %v492, 64
    %v506 = vpop.permute.xlu0 %505
    %v509 = vmul.f32 %v489, %v504
    %v510 = vmul.f32 %v490, %v506
    %513 = vrot.lane.b32.xlu0 %v509, 32
    %v514 = vpop.permute.xlu0 %513
    %515 = vrot.lane.b32.xlu0 %v510, 32
    %v516 = vpop.permute.xlu0 %515
    %v519 = vadd.f32 %v499, %v514
    %v520 = vadd.f32 %v500, %v516
    %v521 = vtanh.pop %v519
    %v522 = vtanh.pop %v520
    %525 = vrot.lane.b32.xlu0 %v521, 64
    %v526 = vpop.permute.xlu0 %525
    %527 = vrot.lane.b32.xlu0 %v522, 64
    %v528 = vpop.permute.xlu0 %527
    %v531 = vmul.f32 %v489, %v526
    %v532 = vmul.f32 %v490, %v528
    %vm533 = vcmp.eq.s32.totalorder %v261, 1
    %v534 = vsel %vm533, 1, 0
    %vm535 = vcmp.eq.s32.totalorder %v534, 1
    %v536 = vlaneseq
    %v537 = vshrl.u32 %v536, 7
    %v538 = vsub.s32 1, %v537
    %v539 = vrot.slane %v531, %v538
    %v540 = vlaneseq
    %v541 = vshrl.u32 %v540, 7
    %v542 = vsub.s32 1, %v541
    %v543 = vrot.slane %v532, %v542
    %v544 = vsel %vm535, %v539, %v396
    %v545 = vsel %vm535, %v543, %v397
    %v548 = vrot.slane %v531, 1
    %v549 = vsel %vm401, %v532, %v548
    %550 = vrot.lane.b32.xlu0 %v549, 32
    %v551 = vpop.permute.xlu0 %550
    %v552 = vsel %vm126, %v551, 0
    %554 = vmatprep.subr.mxu0 0.0
    %555 = vmatpush1.msra.mxu0 %v170
    %556 = vmatprep.subr.mxu0 0.0
    %557 = vmatpush1.msra.mxu0 %v171
    %558 = vmatprep.subr.mxu0 0.0
    %559 = vmatpush1.msra.mxu0 %v172
    %560 = vmatprep.subr.mxu0 0.0
    %561 = vmatpush1.msra.mxu0 %v173
    %562 = vmatprep.subr.mxu0 0.0
    %563 = vmatpush1.msra.mxu0 0.0
    %564 = vmatprep.subr.mxu0 0.0
    %565 = vmatpush1.msra.mxu0 0.0
    %566 = vmatprep.subr.mxu0 0.0
    %567 = vmatpush1.msra.mxu0 0.0
    %568 = vmatprep.subr.mxu0 0.0
    %569 = vmatpush1.msra.mxu0 0.0
    %570 = vmatprep.subr.mxu0 0.0
    %571 = vmatpush1.msra.mxu0 0.0
    %572 = vmatprep.subr.mxu0 0.0
    %573 = vmatpush1.msra.mxu0 0.0
    %574 = vmatprep.subr.mxu0 0.0
    %575 = vmatpush1.msra.mxu0 0.0
    %576 = vmatprep.subr.mxu0 0.0
    %577 = vmatpush1.msra.mxu0 0.0
    %578 = vmatprep.subr.mxu0 0.0
    %579 = vmatpush1.msra.mxu0 0.0
    %580 = vmatprep.subr.mxu0 0.0
    %581 = vmatpush1.msra.mxu0 0.0
    %582 = vmatprep.subr.mxu0 0.0
    %583 = vmatpush1.msra.mxu0 0.0
    %584 = vmatprep.subr.mxu0 0.0
    %585 = vmatpush1.msra.mxu0 0.0
    %586 = vmatprep.subr.mxu0 0.0
    %587 = vmatpush1.msra.mxu0 0.0
    %588 = vmatprep.subr.mxu0 0.0
    %589 = vmatpush1.msra.mxu0 0.0
    %590 = vmatprep.subr.mxu0 0.0
    %591 = vmatpush1.msra.mxu0 0.0
    %592 = vmatprep.subr.mxu0 0.0
    %593 = vmatpush1.msra.mxu0 0.0
    %594 = vmatprep.subr.mxu0 0.0
    %595 = vmatpush1.msra.mxu0 0.0
    %596 = vmatprep.subr.mxu0 0.0
    %597 = vmatpush1.msra.mxu0 0.0
    %598 = vmatprep.subr.mxu0 0.0
    %599 = vmatpush1.msra.mxu0 0.0
    %600 = vmatprep.subr.mxu0 0.0
    %601 = vmatpush1.msra.mxu0 0.0
    %602 = vmatprep.subr.mxu0 0.0
    %603 = vmatpush1.msra.mxu0 0.0
    %604 = vmatprep.subr.mxu0 0.0
    %605 = vmatpush1.msra.mxu0 0.0
    %606 = vmatprep.subr.mxu0 0.0
    %607 = vmatpush1.msra.mxu0 0.0
    %608 = vmatprep.subr.mxu0 0.0
    %609 = vmatpush1.msra.mxu0 0.0
    %610 = vmatprep.subr.mxu0 0.0
    %611 = vmatpush1.msra.mxu0 0.0
    %612 = vmatprep.subr.mxu0 0.0
    %613 = vmatpush1.msra.mxu0 0.0
    %614 = vmatprep.subr.mxu0 0.0
    %615 = vmatpush1.msra.mxu0 0.0
    %616 = vmatprep.subr.mxu0 0.0
    %617 = vmatpush1.msra.mxu0 0.0
    %618 = vmatprep.mubr.f32.mxu0 0.0
    %619 = vmatmul.mubr.f32.gmra.mrb[0].mxu0 %v552
    %v620 = vpop.f32.mrb[0].mxu0
    %v621 = vadd.f32 0.0, %v620
    %v622 = vpop.f32.mrb[0].mxu0
    %623 = vdwg.mxu0
    %v625 = vrot.slane %v621, 6
    %v626 = vrot.slane %v621, 7
    %v629 = vadd.f32 %v252, %v625
    %v630 = vadd.f32 %v257, %v626
    %v631 = vmul.f32 %v629, 0.5
    %v632 = vmul.f32 %v630, 0.5
    %v633 = vtanh.pop %v631
    %v634 = vtanh.pop %v632
    %v635 = vadd.f32 %v633, 1.0
    %v636 = vadd.f32 %v634, 1.0
    %v637 = vmul.f32 %v635, 0.5
    %v638 = vmul.f32 %v636, 0.5
    %v639 = vtanh.pop %v629
    %v640 = vtanh.pop %v630
    %v643 = vrot.slane %v519, 7
    %v644 = vrot.slane %v520, 7
    %v647 = vmul.f32 %v637, %v643
    %v648 = vmul.f32 %v638, %v644
    %651 = vrot.lane.b32.xlu0 %v639, 64
    %v652 = vpop.permute.xlu0 %651
    %653 = vrot.lane.b32.xlu0 %v640, 64
    %v654 = vpop.permute.xlu0 %653
    %v657 = vmul.f32 %v637, %v652
    %v658 = vmul.f32 %v638, %v654
    %661 = vrot.lane.b32.xlu0 %v657, 32
    %v662 = vpop.permute.xlu0 %661
    %663 = vrot.lane.b32.xlu0 %v658, 32
    %v664 = vpop.permute.xlu0 %663
    %v667 = vadd.f32 %v647, %v662
    %v668 = vadd.f32 %v648, %v664
    %v669 = vtanh.pop %v667
    %v670 = vtanh.pop %v668
    %673 = vrot.lane.b32.xlu0 %v669, 64
    %v674 = vpop.permute.xlu0 %673
    %675 = vrot.lane.b32.xlu0 %v670, 64
    %v676 = vpop.permute.xlu0 %675
    %v679 = vmul.f32 %v637, %v674
    %v680 = vmul.f32 %v638, %v676
    %vm681 = vcmp.eq.s32.totalorder %v261, 2
    %v682 = vsel %vm681, 1, 0
    %vm683 = vcmp.eq.s32.totalorder %v682, 1
    %v684 = vlaneseq
    %v685 = vshrl.u32 %v684, 7
    %v686 = vsub.s32 2, %v685
    %v687 = vrot.slane %v679, %v686
    %v688 = vlaneseq
    %v689 = vshrl.u32 %v688, 7
    %v690 = vsub.s32 2, %v689
    %v691 = vrot.slane %v680, %v690
    %v692 = vsel %vm683, %v687, %v544
    %v693 = vsel %vm683, %v691, %v545
    %v696 = vrot.slane %v679, 2
    %v697 = vrot.slane %v680, 1
    %v698 = vsel %vm401, %v697, %v696
    %699 = vrot.lane.b32.xlu0 %v698, 32
    %v700 = vpop.permute.xlu0 %699
    %v701 = vsel %vm126, %v700, 0
    %703 = vmatprep.subr.mxu0 0.0
    %704 = vmatpush1.msra.mxu0 %v170
    %705 = vmatprep.subr.mxu0 0.0
    %706 = vmatpush1.msra.mxu0 %v171
    %707 = vmatprep.subr.mxu0 0.0
    %708 = vmatpush1.msra.mxu0 %v172
    %709 = vmatprep.subr.mxu0 0.0
    %710 = vmatpush1.msra.mxu0 %v173
    %711 = vmatprep.subr.mxu0 0.0
    %712 = vmatpush1.msra.mxu0 0.0
    %713 = vmatprep.subr.mxu0 0.0
    %714 = vmatpush1.msra.mxu0 0.0
    %715 = vmatprep.subr.mxu0 0.0
    %716 = vmatpush1.msra.mxu0 0.0
    %717 = vmatprep.subr.mxu0 0.0
    %718 = vmatpush1.msra.mxu0 0.0
    %719 = vmatprep.subr.mxu0 0.0
    %720 = vmatpush1.msra.mxu0 0.0
    %721 = vmatprep.subr.mxu0 0.0
    %722 = vmatpush1.msra.mxu0 0.0
    %723 = vmatprep.subr.mxu0 0.0
    %724 = vmatpush1.msra.mxu0 0.0
    %725 = vmatprep.subr.mxu0 0.0
    %726 = vmatpush1.msra.mxu0 0.0
    %727 = vmatprep.subr.mxu0 0.0
    %728 = vmatpush1.msra.mxu0 0.0
    %729 = vmatprep.subr.mxu0 0.0
    %730 = vmatpush1.msra.mxu0 0.0
    %731 = vmatprep.subr.mxu0 0.0
    %732 = vmatpush1.msra.mxu0 0.0
    %733 = vmatprep.subr.mxu0 0.0
    %734 = vmatpush1.msra.mxu0 0.0
    %735 = vmatprep.subr.mxu0 0.0
    %736 = vmatpush1.msra.mxu0 0.0
    %737 = vmatprep.subr.mxu0 0.0
    %738 = vmatpush1.msra.mxu0 0.0
    %739 = vmatprep.subr.mxu0 0.0
    %740 = vmatpush1.msra.mxu0 0.0
    %741 = vmatprep.subr.mxu0 0.0
    %742 = vmatpush1.msra.mxu0 0.0
    %743 = vmatprep.subr.mxu0 0.0
    %744 = vmatpush1.msra.mxu0 0.0
    %745 = vmatprep.subr.mxu0 0.0
    %746 = vmatpush1.msra.mxu0 0.0
    %747 = vmatprep.subr.mxu0 0.0
    %748 = vmatpush1.msra.mxu0 0.0
    %749 = vmatprep.subr.mxu0 0.0
    %750 = vmatpush1.msra.mxu0 0.0
    %751 = vmatprep.subr.mxu0 0.0
    %752 = vmatpush1.msra.mxu0 0.0
    %753 = vmatprep.subr.mxu0 0.0
    %754 = vmatpush1.msra.mxu0 0.0
    %755 = vmatprep.subr.mxu0 0.0
    %756 = vmatpush1.msra.mxu0 0.0
    %757 = vmatprep.subr.mxu0 0.0
    %758 = vmatpush1.msra.mxu0 0.0
    %759 = vmatprep.subr.mxu0 0.0
    %760 = vmatpush1.msra.mxu0 0.0
    %761 = vmatprep.subr.mxu0 0.0
    %762 = vmatpush1.msra.mxu0 0.0
    %763 = vmatprep.subr.mxu0 0.0
    %764 = vmatpush1.msra.mxu0 0.0
    %765 = vmatprep.subr.mxu0 0.0
    %766 = vmatpush1.msra.mxu0 0.0
    %767 = vmatprep.mubr.f32.mxu0 0.0
    %768 = vmatmul.mubr.f32.gmra.mrb[0].mxu0 %v701
    %v769 = vpop.f32.mrb[0].mxu0
    %v770 = vadd.f32 0.0, %v769
    %v771 = vpop.f32.mrb[0].mxu0
    %772 = vdwg.mxu0
    %v774 = vrot.slane %v770, 5
    %v775 = vrot.slane %v770, 6
    %v778 = vadd.f32 %v252, %v774
    %v779 = vadd.f32 %v257, %v775
    %v780 = vmul.f32 %v778, 0.5
    %v781 = vmul.f32 %v779, 0.5
    %v782 = vtanh.pop %v780
    %v783 = vtanh.pop %v781
    %v784 = vadd.f32 %v782, 1.0
    %v785 = vadd.f32 %v783, 1.0
    %v786 = vmul.f32 %v784, 0.5
    %v787 = vmul.f32 %v785, 0.5
    %v788 = vtanh.pop %v778
    %v789 = vtanh.pop %v779
    %v792 = vrot.slane %v667, 7
    %v793 = vrot.slane %v668, 7
    %v796 = vmul.f32 %v786, %v792
    %v797 = vmul.f32 %v787, %v793
    %800 = vrot.lane.b32.xlu0 %v788, 64
    %v801 = vpop.permute.xlu0 %800
    %802 = vrot.lane.b32.xlu0 %v789, 64
    %v803 = vpop.permute.xlu0 %802
    %v806 = vmul.f32 %v786, %v801
    %v807 = vmul.f32 %v787, %v803
    %810 = vrot.lane.b32.xlu0 %v806, 32
    %v811 = vpop.permute.xlu0 %810
    %812 = vrot.lane.b32.xlu0 %v807, 32
    %v813 = vpop.permute.xlu0 %812
    %v816 = vadd.f32 %v796, %v811
    %v817 = vadd.f32 %v797, %v813
    %v818 = vtanh.pop %v816
    %v819 = vtanh.pop %v817
    %822 = vrot.lane.b32.xlu0 %v818, 64
    %v823 = vpop.permute.xlu0 %822
    %824 = vrot.lane.b32.xlu0 %v819, 64
    %v825 = vpop.permute.xlu0 %824
    %v828 = vmul.f32 %v786, %v823
    %v829 = vmul.f32 %v787, %v825
    %vm830 = vcmp.eq.s32.totalorder %v261, 3
    %v831 = vsel %vm830, 1, 0
    %vm832 = vcmp.eq.s32.totalorder %v831, 1
    %v833 = vlaneseq
    %v834 = vshrl.u32 %v833, 7
    %v835 = vsub.s32 3, %v834
    %v836 = vrot.slane %v828, %v835
    %v837 = vlaneseq
    %v838 = vshrl.u32 %v837, 7
    %v839 = vsub.s32 3, %v838
    %v840 = vrot.slane %v829, %v839
    %v841 = vsel %vm832, %v836, %v692
    %v842 = vsel %vm832, %v840, %v693
    %v845 = vrot.slane %v828, 3
    %v846 = vrot.slane %v829, 2
    %v847 = vsel %vm401, %v846, %v845
    %848 = vrot.lane.b32.xlu0 %v847, 32
    %v849 = vpop.permute.xlu0 %848
    %v850 = vsel %vm126, %v849, 0
    %852 = vmatprep.subr.mxu0 0.0
    %853 = vmatpush1.msra.mxu0 %v170
    %854 = vmatprep.subr.mxu0 0.0
    %855 = vmatpush1.msra.mxu0 %v171
    %856 = vmatprep.subr.mxu0 0.0
    %857 = vmatpush1.msra.mxu0 %v172
    %858 = vmatprep.subr.mxu0 0.0
    %859 = vmatpush1.msra.mxu0 %v173
    %860 = vmatprep.subr.mxu0 0.0
    %861 = vmatpush1.msra.mxu0 0.0
    %862 = vmatprep.subr.mxu0 0.0
    %863 = vmatpush1.msra.mxu0 0.0
    %864 = vmatprep.subr.mxu0 0.0
    %865 = vmatpush1.msra.mxu0 0.0
    %866 = vmatprep.subr.mxu0 0.0
    %867 = vmatpush1.msra.mxu0 0.0
    %868 = vmatprep.subr.mxu0 0.0
    %869 = vmatpush1.msra.mxu0 0.0
    %870 = vmatprep.subr.mxu0 0.0
    %871 = vmatpush1.msra.mxu0 0.0
    %872 = vmatprep.subr.mxu0 0.0
    %873 = vmatpush1.msra.mxu0 0.0
    %874 = vmatprep.subr.mxu0 0.0
    %875 = vmatpush1.msra.mxu0 0.0
    %876 = vmatprep.subr.mxu0 0.0
    %877 = vmatpush1.msra.mxu0 0.0
    %878 = vmatprep.subr.mxu0 0.0
    %879 = vmatpush1.msra.mxu0 0.0
    %880 = vmatprep.subr.mxu0 0.0
    %881 = vmatpush1.msra.mxu0 0.0
    %882 = vmatprep.subr.mxu0 0.0
    %883 = vmatpush1.msra.mxu0 0.0
    %884 = vmatprep.subr.mxu0 0.0
    %885 = vmatpush1.msra.mxu0 0.0
    %886 = vmatprep.subr.mxu0 0.0
    %887 = vmatpush1.msra.mxu0 0.0
    %888 = vmatprep.subr.mxu0 0.0
    %889 = vmatpush1.msra.mxu0 0.0
    %890 = vmatprep.subr.mxu0 0.0
    %891 = vmatpush1.msra.mxu0 0.0
    %892 = vmatprep.subr.mxu0 0.0
    %893 = vmatpush1.msra.mxu0 0.0
    %894 = vmatprep.subr.mxu0 0.0
    %895 = vmatpush1.msra.mxu0 0.0
    %896 = vmatprep.subr.mxu0 0.0
    %897 = vmatpush1.msra.mxu0 0.0
    %898 = vmatprep.subr.mxu0 0.0
    %899 = vmatpush1.msra.mxu0 0.0
    %900 = vmatprep.subr.mxu0 0.0
    %901 = vmatpush1.msra.mxu0 0.0
    %902 = vmatprep.subr.mxu0 0.0
    %903 = vmatpush1.msra.mxu0 0.0
    %904 = vmatprep.subr.mxu0 0.0
    %905 = vmatpush1.msra.mxu0 0.0
    %906 = vmatprep.subr.mxu0 0.0
    %907 = vmatpush1.msra.mxu0 0.0
    %908 = vmatprep.subr.mxu0 0.0
    %909 = vmatpush1.msra.mxu0 0.0
    %910 = vmatprep.subr.mxu0 0.0
    %911 = vmatpush1.msra.mxu0 0.0
    %912 = vmatprep.subr.mxu0 0.0
    %913 = vmatpush1.msra.mxu0 0.0
    %914 = vmatprep.subr.mxu0 0.0
    %915 = vmatpush1.msra.mxu0 0.0
    %916 = vmatprep.mubr.f32.mxu0 0.0
    %917 = vmatmul.mubr.f32.gmra.mrb[0].mxu0 %v850
    %v918 = vpop.f32.mrb[0].mxu0
    %v919 = vadd.f32 0.0, %v918
    %v920 = vpop.f32.mrb[0].mxu0
    %921 = vdwg.mxu0
    %v923 = vrot.slane %v919, 4
    %v924 = vrot.slane %v919, 5
    %v927 = vadd.f32 %v252, %v923
    %v928 = vadd.f32 %v257, %v924
    %v929 = vmul.f32 %v927, 0.5
    %v930 = vmul.f32 %v928, 0.5
    %v931 = vtanh.pop %v929
    %v932 = vtanh.pop %v930
    %v933 = vadd.f32 %v931, 1.0
    %v934 = vadd.f32 %v932, 1.0
    %v935 = vmul.f32 %v933, 0.5
    %v936 = vmul.f32 %v934, 0.5
    %v937 = vtanh.pop %v927
    %v938 = vtanh.pop %v928
    %v941 = vrot.slane %v816, 7
    %v942 = vrot.slane %v817, 7
    %v945 = vmul.f32 %v935, %v941
    %v946 = vmul.f32 %v936, %v942
    %949 = vrot.lane.b32.xlu0 %v937, 64
    %v950 = vpop.permute.xlu0 %949
    %951 = vrot.lane.b32.xlu0 %v938, 64
    %v952 = vpop.permute.xlu0 %951
    %v955 = vmul.f32 %v935, %v950
    %v956 = vmul.f32 %v936, %v952
    %959 = vrot.lane.b32.xlu0 %v955, 32
    %v960 = vpop.permute.xlu0 %959
    %961 = vrot.lane.b32.xlu0 %v956, 32
    %v962 = vpop.permute.xlu0 %961
    %v965 = vadd.f32 %v945, %v960
    %v966 = vadd.f32 %v946, %v962
    %v967 = vtanh.pop %v965
    %v968 = vtanh.pop %v966
    %971 = vrot.lane.b32.xlu0 %v967, 64
    %v972 = vpop.permute.xlu0 %971
    %973 = vrot.lane.b32.xlu0 %v968, 64
    %v974 = vpop.permute.xlu0 %973
    %v977 = vmul.f32 %v935, %v972
    %v978 = vmul.f32 %v936, %v974
    %vm979 = vcmp.eq.s32.totalorder %v261, 4
    %v980 = vsel %vm979, 1, 0
    %vm981 = vcmp.eq.s32.totalorder %v980, 1
    %v982 = vlaneseq
    %v983 = vshrl.u32 %v982, 7
    %v984 = vsub.s32 4, %v983
    %v985 = vrot.slane %v977, %v984
    %v986 = vlaneseq
    %v987 = vshrl.u32 %v986, 7
    %v988 = vsub.s32 4, %v987
    %v989 = vrot.slane %v978, %v988
    %v990 = vsel %vm981, %v985, %v841
    %v991 = vsel %vm981, %v989, %v842
    %v994 = vrot.slane %v977, 4
    %v995 = vrot.slane %v978, 3
    %v996 = vsel %vm401, %v995, %v994
    %997 = vrot.lane.b32.xlu0 %v996, 32
    %v998 = vpop.permute.xlu0 %997
    %v999 = vsel %vm126, %v998, 0
    %1001 = vmatprep.subr.mxu0 0.0
    %1002 = vmatpush1.msra.mxu0 %v170
    %1003 = vmatprep.subr.mxu0 0.0
    %1004 = vmatpush1.msra.mxu0 %v171
    %1005 = vmatprep.subr.mxu0 0.0
    %1006 = vmatpush1.msra.mxu0 %v172
    %1007 = vmatprep.subr.mxu0 0.0
    %1008 = vmatpush1.msra.mxu0 %v173
    %1009 = vmatprep.subr.mxu0 0.0
    %1010 = vmatpush1.msra.mxu0 0.0
    %1011 = vmatprep.subr.mxu0 0.0
    %1012 = vmatpush1.msra.mxu0 0.0
    %1013 = vmatprep.subr.mxu0 0.0
    %1014 = vmatpush1.msra.mxu0 0.0
    %1015 = vmatprep.subr.mxu0 0.0
    %1016 = vmatpush1.msra.mxu0 0.0
    %1017 = vmatprep.subr.mxu0 0.0
    %1018 = vmatpush1.msra.mxu0 0.0
    %1019 = vmatprep.subr.mxu0 0.0
    %1020 = vmatpush1.msra.mxu0 0.0
    %1021 = vmatprep.subr.mxu0 0.0
    %1022 = vmatpush1.msra.mxu0 0.0
    %1023 = vmatprep.subr.mxu0 0.0
    %1024 = vmatpush1.msra.mxu0 0.0
    %1025 = vmatprep.subr.mxu0 0.0
    %1026 = vmatpush1.msra.mxu0 0.0
    %1027 = vmatprep.subr.mxu0 0.0
    %1028 = vmatpush1.msra.mxu0 0.0
    %1029 = vmatprep.subr.mxu0 0.0
    %1030 = vmatpush1.msra.mxu0 0.0
    %1031 = vmatprep.subr.mxu0 0.0
    %1032 = vmatpush1.msra.mxu0 0.0
    %1033 = vmatprep.subr.mxu0 0.0
    %1034 = vmatpush1.msra.mxu0 0.0
    %1035 = vmatprep.subr.mxu0 0.0
    %1036 = vmatpush1.msra.mxu0 0.0
    %1037 = vmatprep.subr.mxu0 0.0
    %1038 = vmatpush1.msra.mxu0 0.0
    %1039 = vmatprep.subr.mxu0 0.0
    %1040 = vmatpush1.msra.mxu0 0.0
    %1041 = vmatprep.subr.mxu0 0.0
    %1042 = vmatpush1.msra.mxu0 0.0
    %1043 = vmatprep.subr.mxu0 0.0
    %1044 = vmatpush1.msra.mxu0 0.0
    %1045 = vmatprep.subr.mxu0 0.0
    %1046 = vmatpush1.msra.mxu0 0.0
    %1047 = vmatprep.subr.mxu0 0.0
    %1048 = vmatpush1.msra.mxu0 0.0
    %1049 = vmatprep.subr.mxu0 0.0
    %1050 = vmatpush1.msra.mxu0 0.0
    %1051 = vmatprep.subr.mxu0 0.0
    %1052 = vmatpush1.msra.mxu0 0.0
    %1053 = vmatprep.subr.mxu0 0.0
    %1054 = vmatpush1.msra.mxu0 0.0
    %1055 = vmatprep.subr.mxu0 0.0
    %1056 = vmatpush1.msra.mxu0 0.0
    %1057 = vmatprep.subr.mxu0 0.0
    %1058 = vmatpush1.msra.mxu0 0.0
    %1059 = vmatprep.subr.mxu0 0.0
    %1060 = vmatpush1.msra.mxu0 0.0
    %1061 = vmatprep.subr.mxu0 0.0
    %1062 = vmatpush1.msra.mxu0 0.0
    %1063 = vmatprep.subr.mxu0 0.0
    %1064 = vmatpush1.msra.mxu0 0.0
    %1065 = vmatprep.mubr.f32.mxu0 0.0
    %1066 = vmatmul.mubr.f32.gmra.mrb[0].mxu0 %v999
    %v1067 = vpop.f32.mrb[0].mxu0
    %v1068 = vadd.f32 0.0, %v1067
    %v1069 = vpop.f32.mrb[0].mxu0
    %1070 = vdwg.mxu0
    %v1072 = vrot.slane %v1068, 3
    %v1073 = vrot.slane %v1068, 4
    %v1076 = vadd.f32 %v252, %v1072
    %v1077 = vadd.f32 %v257, %v1073
    %v1078 = vmul.f32 %v1076, 0.5
    %v1079 = vmul.f32 %v1077, 0.5
    %v1080 = vtanh.pop %v1078
    %v1081 = vtanh.pop %v1079
    %v1082 = vadd.f32 %v1080, 1.0
    %v1083 = vadd.f32 %v1081, 1.0
    %v1084 = vmul.f32 %v1082, 0.5
    %v1085 = vmul.f32 %v1083, 0.5
    %v1086 = vtanh.pop %v1076
    %v1087 = vtanh.pop %v1077
    %v1090 = vrot.slane %v965, 7
    %v1091 = vrot.slane %v966, 7
    %v1094 = vmul.f32 %v1084, %v1090
    %v1095 = vmul.f32 %v1085, %v1091
    %1098 = vrot.lane.b32.xlu0 %v1086, 64
    %v1099 = vpop.permute.xlu0 %1098
    %1100 = vrot.lane.b32.xlu0 %v1087, 64
    %v1101 = vpop.permute.xlu0 %1100
    %v1104 = vmul.f32 %v1084, %v1099
    %v1105 = vmul.f32 %v1085, %v1101
    %1108 = vrot.lane.b32.xlu0 %v1104, 32
    %v1109 = vpop.permute.xlu0 %1108
    %1110 = vrot.lane.b32.xlu0 %v1105, 32
    %v1111 = vpop.permute.xlu0 %1110
    %v1114 = vadd.f32 %v1094, %v1109
    %v1115 = vadd.f32 %v1095, %v1111
    %v1116 = vtanh.pop %v1114
    %v1117 = vtanh.pop %v1115
    %1120 = vrot.lane.b32.xlu0 %v1116, 64
    %v1121 = vpop.permute.xlu0 %1120
    %1122 = vrot.lane.b32.xlu0 %v1117, 64
    %v1123 = vpop.permute.xlu0 %1122
    %v1126 = vmul.f32 %v1084, %v1121
    %v1127 = vmul.f32 %v1085, %v1123
    %vm1128 = vcmp.eq.s32.totalorder %v261, 5
    %v1129 = vsel %vm1128, 1, 0
    %vm1130 = vcmp.eq.s32.totalorder %v1129, 1
    %v1131 = vlaneseq
    %v1132 = vshrl.u32 %v1131, 7
    %v1133 = vsub.s32 5, %v1132
    %v1134 = vrot.slane %v1126, %v1133
    %v1135 = vlaneseq
    %v1136 = vshrl.u32 %v1135, 7
    %v1137 = vsub.s32 5, %v1136
    %v1138 = vrot.slane %v1127, %v1137
    %v1139 = vsel %vm1130, %v1134, %v990
    %v1140 = vsel %vm1130, %v1138, %v991
    %v1143 = vrot.slane %v1126, 5
    %v1144 = vrot.slane %v1127, 4
    %v1145 = vsel %vm401, %v1144, %v1143
    %1146 = vrot.lane.b32.xlu0 %v1145, 32
    %v1147 = vpop.permute.xlu0 %1146
    %v1148 = vsel %vm126, %v1147, 0
    %1150 = vmatprep.subr.mxu0 0.0
    %1151 = vmatpush1.msra.mxu0 %v170
    %1152 = vmatprep.subr.mxu0 0.0
    %1153 = vmatpush1.msra.mxu0 %v171
    %1154 = vmatprep.subr.mxu0 0.0
    %1155 = vmatpush1.msra.mxu0 %v172
    %1156 = vmatprep.subr.mxu0 0.0
    %1157 = vmatpush1.msra.mxu0 %v173
    %1158 = vmatprep.subr.mxu0 0.0
    %1159 = vmatpush1.msra.mxu0 0.0
    %1160 = vmatprep.subr.mxu0 0.0
    %1161 = vmatpush1.msra.mxu0 0.0
    %1162 = vmatprep.subr.mxu0 0.0
    %1163 = vmatpush1.msra.mxu0 0.0
    %1164 = vmatprep.subr.mxu0 0.0
    %1165 = vmatpush1.msra.mxu0 0.0
    %1166 = vmatprep.subr.mxu0 0.0
    %1167 = vmatpush1.msra.mxu0 0.0
    %1168 = vmatprep.subr.mxu0 0.0
    %1169 = vmatpush1.msra.mxu0 0.0
    %1170 = vmatprep.subr.mxu0 0.0
    %1171 = vmatpush1.msra.mxu0 0.0
    %1172 = vmatprep.subr.mxu0 0.0
    %1173 = vmatpush1.msra.mxu0 0.0
    %1174 = vmatprep.subr.mxu0 0.0
    %1175 = vmatpush1.msra.mxu0 0.0
    %1176 = vmatprep.subr.mxu0 0.0
    %1177 = vmatpush1.msra.mxu0 0.0
    %1178 = vmatprep.subr.mxu0 0.0
    %1179 = vmatpush1.msra.mxu0 0.0
    %1180 = vmatprep.subr.mxu0 0.0
    %1181 = vmatpush1.msra.mxu0 0.0
    %1182 = vmatprep.subr.mxu0 0.0
    %1183 = vmatpush1.msra.mxu0 0.0
    %1184 = vmatprep.subr.mxu0 0.0
    %1185 = vmatpush1.msra.mxu0 0.0
    %1186 = vmatprep.subr.mxu0 0.0
    %1187 = vmatpush1.msra.mxu0 0.0
    %1188 = vmatprep.subr.mxu0 0.0
    %1189 = vmatpush1.msra.mxu0 0.0
    %1190 = vmatprep.subr.mxu0 0.0
    %1191 = vmatpush1.msra.mxu0 0.0
    %1192 = vmatprep.subr.mxu0 0.0
    %1193 = vmatpush1.msra.mxu0 0.0
    %1194 = vmatprep.subr.mxu0 0.0
    %1195 = vmatpush1.msra.mxu0 0.0
    %1196 = vmatprep.subr.mxu0 0.0
    %1197 = vmatpush1.msra.mxu0 0.0
    %1198 = vmatprep.subr.mxu0 0.0
    %1199 = vmatpush1.msra.mxu0 0.0
    %1200 = vmatprep.subr.mxu0 0.0
    %1201 = vmatpush1.msra.mxu0 0.0
    %1202 = vmatprep.subr.mxu0 0.0
    %1203 = vmatpush1.msra.mxu0 0.0
    %1204 = vmatprep.subr.mxu0 0.0
    %1205 = vmatpush1.msra.mxu0 0.0
    %1206 = vmatprep.subr.mxu0 0.0
    %1207 = vmatpush1.msra.mxu0 0.0
    %1208 = vmatprep.subr.mxu0 0.0
    %1209 = vmatpush1.msra.mxu0 0.0
    %1210 = vmatprep.subr.mxu0 0.0
    %1211 = vmatpush1.msra.mxu0 0.0
    %1212 = vmatprep.subr.mxu0 0.0
    %1213 = vmatpush1.msra.mxu0 0.0
    %1214 = vmatprep.mubr.f32.mxu0 0.0
    %1215 = vmatmul.mubr.f32.gmra.mrb[0].mxu0 %v1148
    %v1216 = vpop.f32.mrb[0].mxu0
    %v1217 = vadd.f32 0.0, %v1216
    %v1218 = vpop.f32.mrb[0].mxu0
    %1219 = vdwg.mxu0
    %v1221 = vrot.slane %v1217, 2
    %v1222 = vrot.slane %v1217, 3
    %v1225 = vadd.f32 %v252, %v1221
    %v1226 = vadd.f32 %v257, %v1222
    %v1227 = vmul.f32 %v1225, 0.5
    %v1228 = vmul.f32 %v1226, 0.5
    %v1229 = vtanh.pop %v1227
    %v1230 = vtanh.pop %v1228
    %v1231 = vadd.f32 %v1229, 1.0
    %v1232 = vadd.f32 %v1230, 1.0
    %v1233 = vmul.f32 %v1231, 0.5
    %v1234 = vmul.f32 %v1232, 0.5
    %v1235 = vtanh.pop %v1225
    %v1236 = vtanh.pop %v1226
    %v1239 = vrot.slane %v1114, 7
    %v1240 = vrot.slane %v1115, 7
    %v1243 = vmul.f32 %v1233, %v1239
    %v1244 = vmul.f32 %v1234, %v1240
    %1247 = vrot.lane.b32.xlu0 %v1235, 64
    %v1248 = vpop.permute.xlu0 %1247
    %1249 = vrot.lane.b32.xlu0 %v1236, 64
    %v1250 = vpop.permute.xlu0 %1249
    %v1253 = vmul.f32 %v1233, %v1248
    %v1254 = vmul.f32 %v1234, %v1250
    %1257 = vrot.lane.b32.xlu0 %v1253, 32
    %v1258 = vpop.permute.xlu0 %1257
    %1259 = vrot.lane.b32.xlu0 %v1254, 32
    %v1260 = vpop.permute.xlu0 %1259
    %v1263 = vadd.f32 %v1243, %v1258
    %v1264 = vadd.f32 %v1244, %v1260
    %v1265 = vtanh.pop %v1263
    %v1266 = vtanh.pop %v1264
    %1269 = vrot.lane.b32.xlu0 %v1265, 64
    %v1270 = vpop.permute.xlu0 %1269
    %1271 = vrot.lane.b32.xlu0 %v1266, 64
    %v1272 = vpop.permute.xlu0 %1271
    %v1275 = vmul.f32 %v1233, %v1270
    %v1276 = vmul.f32 %v1234, %v1272
    %vm1277 = vcmp.eq.s32.totalorder %v261, 6
    %v1278 = vsel %vm1277, 1, 0
    %vm1279 = vcmp.eq.s32.totalorder %v1278, 1
    %v1280 = vlaneseq
    %v1281 = vshrl.u32 %v1280, 7
    %v1282 = vsub.s32 6, %v1281
    %v1283 = vrot.slane %v1275, %v1282
    %v1284 = vlaneseq
    %v1285 = vshrl.u32 %v1284, 7
    %v1286 = vsub.s32 6, %v1285
    %v1287 = vrot.slane %v1276, %v1286
    %v1288 = vsel %vm1279, %v1283, %v1139
    %v1289 = vsel %vm1279, %v1287, %v1140
    %v1292 = vrot.slane %v1275, 6
    %v1293 = vrot.slane %v1276, 5
    %v1294 = vsel %vm401, %v1293, %v1292
    %1295 = vrot.lane.b32.xlu0 %v1294, 32
    %v1296 = vpop.permute.xlu0 %1295
    %v1297 = vsel %vm126, %v1296, 0
    %1299 = vmatprep.subr.mxu0 0.0
    %1300 = vmatpush1.msra.mxu0 %v170
    %1301 = vmatprep.subr.mxu0 0.0
    %1302 = vmatpush1.msra.mxu0 %v171
    %1303 = vmatprep.subr.mxu0 0.0
    %1304 = vmatpush1.msra.mxu0 %v172
    %1305 = vmatprep.subr.mxu0 0.0
    %1306 = vmatpush1.msra.mxu0 %v173
    %1307 = vmatprep.subr.mxu0 0.0
    %1308 = vmatpush1.msra.mxu0 0.0
    %1309 = vmatprep.subr.mxu0 0.0
    %1310 = vmatpush1.msra.mxu0 0.0
    %1311 = vmatprep.subr.mxu0 0.0
    %1312 = vmatpush1.msra.mxu0 0.0
    %1313 = vmatprep.subr.mxu0 0.0
    %1314 = vmatpush1.msra.mxu0 0.0
    %1315 = vmatprep.subr.mxu0 0.0
    %1316 = vmatpush1.msra.mxu0 0.0
    %1317 = vmatprep.subr.mxu0 0.0
    %1318 = vmatpush1.msra.mxu0 0.0
    %1319 = vmatprep.subr.mxu0 0.0
    %1320 = vmatpush1.msra.mxu0 0.0
    %1321 = vmatprep.subr.mxu0 0.0
    %1322 = vmatpush1.msra.mxu0 0.0
    %1323 = vmatprep.subr.mxu0 0.0
    %1324 = vmatpush1.msra.mxu0 0.0
    %1325 = vmatprep.subr.mxu0 0.0
    %1326 = vmatpush1.msra.mxu0 0.0
    %1327 = vmatprep.subr.mxu0 0.0
    %1328 = vmatpush1.msra.mxu0 0.0
    %1329 = vmatprep.subr.mxu0 0.0
    %1330 = vmatpush1.msra.mxu0 0.0
    %1331 = vmatprep.subr.mxu0 0.0
    %1332 = vmatpush1.msra.mxu0 0.0
    %1333 = vmatprep.subr.mxu0 0.0
    %1334 = vmatpush1.msra.mxu0 0.0
    %1335 = vmatprep.subr.mxu0 0.0
    %1336 = vmatpush1.msra.mxu0 0.0
    %1337 = vmatprep.subr.mxu0 0.0
    %1338 = vmatpush1.msra.mxu0 0.0
    %1339 = vmatprep.subr.mxu0 0.0
    %1340 = vmatpush1.msra.mxu0 0.0
    %1341 = vmatprep.subr.mxu0 0.0
    %1342 = vmatpush1.msra.mxu0 0.0
    %1343 = vmatprep.subr.mxu0 0.0
    %1344 = vmatpush1.msra.mxu0 0.0
    %1345 = vmatprep.subr.mxu0 0.0
    %1346 = vmatpush1.msra.mxu0 0.0
    %1347 = vmatprep.subr.mxu0 0.0
    %1348 = vmatpush1.msra.mxu0 0.0
    %1349 = vmatprep.subr.mxu0 0.0
    %1350 = vmatpush1.msra.mxu0 0.0
    %1351 = vmatprep.subr.mxu0 0.0
    %1352 = vmatpush1.msra.mxu0 0.0
    %1353 = vmatprep.subr.mxu0 0.0
    %1354 = vmatpush1.msra.mxu0 0.0
    %1355 = vmatprep.subr.mxu0 0.0
    %1356 = vmatpush1.msra.mxu0 0.0
    %1357 = vmatprep.subr.mxu0 0.0
    %1358 = vmatpush1.msra.mxu0 0.0
    %1359 = vmatprep.subr.mxu0 0.0
    %1360 = vmatpush1.msra.mxu0 0.0
    %1361 = vmatprep.subr.mxu0 0.0
    %1362 = vmatpush1.msra.mxu0 0.0
    %1363 = vmatprep.mubr.f32.mxu0 0.0
    %1364 = vmatmul.mubr.f32.gmra.mrb[0].mxu0 %v1297
    %v1365 = vpop.f32.mrb[0].mxu0
    %v1366 = vadd.f32 0.0, %v1365
    %v1367 = vpop.f32.mrb[0].mxu0
    %1368 = vdwg.mxu0
    %v1370 = vrot.slane %v1366, 1
    %v1371 = vrot.slane %v1366, 2
    %v1374 = vadd.f32 %v252, %v1370
    %v1375 = vadd.f32 %v257, %v1371
    %v1376 = vmul.f32 %v1374, 0.5
    %v1377 = vmul.f32 %v1375, 0.5
    %v1378 = vtanh.pop %v1376
    %v1379 = vtanh.pop %v1377
    %v1380 = vadd.f32 %v1378, 1.0
    %v1381 = vadd.f32 %v1379, 1.0
    %v1382 = vmul.f32 %v1380, 0.5
    %v1383 = vmul.f32 %v1381, 0.5
    %v1384 = vtanh.pop %v1374
    %v1385 = vtanh.pop %v1375
    %v1388 = vrot.slane %v1263, 7
    %v1389 = vrot.slane %v1264, 7
    %v1392 = vmul.f32 %v1382, %v1388
    %v1393 = vmul.f32 %v1383, %v1389
    %1396 = vrot.lane.b32.xlu0 %v1384, 64
    %v1397 = vpop.permute.xlu0 %1396
    %1398 = vrot.lane.b32.xlu0 %v1385, 64
    %v1399 = vpop.permute.xlu0 %1398
    %v1402 = vmul.f32 %v1382, %v1397
    %v1403 = vmul.f32 %v1383, %v1399
    %1406 = vrot.lane.b32.xlu0 %v1402, 32
    %v1407 = vpop.permute.xlu0 %1406
    %1408 = vrot.lane.b32.xlu0 %v1403, 32
    %v1409 = vpop.permute.xlu0 %1408
    %v1412 = vadd.f32 %v1392, %v1407
    %v1413 = vadd.f32 %v1393, %v1409
    %v1414 = vtanh.pop %v1412
    %v1415 = vtanh.pop %v1413
    %1418 = vrot.lane.b32.xlu0 %v1414, 64
    %v1419 = vpop.permute.xlu0 %1418
    %1420 = vrot.lane.b32.xlu0 %v1415, 64
    %v1421 = vpop.permute.xlu0 %1420
    %v1424 = vmul.f32 %v1382, %v1419
    %v1425 = vmul.f32 %v1383, %v1421
    %vm1426 = vcmp.eq.s32.totalorder %v261, 7
    %v1427 = vsel %vm1426, 1, 0
    %vm1428 = vcmp.eq.s32.totalorder %v1427, 1
    %v1429 = vlaneseq
    %v1430 = vshrl.u32 %v1429, 7
    %v1431 = vsub.s32 7, %v1430
    %v1432 = vrot.slane %v1424, %v1431
    %v1433 = vlaneseq
    %v1434 = vshrl.u32 %v1433, 7
    %v1435 = vsub.s32 7, %v1434
    %v1436 = vrot.slane %v1425, %v1435
    %v1437 = vsel %vm1428, %v1432, %v1288
    %v1438 = vsel %vm1428, %v1436, %v1289
    %1441 = vrot.lane.b32.xlu0 %v1437, 32
    %v1442 = vpop.permute.xlu0 %1441
    %1443 = vrot.lane.b32.xlu0 %v1438, 32
    %v1444 = vpop.permute.xlu0 %1443
    %v1447 = vadd.f32 %v122, %v1442
    %v1448 = vadd.f32 %v123, %v1444
    %v1449 = vld [vmem:[%s1 + $0x4a] sm:$0x1]
    %v1450 = vld [vmem:[%s1 + $0x4b] sm:$0x1]
    %v1451 = vsel %vm126, %v1447, 0.0
    %1452 = vadd.xlane.f32.xlu0 %v1451
    %v1453 = vpop.xlane.xlu0 %1452
    %v1454 = vsel %vm126, %v1448, 0.0
    %1455 = vadd.xlane.f32.xlu0 %v1454
    %v1456 = vpop.xlane.xlu0 %1455
    %v1457 = vmul.f32 %v1453, %v133
    %v1458 = vmul.f32 %v1456, %v133
    %v1459 = vsub.f32 %v1447, %v1457
    %v1460 = vsub.f32 %v1448, %v1458
    %v1461 = vmul.f32 %v1459, %v1459
    %v1462 = vmul.f32 %v1460, %v1460
    %v1463 = vsel %vm126, %v1461, 0.0
    %1464 = vadd.xlane.f32.xlu0 %v1463
    %v1465 = vpop.xlane.xlu0 %1464
    %v1466 = vsel %vm126, %v1462, 0.0
    %1467 = vadd.xlane.f32.xlu0 %v1466
    %v1468 = vpop.xlane.xlu0 %1467
    %v1469 = vmul.f32 %v1465, %v133
    %v1470 = vmul.f32 %v1468, %v133
    %v1471 = vadd.f32 %v1469, 1e-05
    %v1472 = vadd.f32 %v1470, 1e-05
    %v1473 = vrsqrt.pop %v1471
    %v1474 = vrsqrt.pop %v1472
    %v1475 = vmul.f32 %v1459, %v1473
    %v1476 = vmul.f32 %v1460, %v1474
    %v1477 = vlaneseq
    %v1478 = vshrl.u32 %v1477, 7
    %v1479 = vsub.s32 0, %v1478
    %v1480 = vrot.slane %v1449, %v1479
    %v1481 = vmul.f32 %v1475, %v1480
    %v1482 = vmul.f32 %v1476, %v1480
    %v1483 = vlaneseq
    %v1484 = vshrl.u32 %v1483, 7
    %v1485 = vsub.s32 0, %v1484
    %v1486 = vrot.slane %v1450, %v1485
    %v1487 = vadd.f32 %v1481, %v1486
    %v1488 = vadd.f32 %v1482, %v1486
    %v1489 = vld [vmem:[%s2 + $0x48] sm:$0xff]
    %v1490 = vld [vmem:[%s2 + $0x50] sm:$0xff]
    %v1491 = vld [vmem:[%s2 + $0x58] sm:$0xff]
    %v1492 = vld [vmem:[%s2 + $0x60] sm:$0xff]
    %v1493 = vld [vmem:[%s1 + $0xd0] sm:$0xff]
    %v1494 = vld [vmem:[%s1 + $0xd8] sm:$0xff]
    %v1495 = vld [vmem:[%s1 + $0xe0] sm:$0xff]
    %v1496 = vld [vmem:[%s1 + $0xe8] sm:$0xff]
    %v1497 = vld [vmem:[%s1 + $0xf0] sm:$0xff]
    %v1498 = vld [vmem:[%s1 + $0xf8] sm:$0xff]
    %v1499 = vld [vmem:[%s1 + $0x100] sm:$0xff]
    %v1500 = vld [vmem:[%s1 + $0x108] sm:$0xff]
    %v1501 = vld [vmem:[%s1 + $0x110] sm:$0xff]
    %v1502 = vld [vmem:[%s1 + $0x118] sm:$0xff]
    %v1503 = vld [vmem:[%s1 + $0x120] sm:$0xff]
    %v1504 = vld [vmem:[%s1 + $0x128] sm:$0xff]
    %v1505 = vld [vmem:[%s1 + $0x130] sm:$0xff]
    %v1506 = vld [vmem:[%s1 + $0x138] sm:$0xff]
    %v1507 = vld [vmem:[%s1 + $0x140] sm:$0xff]
    %v1508 = vld [vmem:[%s1 + $0x148] sm:$0xff]
    %v1510 = vsel %vm126, %v1487, 0
    %v1513 = vsel %vm126, %v1488, 0
    %1515 = vmatprep.subr.mxu0 0.0
    %1516 = vmatpush1.msra.mxu0 %v1489
    %1517 = vmatprep.subr.mxu0 0.0
    %1518 = vmatpush1.msra.mxu0 %v1490
    %1519 = vmatprep.subr.mxu0 0.0
    %1520 = vmatpush1.msra.mxu0 %v1491
    %1521 = vmatprep.subr.mxu0 0.0
    %1522 = vmatpush1.msra.mxu0 %v1492
    %1523 = vmatprep.subr.mxu0 0.0
    %1524 = vmatpush1.msra.mxu0 0.0
    %1525 = vmatprep.subr.mxu0 0.0
    %1526 = vmatpush1.msra.mxu0 0.0
    %1527 = vmatprep.subr.mxu0 0.0
    %1528 = vmatpush1.msra.mxu0 0.0
    %1529 = vmatprep.subr.mxu0 0.0
    %1530 = vmatpush1.msra.mxu0 0.0
    %1531 = vmatprep.subr.mxu0 0.0
    %1532 = vmatpush1.msra.mxu0 0.0
    %1533 = vmatprep.subr.mxu0 0.0
    %1534 = vmatpush1.msra.mxu0 0.0
    %1535 = vmatprep.subr.mxu0 0.0
    %1536 = vmatpush1.msra.mxu0 0.0
    %1537 = vmatprep.subr.mxu0 0.0
    %1538 = vmatpush1.msra.mxu0 0.0
    %1539 = vmatprep.subr.mxu0 0.0
    %1540 = vmatpush1.msra.mxu0 0.0
    %1541 = vmatprep.subr.mxu0 0.0
    %1542 = vmatpush1.msra.mxu0 0.0
    %1543 = vmatprep.subr.mxu0 0.0
    %1544 = vmatpush1.msra.mxu0 0.0
    %1545 = vmatprep.subr.mxu0 0.0
    %1546 = vmatpush1.msra.mxu0 0.0
    %1547 = vmatprep.subr.mxu0 0.0
    %1548 = vmatpush1.msra.mxu0 0.0
    %1549 = vmatprep.subr.mxu0 0.0
    %1550 = vmatpush1.msra.mxu0 0.0
    %1551 = vmatprep.subr.mxu0 0.0
    %1552 = vmatpush1.msra.mxu0 0.0
    %1553 = vmatprep.subr.mxu0 0.0
    %1554 = vmatpush1.msra.mxu0 0.0
    %1555 = vmatprep.subr.mxu0 0.0
    %1556 = vmatpush1.msra.mxu0 0.0
    %1557 = vmatprep.subr.mxu0 0.0
    %1558 = vmatpush1.msra.mxu0 0.0
    %1559 = vmatprep.subr.mxu0 0.0
    %1560 = vmatpush1.msra.mxu0 0.0
    %1561 = vmatprep.subr.mxu0 0.0
    %1562 = vmatpush1.msra.mxu0 0.0
    %1563 = vmatprep.subr.mxu0 0.0
    %1564 = vmatpush1.msra.mxu0 0.0
    %1565 = vmatprep.subr.mxu0 0.0
    %1566 = vmatpush1.msra.mxu0 0.0
    %1567 = vmatprep.subr.mxu0 0.0
    %1568 = vmatpush1.msra.mxu0 0.0
    %1569 = vmatprep.subr.mxu0 0.0
    %1570 = vmatpush1.msra.mxu0 0.0
    %1571 = vmatprep.subr.mxu0 0.0
    %1572 = vmatpush1.msra.mxu0 0.0
    %1573 = vmatprep.subr.mxu0 0.0
    %1574 = vmatpush1.msra.mxu0 0.0
    %1575 = vmatprep.subr.mxu0 0.0
    %1576 = vmatpush1.msra.mxu0 0.0
    %1577 = vmatprep.subr.mxu0 0.0
    %1578 = vmatpush1.msra.mxu0 0.0
    %1579 = vmatprep.mubr.f32.mxu0 0.0
    %1580 = vmatmul.mubr.f32.gmra.mrb[0].mxu0 %v1510
    %v1581 = vpop.f32.mrb[0].mxu0
    %v1582 = vadd.f32 0.0, %v1581
    %v1583 = vpop.f32.mrb[0].mxu0
    %1584 = vmatprep.mubr.f32.mxu0 0.0
    %1585 = vmatmul.mubr.f32.gmra.mrb[0].mxu0 %v1513
    %v1586 = vpop.f32.mrb[0].mxu0
    %v1587 = vadd.f32 0.0, %v1586
    %v1588 = vpop.f32.mrb[0].mxu0
    %1589 = vdwg.mxu0
    %v1590 = vmul.f32 %v1582, 0.5
    %v1591 = vmul.f32 %v1587, 0.5
    %v1592 = vmul.f32 %v1582, 0.70710677
    %v1593 = vmul.f32 %v1587, 0.70710677
    %vm1594 = vcmp.ge.f32.partialorder %v1592, 0.0
    %vm1595 = vcmp.ge.f32.partialorder %v1593, 0.0
    %v1596 = vsel %vm1594, 1.0, -1.0
    %v1597 = vsel %vm1595, 1.0, -1.0
    %v1598 = vand.u32 2147483647, %v1592
    %v1599 = vand.u32 2147483647, %v1593
    %v1600 = vmul.f32 %v1598, 0.3275911
    %v1601 = vmul.f32 %v1599, 0.3275911
    %v1602 = vadd.f32 %v1600, 1.0
    %v1603 = vadd.f32 %v1601, 1.0
    %v1604 = vrcp.pop %v1602
    %v1605 = vmul.f32 1.0, %v1604
    %v1606 = vrcp.pop %v1603
    %v1607 = vmul.f32 1.0, %v1606
    %v1608 = vmul.f32 %v1605, 1.0614054
    %v1609 = vmul.f32 %v1607, 1.0614054
    %v1610 = vadd.f32 %v1608, -1.4531521
    %v1611 = vadd.f32 %v1609, -1.4531521
    %v1612 = vmul.f32 %v1610, %v1605
    %v1613 = vmul.f32 %v1611, %v1607
    %v1614 = vadd.f32 %v1612, 1.4214138
    %v1615 = vadd.f32 %v1613, 1.4214138
    %v1616 = vmul.f32 %v1614, %v1605
    %v1617 = vmul.f32 %v1615, %v1607
    %v1618 = vadd.f32 %v1616, -0.28449672
    %v1619 = vadd.f32 %v1617, -0.28449672
    %v1620 = vmul.f32 %v1618, %v1605
    %v1621 = vmul.f32 %v1619, %v1607
    %v1622 = vadd.f32 %v1620, 0.2548296
    %v1623 = vadd.f32 %v1621, 0.2548296
    %v1624 = vmul.f32 %v1622, %v1605
    %v1625 = vmul.f32 %v1623, %v1607
    %v1626 = vsub.f32 0.0, %v1598
    %v1627 = vsub.f32 0.0, %v1599
    %v1628 = vmul.f32 %v1626, %v1598
    %v1629 = vmul.f32 %v1627, %v1599
    %v1630 = vmul.f32 %v1628, 1.442695
    %v1631 = vpow.pop %v1630
    %v1632 = vmul.f32 %v1629, 1.442695
    %v1633 = vpow.pop %v1632
    %v1634 = vmul.f32 %v1624, %v1631
    %v1635 = vmul.f32 %v1625, %v1633
    %v1636 = vsub.f32 1.0, %v1634
    %v1637 = vsub.f32 1.0, %v1635
    %v1638 = vmul.f32 %v1596, %v1636
    %v1639 = vmul.f32 %v1597, %v1637
    %v1640 = vadd.f32 %v1638, 1.0
    %v1641 = vadd.f32 %v1639, 1.0
    %v1642 = vmul.f32 %v1590, %v1640
    %v1643 = vmul.f32 %v1591, %v1641
    %1644 = vmatprep.subr.mxu0 0.0
    %1645 = vmatpush1.msra.mxu0 %v1493
    %1646 = vmatprep.subr.mxu0 0.0
    %1647 = vmatpush1.msra.mxu0 %v1494
    %1648 = vmatprep.subr.mxu0 0.0
    %1649 = vmatpush1.msra.mxu0 %v1495
    %1650 = vmatprep.subr.mxu0 0.0
    %1651 = vmatpush1.msra.mxu0 %v1496
    %1652 = vmatprep.subr.mxu0 0.0
    %1653 = vmatpush1.msra.mxu0 %v1497
    %1654 = vmatprep.subr.mxu0 0.0
    %1655 = vmatpush1.msra.mxu0 %v1498
    %1656 = vmatprep.subr.mxu0 0.0
    %1657 = vmatpush1.msra.mxu0 %v1499
    %1658 = vmatprep.subr.mxu0 0.0
    %1659 = vmatpush1.msra.mxu0 %v1500
    %1660 = vmatprep.subr.mxu0 0.0
    %1661 = vmatpush1.msra.mxu0 %v1501
    %1662 = vmatprep.subr.mxu0 0.0
    %1663 = vmatpush1.msra.mxu0 %v1502
    %1664 = vmatprep.subr.mxu0 0.0
    %1665 = vmatpush1.msra.mxu0 %v1503
    %1666 = vmatprep.subr.mxu0 0.0
    %1667 = vmatpush1.msra.mxu0 %v1504
    %1668 = vmatprep.subr.mxu0 0.0
    %1669 = vmatpush1.msra.mxu0 %v1505
    %1670 = vmatprep.subr.mxu0 0.0
    %1671 = vmatpush1.msra.mxu0 %v1506
    %1672 = vmatprep.subr.mxu0 0.0
    %1673 = vmatpush1.msra.mxu0 %v1507
    %1674 = vmatprep.subr.mxu0 0.0
    %1675 = vmatpush1.msra.mxu0 %v1508
    %1676 = vmatprep.subr.mxu0 0.0
    %1677 = vmatpush1.msra.mxu0 0.0
    %1678 = vmatprep.subr.mxu0 0.0
    %1679 = vmatpush1.msra.mxu0 0.0
    %1680 = vmatprep.subr.mxu0 0.0
    %1681 = vmatpush1.msra.mxu0 0.0
    %1682 = vmatprep.subr.mxu0 0.0
    %1683 = vmatpush1.msra.mxu0 0.0
    %1684 = vmatprep.subr.mxu0 0.0
    %1685 = vmatpush1.msra.mxu0 0.0
    %1686 = vmatprep.subr.mxu0 0.0
    %1687 = vmatpush1.msra.mxu0 0.0
    %1688 = vmatprep.subr.mxu0 0.0
    %1689 = vmatpush1.msra.mxu0 0.0
    %1690 = vmatprep.subr.mxu0 0.0
    %1691 = vmatpush1.msra.mxu0 0.0
    %1692 = vmatprep.subr.mxu0 0.0
    %1693 = vmatpush1.msra.mxu0 0.0
    %1694 = vmatprep.subr.mxu0 0.0
    %1695 = vmatpush1.msra.mxu0 0.0
    %1696 = vmatprep.subr.mxu0 0.0
    %1697 = vmatpush1.msra.mxu0 0.0
    %1698 = vmatprep.subr.mxu0 0.0
    %1699 = vmatpush1.msra.mxu0 0.0
    %1700 = vmatprep.subr.mxu0 0.0
    %1701 = vmatpush1.msra.mxu0 0.0
    %1702 = vmatprep.subr.mxu0 0.0
    %1703 = vmatpush1.msra.mxu0 0.0
    %1704 = vmatprep.subr.mxu0 0.0
    %1705 = vmatpush1.msra.mxu0 0.0
    %1706 = vmatprep.subr.mxu0 0.0
    %1707 = vmatpush1.msra.mxu0 0.0
    %1708 = vmatprep.mubr.f32.mxu0 0.0
    %1709 = vmatmul.mubr.f32.gmra.mrb[0].mxu0 %v1642
    %v1710 = vpop.f32.mrb[0].mxu0
    %v1711 = vadd.f32 0.0, %v1710
    %v1712 = vpop.f32.mrb[0].mxu0
    %1713 = vmatprep.mubr.f32.mxu0 0.0
    %1714 = vmatmul.mubr.f32.gmra.mrb[0].mxu0 %v1643
    %v1715 = vpop.f32.mrb[0].mxu0
    %v1716 = vadd.f32 0.0, %v1715
    %v1717 = vpop.f32.mrb[0].mxu0
    %1718 = vdwg.mxu0
    %v1719 = vadd.f32 %v1447, %v1711
    %v1720 = vadd.f32 %v1448, %v1716
    %v1721 = vld [vmem:[%s1 + $0x4c] sm:$0x1]
    %v1722 = vsel %vm126, %v1719, 0.0
    %1723 = vadd.xlane.f32.xlu0 %v1722
    %v1724 = vpop.xlane.xlu0 %1723
    %v1725 = vsel %vm126, %v1720, 0.0
    %1726 = vadd.xlane.f32.xlu0 %v1725
    %v1727 = vpop.xlane.xlu0 %1726
    %v1728 = vmul.f32 %v1724, %v133
    %v1729 = vmul.f32 %v1727, %v133
    %v1730 = vsub.f32 %v1719, %v1728
    %v1731 = vsub.f32 %v1720, %v1729
    %v1732 = vmul.f32 %v1730, %v1730
    %v1733 = vmul.f32 %v1731, %v1731
    %v1734 = vsel %vm126, %v1732, 0.0
    %1735 = vadd.xlane.f32.xlu0 %v1734
    %v1736 = vpop.xlane.xlu0 %1735
    %v1737 = vsel %vm126, %v1733, 0.0
    %1738 = vadd.xlane.f32.xlu0 %v1737
    %v1739 = vpop.xlane.xlu0 %1738
    %v1740 = vmul.f32 %v1736, %v133
    %v1741 = vmul.f32 %v1739, %v133
    %v1742 = vadd.f32 %v1740, 1e-05
    %v1743 = vadd.f32 %v1741, 1e-05
    %v1744 = vrsqrt.pop %v1742
    %v1745 = vrsqrt.pop %v1743
    %v1746 = vmul.f32 %v1730, %v1744
    %v1747 = vmul.f32 %v1731, %v1745
    %v1748 = vlaneseq
    %v1749 = vshrl.u32 %v1748, 7
    %v1750 = vsub.s32 0, %v1749
    %v1751 = vrot.slane %v1721, %v1750
    %v1752 = vmul.f32 %v1746, %v1751
    %v1753 = vmul.f32 %v1747, %v1751
    %v1754 = vld [vmem:[%s1 + $0x50] sm:$0xff]
    %v1755 = vld [vmem:[%s1 + $0x58] sm:$0xff]
    %v1756 = vld [vmem:[%s1 + $0x60] sm:$0xff]
    %v1757 = vld [vmem:[%s1 + $0x68] sm:$0xff]
    %v1758 = vld [vmem:[%s1 + $0x70] sm:$0xff]
    %v1759 = vld [vmem:[%s1 + $0x78] sm:$0xff]
    %v1760 = vld [vmem:[%s1 + $0x80] sm:$0xff]
    %v1761 = vld [vmem:[%s1 + $0x88] sm:$0xff]
    %v1762 = vld [vmem:[%s1 + $0x90] sm:$0xff]
    %v1763 = vld [vmem:[%s1 + $0x98] sm:$0xff]
    %v1764 = vld [vmem:[%s1 + $0xa0] sm:$0xff]
    %v1765 = vld [vmem:[%s1 + $0xa8] sm:$0xff]
    %v1767 = vsel %vm126, %v1752, 0
    %v1770 = vsel %vm126, %v1753, 0
    %1772 = vmatprep.subr.mxu0 0.0
    %1773 = vmatpush1.msra.mxu0 %v1754
    %1774 = vmatprep.subr.mxu0 0.0
    %1775 = vmatpush1.msra.mxu0 %v1755
    %1776 = vmatprep.subr.mxu0 0.0
    %1777 = vmatpush1.msra.mxu0 %v1756
    %1778 = vmatprep.subr.mxu0 0.0
    %1779 = vmatpush1.msra.mxu0 %v1757
    %1780 = vmatprep.subr.mxu0 0.0
    %1781 = vmatpush1.msra.mxu0 0.0
    %1782 = vmatprep.subr.mxu0 0.0
    %1783 = vmatpush1.msra.mxu0 0.0
    %1784 = vmatprep.subr.mxu0 0.0
    %1785 = vmatpush1.msra.mxu0 0.0
    %1786 = vmatprep.subr.mxu0 0.0
    %1787 = vmatpush1.msra.mxu0 0.0
    %1788 = vmatprep.subr.mxu0 0.0
    %1789 = vmatpush1.msra.mxu0 0.0
    %1790 = vmatprep.subr.mxu0 0.0
    %1791 = vmatpush1.msra.mxu0 0.0
    %1792 = vmatprep.subr.mxu0 0.0
    %1793 = vmatpush1.msra.mxu0 0.0
    %1794 = vmatprep.subr.mxu0 0.0
    %1795 = vmatpush1.msra.mxu0 0.0
    %1796 = vmatprep.subr.mxu0 0.0
    %1797 = vmatpush1.msra.mxu0 0.0
    %1798 = vmatprep.subr.mxu0 0.0
    %1799 = vmatpush1.msra.mxu0 0.0
    %1800 = vmatprep.subr.mxu0 0.0
    %1801 = vmatpush1.msra.mxu0 0.0
    %1802 = vmatprep.subr.mxu0 0.0
    %1803 = vmatpush1.msra.mxu0 0.0
    %1804 = vmatprep.subr.mxu0 0.0
    %1805 = vmatpush1.msra.mxu0 0.0
    %1806 = vmatprep.subr.mxu0 0.0
    %1807 = vmatpush1.msra.mxu0 0.0
    %1808 = vmatprep.subr.mxu0 0.0
    %1809 = vmatpush1.msra.mxu0 0.0
    %1810 = vmatprep.subr.mxu0 0.0
    %1811 = vmatpush1.msra.mxu0 0.0
    %1812 = vmatprep.subr.mxu0 0.0
    %1813 = vmatpush1.msra.mxu0 0.0
    %1814 = vmatprep.subr.mxu0 0.0
    %1815 = vmatpush1.msra.mxu0 0.0
    %1816 = vmatprep.subr.mxu0 0.0
    %1817 = vmatpush1.msra.mxu0 0.0
    %1818 = vmatprep.subr.mxu0 0.0
    %1819 = vmatpush1.msra.mxu0 0.0
    %1820 = vmatprep.subr.mxu0 0.0
    %1821 = vmatpush1.msra.mxu0 0.0
    %1822 = vmatprep.subr.mxu0 0.0
    %1823 = vmatpush1.msra.mxu0 0.0
    %1824 = vmatprep.subr.mxu0 0.0
    %1825 = vmatpush1.msra.mxu0 0.0
    %1826 = vmatprep.subr.mxu0 0.0
    %1827 = vmatpush1.msra.mxu0 0.0
    %1828 = vmatprep.subr.mxu0 0.0
    %1829 = vmatpush1.msra.mxu0 0.0
    %1830 = vmatprep.subr.mxu0 0.0
    %1831 = vmatpush1.msra.mxu0 0.0
    %1832 = vmatprep.subr.mxu0 0.0
    %1833 = vmatpush1.msra.mxu0 0.0
    %1834 = vmatprep.subr.mxu0 0.0
    %1835 = vmatpush1.msra.mxu0 0.0
    %1836 = vmatprep.mubr.f32.mxu0 0.0
    %1837 = vmatmul.mubr.f32.gmra.mrb[0].mxu0 %v1767
    %v1838 = vpop.f32.mrb[0].mxu0
    %v1839 = vadd.f32 0.0, %v1838
    %v1840 = vpop.f32.mrb[0].mxu0
    %1841 = vmatprep.mubr.f32.mxu0 0.0
    %1842 = vmatmul.mubr.f32.gmra.mrb[0].mxu0 %v1770
    %v1843 = vpop.f32.mrb[0].mxu0
    %v1844 = vadd.f32 0.0, %v1843
    %v1845 = vpop.f32.mrb[0].mxu0
    %1846 = vdwg.mxu0
    %1847 = vmatprep.subr.mxu0 0.0
    %1848 = vmatpush1.msra.mxu0 %v1758
    %1849 = vmatprep.subr.mxu0 0.0
    %1850 = vmatpush1.msra.mxu0 %v1759
    %1851 = vmatprep.subr.mxu0 0.0
    %1852 = vmatpush1.msra.mxu0 %v1760
    %1853 = vmatprep.subr.mxu0 0.0
    %1854 = vmatpush1.msra.mxu0 %v1761
    %1855 = vmatprep.subr.mxu0 0.0
    %1856 = vmatpush1.msra.mxu0 0.0
    %1857 = vmatprep.subr.mxu0 0.0
    %1858 = vmatpush1.msra.mxu0 0.0
    %1859 = vmatprep.subr.mxu0 0.0
    %1860 = vmatpush1.msra.mxu0 0.0
    %1861 = vmatprep.subr.mxu0 0.0
    %1862 = vmatpush1.msra.mxu0 0.0
    %1863 = vmatprep.subr.mxu0 0.0
    %1864 = vmatpush1.msra.mxu0 0.0
    %1865 = vmatprep.subr.mxu0 0.0
    %1866 = vmatpush1.msra.mxu0 0.0
    %1867 = vmatprep.subr.mxu0 0.0
    %1868 = vmatpush1.msra.mxu0 0.0
    %1869 = vmatprep.subr.mxu0 0.0
    %1870 = vmatpush1.msra.mxu0 0.0
    %1871 = vmatprep.subr.mxu0 0.0
    %1872 = vmatpush1.msra.mxu0 0.0
    %1873 = vmatprep.subr.mxu0 0.0
    %1874 = vmatpush1.msra.mxu0 0.0
    %1875 = vmatprep.subr.mxu0 0.0
    %1876 = vmatpush1.msra.mxu0 0.0
    %1877 = vmatprep.subr.mxu0 0.0
    %1878 = vmatpush1.msra.mxu0 0.0
    %1879 = vmatprep.subr.mxu0 0.0
    %1880 = vmatpush1.msra.mxu0 0.0
    %1881 = vmatprep.subr.mxu0 0.0
    %1882 = vmatpush1.msra.mxu0 0.0
    %1883 = vmatprep.subr.mxu0 0.0
    %1884 = vmatpush1.msra.mxu0 0.0
    %1885 = vmatprep.subr.mxu0 0.0
    %1886 = vmatpush1.msra.mxu0 0.0
    %1887 = vmatprep.subr.mxu0 0.0
    %1888 = vmatpush1.msra.mxu0 0.0
    %1889 = vmatprep.subr.mxu0 0.0
    %1890 = vmatpush1.msra.mxu0 0.0
    %1891 = vmatprep.subr.mxu0 0.0
    %1892 = vmatpush1.msra.mxu0 0.0
    %1893 = vmatprep.subr.mxu0 0.0
    %1894 = vmatpush1.msra.mxu0 0.0
    %1895 = vmatprep.subr.mxu0 0.0
    %1896 = vmatpush1.msra.mxu0 0.0
    %1897 = vmatprep.subr.mxu0 0.0
    %1898 = vmatpush1.msra.mxu0 0.0
    %1899 = vmatprep.subr.mxu0 0.0
    %1900 = vmatpush1.msra.mxu0 0.0
    %1901 = vmatprep.subr.mxu0 0.0
    %1902 = vmatpush1.msra.mxu0 0.0
    %1903 = vmatprep.subr.mxu0 0.0
    %1904 = vmatpush1.msra.mxu0 0.0
    %1905 = vmatprep.subr.mxu0 0.0
    %1906 = vmatpush1.msra.mxu0 0.0
    %1907 = vmatprep.subr.mxu0 0.0
    %1908 = vmatpush1.msra.mxu0 0.0
    %1909 = vmatprep.subr.mxu0 0.0
    %1910 = vmatpush1.msra.mxu0 0.0
    %1911 = vmatprep.mubr.f32.mxu0 0.0
    %1912 = vmatmul.mubr.f32.gmra.mrb[0].mxu0 %v1767
    %v1913 = vpop.f32.mrb[0].mxu0
    %v1914 = vadd.f32 0.0, %v1913
    %v1915 = vpop.f32.mrb[0].mxu0
    %1916 = vmatprep.mubr.f32.mxu0 0.0
    %1917 = vmatmul.mubr.f32.gmra.mrb[0].mxu0 %v1770
    %v1918 = vpop.f32.mrb[0].mxu0
    %v1919 = vadd.f32 0.0, %v1918
    %v1920 = vpop.f32.mrb[0].mxu0
    %1921 = vdwg.mxu0
    %1922 = vmatprep.subr.mxu0 0.0
    %1923 = vmatpush1.msra.mxu0 %v1762
    %1924 = vmatprep.subr.mxu0 0.0
    %1925 = vmatpush1.msra.mxu0 %v1763
    %1926 = vmatprep.subr.mxu0 0.0
    %1927 = vmatpush1.msra.mxu0 %v1764
    %1928 = vmatprep.subr.mxu0 0.0
    %1929 = vmatpush1.msra.mxu0 %v1765
    %1930 = vmatprep.subr.mxu0 0.0
    %1931 = vmatpush1.msra.mxu0 0.0
    %1932 = vmatprep.subr.mxu0 0.0
    %1933 = vmatpush1.msra.mxu0 0.0
    %1934 = vmatprep.subr.mxu0 0.0
    %1935 = vmatpush1.msra.mxu0 0.0
    %1936 = vmatprep.subr.mxu0 0.0
    %1937 = vmatpush1.msra.mxu0 0.0
    %1938 = vmatprep.subr.mxu0 0.0
    %1939 = vmatpush1.msra.mxu0 0.0
    %1940 = vmatprep.subr.mxu0 0.0
    %1941 = vmatpush1.msra.mxu0 0.0
    %1942 = vmatprep.subr.mxu0 0.0
    %1943 = vmatpush1.msra.mxu0 0.0
    %1944 = vmatprep.subr.mxu0 0.0
    %1945 = vmatpush1.msra.mxu0 0.0
    %1946 = vmatprep.subr.mxu0 0.0
    %1947 = vmatpush1.msra.mxu0 0.0
    %1948 = vmatprep.subr.mxu0 0.0
    %1949 = vmatpush1.msra.mxu0 0.0
    %1950 = vmatprep.subr.mxu0 0.0
    %1951 = vmatpush1.msra.mxu0 0.0
    %1952 = vmatprep.subr.mxu0 0.0
    %1953 = vmatpush1.msra.mxu0 0.0
    %1954 = vmatprep.subr.mxu0 0.0
    %1955 = vmatpush1.msra.mxu0 0.0
    %1956 = vmatprep.subr.mxu0 0.0
    %1957 = vmatpush1.msra.mxu0 0.0
    %1958 = vmatprep.subr.mxu0 0.0
    %1959 = vmatpush1.msra.mxu0 0.0
    %1960 = vmatprep.subr.mxu0 0.0
    %1961 = vmatpush1.msra.mxu0 0.0
    %1962 = vmatprep.subr.mxu0 0.0
    %1963 = vmatpush1.msra.mxu0 0.0
    %1964 = vmatprep.subr.mxu0 0.0
    %1965 = vmatpush1.msra.mxu0 0.0
    %1966 = vmatprep.subr.mxu0 0.0
    %1967 = vmatpush1.msra.mxu0 0.0
    %1968 = vmatprep.subr.mxu0 0.0
    %1969 = vmatpush1.msra.mxu0 0.0
    %1970 = vmatprep.subr.mxu0 0.0
    %1971 = vmatpush1.msra.mxu0 0.0
    %1972 = vmatprep.subr.mxu0 0.0
    %1973 = vmatpush1.msra.mxu0 0.0
    %1974 = vmatprep.subr.mxu0 0.0
    %1975 = vmatpush1.msra.mxu0 0.0
    %1976 = vmatprep.subr.mxu0 0.0
    %1977 = vmatpush1.msra.mxu0 0.0
    %1978 = vmatprep.subr.mxu0 0.0
    %1979 = vmatpush1.msra.mxu0 0.0
    %1980 = vmatprep.subr.mxu0 0.0
    %1981 = vmatpush1.msra.mxu0 0.0
    %1982 = vmatprep.subr.mxu0 0.0
    %1983 = vmatpush1.msra.mxu0 0.0
    %1984 = vmatprep.subr.mxu0 0.0
    %1985 = vmatpush1.msra.mxu0 0.0
    %1986 = vmatprep.mubr.f32.mxu0 0.0
    %1987 = vmatmul.mubr.f32.gmra.mrb[0].mxu0 %v1767
    %v1988 = vpop.f32.mrb[0].mxu0
    %v1989 = vadd.f32 0.0, %v1988
    %v1990 = vpop.f32.mrb[0].mxu0
    %1991 = vmatprep.mubr.f32.mxu0 0.0
    %1992 = vmatmul.mubr.f32.gmra.mrb[0].mxu0 %v1770
    %v1993 = vpop.f32.mrb[0].mxu0
    %v1994 = vadd.f32 0.0, %v1993
    %v1995 = vpop.f32.mrb[0].mxu0
    %1996 = vdwg.mxu0
    %vm1997 = vcmp.le.s32.totalorder %v28, %v261
    %vm1998 = vcmask 130048
    %v2000 = vsel %vm1998, %v1839, 0
    %v2003 = vsel %vm1998, %v1914, 0
    %2005 = vmatprep.subr.mxu0 0.0
    %2006 = vmatpush1.xpose.msra.mxu0 %v2003
    %2007 = vmatprep.subr.mxu0 0.0
    %2008 = vmatpush1.xpose.msra.mxu0 0.0
    %2009 = vmatprep.subr.mxu0 0.0
    %2010 = vmatpush1.xpose.msra.mxu0 0.0
    %2011 = vmatprep.subr.mxu0 0.0
    %2012 = vmatpush1.xpose.msra.mxu0 0.0
    %2013 = vmatprep.subr.mxu0 0.0
    %2014 = vmatpush1.xpose.msra.mxu0 0.0
    %2015 = vmatprep.subr.mxu0 0.0
    %2016 = vmatpush1.xpose.msra.mxu0 0.0
    %2017 = vmatprep.subr.mxu0 0.0
    %2018 = vmatpush1.xpose.msra.mxu0 0.0
    %2019 = vmatprep.subr.mxu0 0.0
    %2020 = vmatpush1.xpose.msra.mxu0 0.0
    %2021 = vmatprep.subr.mxu0 0.0
    %2022 = vmatpush1.xpose.msra.mxu0 0.0
    %2023 = vmatprep.subr.mxu0 0.0
    %2024 = vmatpush1.xpose.msra.mxu0 0.0
    %2025 = vmatprep.subr.mxu0 0.0
    %2026 = vmatpush1.xpose.msra.mxu0 0.0
    %2027 = vmatprep.subr.mxu0 0.0
    %2028 = vmatpush1.xpose.msra.mxu0 0.0
    %2029 = vmatprep.subr.mxu0 0.0
    %2030 = vmatpush1.xpose.msra.mxu0 0.0
    %2031 = vmatprep.subr.mxu0 0.0
    %2032 = vmatpush1.xpose.msra.mxu0 0.0
    %2033 = vmatprep.subr.mxu0 0.0
    %2034 = vmatpush1.xpose.msra.mxu0 0.0
    %2035 = vmatprep.subr.mxu0 0.0
    %2036 = vmatpush1.xpose.msra.mxu0 0.0
    %2037 = vmatprep.subr.mxu0 0.0
    %2038 = vmatpush1.xpose.msra.mxu0 0.0
    %2039 = vmatprep.subr.mxu0 0.0
    %2040 = vmatpush1.xpose.msra.mxu0 0.0
    %2041 = vmatprep.subr.mxu0 0.0
    %2042 = vmatpush1.xpose.msra.mxu0 0.0
    %2043 = vmatprep.subr.mxu0 0.0
    %2044 = vmatpush1.xpose.msra.mxu0 0.0
    %2045 = vmatprep.subr.mxu0 0.0
    %2046 = vmatpush1.xpose.msra.mxu0 0.0
    %2047 = vmatprep.subr.mxu0 0.0
    %2048 = vmatpush1.xpose.msra.mxu0 0.0
    %2049 = vmatprep.subr.mxu0 0.0
    %2050 = vmatpush1.xpose.msra.mxu0 0.0
    %2051 = vmatprep.subr.mxu0 0.0
    %2052 = vmatpush1.xpose.msra.mxu0 0.0
    %2053 = vmatprep.subr.mxu0 0.0
    %2054 = vmatpush1.xpose.msra.mxu0 0.0
    %2055 = vmatprep.subr.mxu0 0.0
    %2056 = vmatpush1.xpose.msra.mxu0 0.0
    %2057 = vmatprep.subr.mxu0 0.0
    %2058 = vmatpush1.xpose.msra.mxu0 0.0
    %2059 = vmatprep.subr.mxu0 0.0
    %2060 = vmatpush1.xpose.msra.mxu0 0.0
    %2061 = vmatprep.subr.mxu0 0.0
    %2062 = vmatpush1.xpose.msra.mxu0 0.0
    %2063 = vmatprep.subr.mxu0 0.0
    %2064 = vmatpush1.xpose.msra.mxu0 0.0
    %2065 = vmatprep.subr.mxu0 0.0
    %2066 = vmatpush1.xpose.msra.mxu0 0.0
    %2067 = vmatprep.subr.mxu0 0.0
    %2068 = vmatpush1.xpose.msra.mxu0 0.0
    %2069 = vmatprep.mubr.f32.mxu0 0.0
    %2070 = vmatmul.mubr.f32.gmra.mrb[0].mxu0 %v2000
    %v2071 = vpop.f32.mrb[0].mxu0
    %v2072 = vadd.f32 0.0, %v2071
    %v2073 = vpop.f32.mrb[0].mxu0
    %2074 = vdwg.mxu0
    %v2076 = vsel %vm1998, %v1844, 0
    %v2079 = vsel %vm1998, %v1919, 0
    %2081 = vmatprep.subr.mxu0 0.0
    %2082 = vmatpush1.xpose.msra.mxu0 %v2079
    %2083 = vmatprep.subr.mxu0 0.0
    %2084 = vmatpush1.xpose.msra.mxu0 0.0
    %2085 = vmatprep.subr.mxu0 0.0
    %2086 = vmatpush1.xpose.msra.mxu0 0.0
    %2087 = vmatprep.subr.mxu0 0.0
    %2088 = vmatpush1.xpose.msra.mxu0 0.0
    %2089 = vmatprep.subr.mxu0 0.0
    %2090 = vmatpush1.xpose.msra.mxu0 0.0
    %2091 = vmatprep.subr.mxu0 0.0
    %2092 = vmatpush1.xpose.msra.mxu0 0.0
    %2093 = vmatprep.subr.mxu0 0.0
    %2094 = vmatpush1.xpose.msra.mxu0 0.0
    %2095 = vmatprep.subr.mxu0 0.0
    %2096 = vmatpush1.xpose.msra.mxu0 0.0
    %2097 = vmatprep.subr.mxu0 0.0
    %2098 = vmatpush1.xpose.msra.mxu0 0.0
    %2099 = vmatprep.subr.mxu0 0.0
    %2100 = vmatpush1.xpose.msra.mxu0 0.0
    %2101 = vmatprep.subr.mxu0 0.0
    %2102 = vmatpush1.xpose.msra.mxu0 0.0
    %2103 = vmatprep.subr.mxu0 0.0
    %2104 = vmatpush1.xpose.msra.mxu0 0.0
    %2105 = vmatprep.subr.mxu0 0.0
    %2106 = vmatpush1.xpose.msra.mxu0 0.0
    %2107 = vmatprep.subr.mxu0 0.0
    %2108 = vmatpush1.xpose.msra.mxu0 0.0
    %2109 = vmatprep.subr.mxu0 0.0
    %2110 = vmatpush1.xpose.msra.mxu0 0.0
    %2111 = vmatprep.subr.mxu0 0.0
    %2112 = vmatpush1.xpose.msra.mxu0 0.0
    %2113 = vmatprep.subr.mxu0 0.0
    %2114 = vmatpush1.xpose.msra.mxu0 0.0
    %2115 = vmatprep.subr.mxu0 0.0
    %2116 = vmatpush1.xpose.msra.mxu0 0.0
    %2117 = vmatprep.subr.mxu0 0.0
    %2118 = vmatpush1.xpose.msra.mxu0 0.0
    %2119 = vmatprep.subr.mxu0 0.0
    %2120 = vmatpush1.xpose.msra.mxu0 0.0
    %2121 = vmatprep.subr.mxu0 0.0
    %2122 = vmatpush1.xpose.msra.mxu0 0.0
    %2123 = vmatprep.subr.mxu0 0.0
    %2124 = vmatpush1.xpose.msra.mxu0 0.0
    %2125 = vmatprep.subr.mxu0 0.0
    %2126 = vmatpush1.xpose.msra.mxu0 0.0
    %2127 = vmatprep.subr.mxu0 0.0
    %2128 = vmatpush1.xpose.msra.mxu0 0.0
    %2129 = vmatprep.subr.mxu0 0.0
    %2130 = vmatpush1.xpose.msra.mxu0 0.0
    %2131 = vmatprep.subr.mxu0 0.0
    %2132 = vmatpush1.xpose.msra.mxu0 0.0
    %2133 = vmatprep.subr.mxu0 0.0
    %2134 = vmatpush1.xpose.msra.mxu0 0.0
    %2135 = vmatprep.subr.mxu0 0.0
    %2136 = vmatpush1.xpose.msra.mxu0 0.0
    %2137 = vmatprep.subr.mxu0 0.0
    %2138 = vmatpush1.xpose.msra.mxu0 0.0
    %2139 = vmatprep.subr.mxu0 0.0
    %2140 = vmatpush1.xpose.msra.mxu0 0.0
    %2141 = vmatprep.subr.mxu0 0.0
    %2142 = vmatpush1.xpose.msra.mxu0 0.0
    %2143 = vmatprep.subr.mxu0 0.0
    %2144 = vmatpush1.xpose.msra.mxu0 0.0
    %2145 = vmatprep.mubr.f32.mxu0 0.0
    %2146 = vmatmul.mubr.f32.gmra.mrb[0].mxu0 %v2076
    %v2147 = vpop.f32.mrb[0].mxu0
    %v2148 = vadd.f32 0.0, %v2147
    %v2149 = vpop.f32.mrb[0].mxu0
    %2150 = vdwg.mxu0
    %v2151 = vsel %vm1997, 1, 0
    %vm2152 = vcmp.eq.s32.totalorder %v2151, 1
    %v2153 = vsel %vm2152, %v2072, -inf
    %v2154 = vsel %vm2152, %v2148, -inf
    %vm2155 = vcmask 64512
    %v2156 = vsel %vm2155, %v2153, -inf
    %2157 = vmax.xlane.f32.xlu0 %v2156
    %v2158 = vpop.xlane.xlu0 %2157
    %v2159 = vsel %vm2155, %v2154, -inf
    %2160 = vmax.xlane.f32.xlu0 %v2159
    %v2161 = vpop.xlane.xlu0 %2160
    %v2162 = vsub.f32 %v2153, %v2158
    %v2163 = vsub.f32 %v2154, %v2161
    %v2164 = vmul.f32 %v2162, 1.442695
    %v2165 = vpow.pop %v2164
    %v2166 = vmul.f32 %v2163, 1.442695
    %v2167 = vpow.pop %v2166
    %v2168 = vsel %vm2155, %v2165, 0.0
    %2169 = vadd.xlane.f32.xlu0 %v2168
    %v2170 = vpop.xlane.xlu0 %2169
    %v2171 = vsel %vm2155, %v2167, 0.0
    %2172 = vadd.xlane.f32.xlu0 %v2171
    %v2173 = vpop.xlane.xlu0 %2172
    %v2174 = vrcp.pop %v2170
    %v2175 = vrcp.pop %v2173
    %v2176 = vmul.f32 %v2165, %v2174
    %v2177 = vmul.f32 %v2167, %v2175
    %v2179 = vsel %vm2155, %v2176, 0
    %2181 = vmatprep.subr.mxu0 0.0
    %2182 = vmatpush1.msra.mxu0 %v1989
    %2183 = vmatprep.subr.mxu0 0.0
    %2184 = vmatpush1.msra.mxu0 0.0
    %2185 = vmatprep.subr.mxu0 0.0
    %2186 = vmatpush1.msra.mxu0 0.0
    %2187 = vmatprep.subr.mxu0 0.0
    %2188 = vmatpush1.msra.mxu0 0.0
    %2189 = vmatprep.subr.mxu0 0.0
    %2190 = vmatpush1.msra.mxu0 0.0
    %2191 = vmatprep.subr.mxu0 0.0
    %2192 = vmatpush1.msra.mxu0 0.0
    %2193 = vmatprep.subr.mxu0 0.0
    %2194 = vmatpush1.msra.mxu0 0.0
    %2195 = vmatprep.subr.mxu0 0.0
    %2196 = vmatpush1.msra.mxu0 0.0
    %2197 = vmatprep.subr.mxu0 0.0
    %2198 = vmatpush1.msra.mxu0 0.0
    %2199 = vmatprep.subr.mxu0 0.0
    %2200 = vmatpush1.msra.mxu0 0.0
    %2201 = vmatprep.subr.mxu0 0.0
    %2202 = vmatpush1.msra.mxu0 0.0
    %2203 = vmatprep.subr.mxu0 0.0
    %2204 = vmatpush1.msra.mxu0 0.0
    %2205 = vmatprep.subr.mxu0 0.0
    %2206 = vmatpush1.msra.mxu0 0.0
    %2207 = vmatprep.subr.mxu0 0.0
    %2208 = vmatpush1.msra.mxu0 0.0
    %2209 = vmatprep.subr.mxu0 0.0
    %2210 = vmatpush1.msra.mxu0 0.0
    %2211 = vmatprep.subr.mxu0 0.0
    %2212 = vmatpush1.msra.mxu0 0.0
    %2213 = vmatprep.subr.mxu0 0.0
    %2214 = vmatpush1.msra.mxu0 0.0
    %2215 = vmatprep.subr.mxu0 0.0
    %2216 = vmatpush1.msra.mxu0 0.0
    %2217 = vmatprep.subr.mxu0 0.0
    %2218 = vmatpush1.msra.mxu0 0.0
    %2219 = vmatprep.subr.mxu0 0.0
    %2220 = vmatpush1.msra.mxu0 0.0
    %2221 = vmatprep.subr.mxu0 0.0
    %2222 = vmatpush1.msra.mxu0 0.0
    %2223 = vmatprep.subr.mxu0 0.0
    %2224 = vmatpush1.msra.mxu0 0.0
    %2225 = vmatprep.subr.mxu0 0.0
    %2226 = vmatpush1.msra.mxu0 0.0
    %2227 = vmatprep.subr.mxu0 0.0
    %2228 = vmatpush1.msra.mxu0 0.0
    %2229 = vmatprep.subr.mxu0 0.0
    %2230 = vmatpush1.msra.mxu0 0.0
    %2231 = vmatprep.subr.mxu0 0.0
    %2232 = vmatpush1.msra.mxu0 0.0
    %2233 = vmatprep.subr.mxu0 0.0
    %2234 = vmatpush1.msra.mxu0 0.0
    %2235 = vmatprep.subr.mxu0 0.0
    %2236 = vmatpush1.msra.mxu0 0.0
    %2237 = vmatprep.subr.mxu0 0.0
    %2238 = vmatpush1.msra.mxu0 0.0
    %2239 = vmatprep.subr.mxu0 0.0
    %2240 = vmatpush1.msra.mxu0 0.0
    %2241 = vmatprep.subr.mxu0 0.0
    %2242 = vmatpush1.msra.mxu0 0.0
    %2243 = vmatprep.subr.mxu0 0.0
    %2244 = vmatpush1.msra.mxu0 0.0
    %2245 = vmatprep.mubr.f32.mxu0 0.0
    %2246 = vmatmul.mubr.f32.gmra.mrb[0].mxu0 %v2179
    %v2247 = vpop.f32.mrb[0].mxu0
    %v2248 = vadd.f32 0.0, %v2247
    %v2249 = vpop.f32.mrb[0].mxu0
    %2250 = vdwg.mxu0
    %v2252 = vsel %vm2155, %v2177, 0
    %2254 = vmatprep.subr.mxu0 0.0
    %2255 = vmatpush1.msra.mxu0 %v1994
    %2256 = vmatprep.subr.mxu0 0.0
    %2257 = vmatpush1.msra.mxu0 0.0
    %2258 = vmatprep.subr.mxu0 0.0
    %2259 = vmatpush1.msra.mxu0 0.0
    %2260 = vmatprep.subr.mxu0 0.0
    %2261 = vmatpush1.msra.mxu0 0.0
    %2262 = vmatprep.subr.mxu0 0.0
    %2263 = vmatpush1.msra.mxu0 0.0
    %2264 = vmatprep.subr.mxu0 0.0
    %2265 = vmatpush1.msra.mxu0 0.0
    %2266 = vmatprep.subr.mxu0 0.0
    %2267 = vmatpush1.msra.mxu0 0.0
    %2268 = vmatprep.subr.mxu0 0.0
    %2269 = vmatpush1.msra.mxu0 0.0
    %2270 = vmatprep.subr.mxu0 0.0
    %2271 = vmatpush1.msra.mxu0 0.0
    %2272 = vmatprep.subr.mxu0 0.0
    %2273 = vmatpush1.msra.mxu0 0.0
    %2274 = vmatprep.subr.mxu0 0.0
    %2275 = vmatpush1.msra.mxu0 0.0
    %2276 = vmatprep.subr.mxu0 0.0
    %2277 = vmatpush1.msra.mxu0 0.0
    %2278 = vmatprep.subr.mxu0 0.0
    %2279 = vmatpush1.msra.mxu0 0.0
    %2280 = vmatprep.subr.mxu0 0.0
    %2281 = vmatpush1.msra.mxu0 0.0
    %2282 = vmatprep.subr.mxu0 0.0
    %2283 = vmatpush1.msra.mxu0 0.0
    %2284 = vmatprep.subr.mxu0 0.0
    %2285 = vmatpush1.msra.mxu0 0.0
    %2286 = vmatprep.subr.mxu0 0.0
    %2287 = vmatpush1.msra.mxu0 0.0
    %2288 = vmatprep.subr.mxu0 0.0
    %2289 = vmatpush1.msra.mxu0 0.0
    %2290 = vmatprep.subr.mxu0 0.0
    %2291 = vmatpush1.msra.mxu0 0.0
    %2292 = vmatprep.subr.mxu0 0.0
    %2293 = vmatpush1.msra.mxu0 0.0
    %2294 = vmatprep.subr.mxu0 0.0
    %2295 = vmatpush1.msra.mxu0 0.0
    %2296 = vmatprep.subr.mxu0 0.0
    %2297 = vmatpush1.msra.mxu0 0.0
    %2298 = vmatprep.subr.mxu0 0.0
    %2299 = vmatpush1.msra.mxu0 0.0
    %2300 = vmatprep.subr.mxu0 0.0
    %2301 = vmatpush1.msra.mxu0 0.0
    %2302 = vmatprep.subr.mxu0 0.0
    %2303 = vmatpush1.msra.mxu0 0.0
    %2304 = vmatprep.subr.mxu0 0.0
    %2305 = vmatpush1.msra.mxu0 0.0
    %2306 = vmatprep.subr.mxu0 0.0
    %2307 = vmatpush1.msra.mxu0 0.0
    %2308 = vmatprep.subr.mxu0 0.0
    %2309 = vmatpush1.msra.mxu0 0.0
    %2310 = vmatprep.subr.mxu0 0.0
    %2311 = vmatpush1.msra.mxu0 0.0
    %2312 = vmatprep.subr.mxu0 0.0
    %2313 = vmatpush1.msra.mxu0 0.0
    %2314 = vmatprep.subr.mxu0 0.0
    %2315 = vmatpush1.msra.mxu0 0.0
    %2316 = vmatprep.subr.mxu0 0.0
    %2317 = vmatpush1.msra.mxu0 0.0
    %2318 = vmatprep.mubr.f32.mxu0 0.0
    %2319 = vmatmul.mubr.f32.gmra.mrb[0].mxu0 %v2252
    %v2320 = vpop.f32.mrb[0].mxu0
    %v2321 = vadd.f32 0.0, %v2320
    %v2322 = vpop.f32.mrb[0].mxu0
    %2323 = vdwg.mxu0
    %v2324 = vld [vmem:[%s1 + $0xb0] sm:$0xff]
    %v2325 = vld [vmem:[%s1 + $0xb8] sm:$0xff]
    %2326 = vrot.lane.b32.xlu0 %v1839, 112
    %v2327 = vpop.permute.xlu0 %2326
    %2328 = vrot.lane.b32.xlu0 %v1914, 112
    %v2329 = vpop.permute.xlu0 %2328
    %v2330 = vsel %vm1998, %v2327, 0
    %v2332 = vsel %vm1998, %v2329, 0
    %2334 = vmatprep.subr.mxu0 0.0
    %2335 = vmatpush1.xpose.msra.mxu0 %v2332
    %2336 = vmatprep.subr.mxu0 0.0
    %2337 = vmatpush1.xpose.msra.mxu0 0.0
    %2338 = vmatprep.subr.mxu0 0.0
    %2339 = vmatpush1.xpose.msra.mxu0 0.0
    %2340 = vmatprep.subr.mxu0 0.0
    %2341 = vmatpush1.xpose.msra.mxu0 0.0
    %2342 = vmatprep.subr.mxu0 0.0
    %2343 = vmatpush1.xpose.msra.mxu0 0.0
    %2344 = vmatprep.subr.mxu0 0.0
    %2345 = vmatpush1.xpose.msra.mxu0 0.0
    %2346 = vmatprep.subr.mxu0 0.0
    %2347 = vmatpush1.xpose.msra.mxu0 0.0
    %2348 = vmatprep.subr.mxu0 0.0
    %2349 = vmatpush1.xpose.msra.mxu0 0.0
    %2350 = vmatprep.subr.mxu0 0.0
    %2351 = vmatpush1.xpose.msra.mxu0 0.0
    %2352 = vmatprep.subr.mxu0 0.0
    %2353 = vmatpush1.xpose.msra.mxu0 0.0
    %2354 = vmatprep.subr.mxu0 0.0
    %2355 = vmatpush1.xpose.msra.mxu0 0.0
    %2356 = vmatprep.subr.mxu0 0.0
    %2357 = vmatpush1.xpose.msra.mxu0 0.0
    %2358 = vmatprep.subr.mxu0 0.0
    %2359 = vmatpush1.xpose.msra.mxu0 0.0
    %2360 = vmatprep.subr.mxu0 0.0
    %2361 = vmatpush1.xpose.msra.mxu0 0.0
    %2362 = vmatprep.subr.mxu0 0.0
    %2363 = vmatpush1.xpose.msra.mxu0 0.0
    %2364 = vmatprep.subr.mxu0 0.0
    %2365 = vmatpush1.xpose.msra.mxu0 0.0
    %2366 = vmatprep.subr.mxu0 0.0
    %2367 = vmatpush1.xpose.msra.mxu0 0.0
    %2368 = vmatprep.subr.mxu0 0.0
    %2369 = vmatpush1.xpose.msra.mxu0 0.0
    %2370 = vmatprep.subr.mxu0 0.0
    %2371 = vmatpush1.xpose.msra.mxu0 0.0
    %2372 = vmatprep.subr.mxu0 0.0
    %2373 = vmatpush1.xpose.msra.mxu0 0.0
    %2374 = vmatprep.subr.mxu0 0.0
    %2375 = vmatpush1.xpose.msra.mxu0 0.0
    %2376 = vmatprep.subr.mxu0 0.0
    %2377 = vmatpush1.xpose.msra.mxu0 0.0
    %2378 = vmatprep.subr.mxu0 0.0
    %2379 = vmatpush1.xpose.msra.mxu0 0.0
    %2380 = vmatprep.subr.mxu0 0.0
    %2381 = vmatpush1.xpose.msra.mxu0 0.0
    %2382 = vmatprep.subr.mxu0 0.0
    %2383 = vmatpush1.xpose.msra.mxu0 0.0
    %2384 = vmatprep.subr.mxu0 0.0
    %2385 = vmatpush1.xpose.msra.mxu0 0.0
    %2386 = vmatprep.subr.mxu0 0.0
    %2387 = vmatpush1.xpose.msra.mxu0 0.0
    %2388 = vmatprep.subr.mxu0 0.0
    %2389 = vmatpush1.xpose.msra.mxu0 0.0
    %2390 = vmatprep.subr.mxu0 0.0
    %2391 = vmatpush1.xpose.msra.mxu0 0.0
    %2392 = vmatprep.subr.mxu0 0.0
    %2393 = vmatpush1.xpose.msra.mxu0 0.0
    %2394 = vmatprep.subr.mxu0 0.0
    %2395 = vmatpush1.xpose.msra.mxu0 0.0
    %2396 = vmatprep.subr.mxu0 0.0
    %2397 = vmatpush1.xpose.msra.mxu0 0.0
    %2398 = vmatprep.mubr.f32.mxu0 0.0
    %2399 = vmatmul.mubr.f32.gmra.mrb[0].mxu0 %v2330
    %v2400 = vpop.f32.mrb[0].mxu0
    %v2401 = vadd.f32 0.0, %v2400
    %v2402 = vpop.f32.mrb[0].mxu0
    %2403 = vdwg.mxu0
    %2404 = vrot.lane.b32.xlu0 %v1844, 112
    %v2405 = vpop.permute.xlu0 %2404
    %2406 = vrot.lane.b32.xlu0 %v1919, 112
    %v2407 = vpop.permute.xlu0 %2406
    %v2408 = vsel %vm1998, %v2405, 0
    %v2410 = vsel %vm1998, %v2407, 0
    %2412 = vmatprep.subr.mxu0 0.0
    %2413 = vmatpush1.xpose.msra.mxu0 %v2410
    %2414 = vmatprep.subr.mxu0 0.0
    %2415 = vmatpush1.xpose.msra.mxu0 0.0
    %2416 = vmatprep.subr.mxu0 0.0
    %2417 = vmatpush1.xpose.msra.mxu0 0.0
    %2418 = vmatprep.subr.mxu0 0.0
    %2419 = vmatpush1.xpose.msra.mxu0 0.0
    %2420 = vmatprep.subr.mxu0 0.0
    %2421 = vmatpush1.xpose.msra.mxu0 0.0
    %2422 = vmatprep.subr.mxu0 0.0
    %2423 = vmatpush1.xpose.msra.mxu0 0.0
    %2424 = vmatprep.subr.mxu0 0.0
    %2425 = vmatpush1.xpose.msra.mxu0 0.0
    %2426 = vmatprep.subr.mxu0 0.0
    %2427 = vmatpush1.xpose.msra.mxu0 0.0
    %2428 = vmatprep.subr.mxu0 0.0
    %2429 = vmatpush1.xpose.msra.mxu0 0.0
    %2430 = vmatprep.subr.mxu0 0.0
    %2431 = vmatpush1.xpose.msra.mxu0 0.0
    %2432 = vmatprep.subr.mxu0 0.0
    %2433 = vmatpush1.xpose.msra.mxu0 0.0
    %2434 = vmatprep.subr.mxu0 0.0
    %2435 = vmatpush1.xpose.msra.mxu0 0.0
    %2436 = vmatprep.subr.mxu0 0.0
    %2437 = vmatpush1.xpose.msra.mxu0 0.0
    %2438 = vmatprep.subr.mxu0 0.0
    %2439 = vmatpush1.xpose.msra.mxu0 0.0
    %2440 = vmatprep.subr.mxu0 0.0
    %2441 = vmatpush1.xpose.msra.mxu0 0.0
    %2442 = vmatprep.subr.mxu0 0.0
    %2443 = vmatpush1.xpose.msra.mxu0 0.0
    %2444 = vmatprep.subr.mxu0 0.0
    %2445 = vmatpush1.xpose.msra.mxu0 0.0
    %2446 = vmatprep.subr.mxu0 0.0
    %2447 = vmatpush1.xpose.msra.mxu0 0.0
    %2448 = vmatprep.subr.mxu0 0.0
    %2449 = vmatpush1.xpose.msra.mxu0 0.0
    %2450 = vmatprep.subr.mxu0 0.0
    %2451 = vmatpush1.xpose.msra.mxu0 0.0
    %2452 = vmatprep.subr.mxu0 0.0
    %2453 = vmatpush1.xpose.msra.mxu0 0.0
    %2454 = vmatprep.subr.mxu0 0.0
    %2455 = vmatpush1.xpose.msra.mxu0 0.0
    %2456 = vmatprep.subr.mxu0 0.0
    %2457 = vmatpush1.xpose.msra.mxu0 0.0
    %2458 = vmatprep.subr.mxu0 0.0
    %2459 = vmatpush1.xpose.msra.mxu0 0.0
    %2460 = vmatprep.subr.mxu0 0.0
    %2461 = vmatpush1.xpose.msra.mxu0 0.0
    %2462 = vmatprep.subr.mxu0 0.0
    %2463 = vmatpush1.xpose.msra.mxu0 0.0
    %2464 = vmatprep.subr.mxu0 0.0
    %2465 = vmatpush1.xpose.msra.mxu0 0.0
    %2466 = vmatprep.subr.mxu0 0.0
    %2467 = vmatpush1.xpose.msra.mxu0 0.0
    %2468 = vmatprep.subr.mxu0 0.0
    %2469 = vmatpush1.xpose.msra.mxu0 0.0
    %2470 = vmatprep.subr.mxu0 0.0
    %2471 = vmatpush1.xpose.msra.mxu0 0.0
    %2472 = vmatprep.subr.mxu0 0.0
    %2473 = vmatpush1.xpose.msra.mxu0 0.0
    %2474 = vmatprep.subr.mxu0 0.0
    %2475 = vmatpush1.xpose.msra.mxu0 0.0
    %2476 = vmatprep.mubr.f32.mxu0 0.0
    %2477 = vmatmul.mubr.f32.gmra.mrb[0].mxu0 %v2408
    %v2478 = vpop.f32.mrb[0].mxu0
    %v2479 = vadd.f32 0.0, %v2478
    %v2480 = vpop.f32.mrb[0].mxu0
    %2481 = vdwg.mxu0
    %v2482 = vsel %vm2152, %v2401, -inf
    %v2483 = vsel %vm2152, %v2479, -inf
    %v2484 = vsel %vm2155, %v2482, -inf
    %2485 = vmax.xlane.f32.xlu0 %v2484
    %v2486 = vpop.xlane.xlu0 %2485
    %v2487 = vsel %vm2155, %v2483, -inf
    %2488 = vmax.xlane.f32.xlu0 %v2487
    %v2489 = vpop.xlane.xlu0 %2488
    %v2490 = vsub.f32 %v2482, %v2486
    %v2491 = vsub.f32 %v2483, %v2489
    %v2492 = vmul.f32 %v2490, 1.442695
    %v2493 = vpow.pop %v2492
    %v2494 = vmul.f32 %v2491, 1.442695
    %v2495 = vpow.pop %v2494
    %v2496 = vsel %vm2155, %v2493, 0.0
    %2497 = vadd.xlane.f32.xlu0 %v2496
    %v2498 = vpop.xlane.xlu0 %2497
    %v2499 = vsel %vm2155, %v2495, 0.0
    %2500 = vadd.xlane.f32.xlu0 %v2499
    %v2501 = vpop.xlane.xlu0 %2500
    %v2502 = vrcp.pop %v2498
    %v2503 = vrcp.pop %v2501
    %v2504 = vmul.f32 %v2493, %v2502
    %v2505 = vmul.f32 %v2495, %v2503
    %2507 = vrot.lane.b32.xlu0 %v1989, 112
    %v2508 = vpop.permute.xlu0 %2507
    %v2511 = vsel %vm2155, %v2504, 0
    %2513 = vmatprep.subr.mxu0 0.0
    %2514 = vmatpush1.msra.mxu0 %v2508
    %2515 = vmatprep.subr.mxu0 0.0
    %2516 = vmatpush1.msra.mxu0 0.0
    %2517 = vmatprep.subr.mxu0 0.0
    %2518 = vmatpush1.msra.mxu0 0.0
    %2519 = vmatprep.subr.mxu0 0.0
    %2520 = vmatpush1.msra.mxu0 0.0
    %2521 = vmatprep.subr.mxu0 0.0
    %2522 = vmatpush1.msra.mxu0 0.0
    %2523 = vmatprep.subr.mxu0 0.0
    %2524 = vmatpush1.msra.mxu0 0.0
    %2525 = vmatprep.subr.mxu0 0.0
    %2526 = vmatpush1.msra.mxu0 0.0
    %2527 = vmatprep.subr.mxu0 0.0
    %2528 = vmatpush1.msra.mxu0 0.0
    %2529 = vmatprep.subr.mxu0 0.0
    %2530 = vmatpush1.msra.mxu0 0.0
    %2531 = vmatprep.subr.mxu0 0.0
    %2532 = vmatpush1.msra.mxu0 0.0
    %2533 = vmatprep.subr.mxu0 0.0
    %2534 = vmatpush1.msra.mxu0 0.0
    %2535 = vmatprep.subr.mxu0 0.0
    %2536 = vmatpush1.msra.mxu0 0.0
    %2537 = vmatprep.subr.mxu0 0.0
    %2538 = vmatpush1.msra.mxu0 0.0
    %2539 = vmatprep.subr.mxu0 0.0
    %2540 = vmatpush1.msra.mxu0 0.0
    %2541 = vmatprep.subr.mxu0 0.0
    %2542 = vmatpush1.msra.mxu0 0.0
    %2543 = vmatprep.subr.mxu0 0.0
    %2544 = vmatpush1.msra.mxu0 0.0
    %2545 = vmatprep.subr.mxu0 0.0
    %2546 = vmatpush1.msra.mxu0 0.0
    %2547 = vmatprep.subr.mxu0 0.0
    %2548 = vmatpush1.msra.mxu0 0.0
    %2549 = vmatprep.subr.mxu0 0.0
    %2550 = vmatpush1.msra.mxu0 0.0
    %2551 = vmatprep.subr.mxu0 0.0
    %2552 = vmatpush1.msra.mxu0 0.0
    %2553 = vmatprep.subr.mxu0 0.0
    %2554 = vmatpush1.msra.mxu0 0.0
    %2555 = vmatprep.subr.mxu0 0.0
    %2556 = vmatpush1.msra.mxu0 0.0
    %2557 = vmatprep.subr.mxu0 0.0
    %2558 = vmatpush1.msra.mxu0 0.0
    %2559 = vmatprep.subr.mxu0 0.0
    %2560 = vmatpush1.msra.mxu0 0.0
    %2561 = vmatprep.subr.mxu0 0.0
    %2562 = vmatpush1.msra.mxu0 0.0
    %2563 = vmatprep.subr.mxu0 0.0
    %2564 = vmatpush1.msra.mxu0 0.0
    %2565 = vmatprep.subr.mxu0 0.0
    %2566 = vmatpush1.msra.mxu0 0.0
    %2567 = vmatprep.subr.mxu0 0.0
    %2568 = vmatpush1.msra.mxu0 0.0
    %2569 = vmatprep.subr.mxu0 0.0
    %2570 = vmatpush1.msra.mxu0 0.0
    %2571 = vmatprep.subr.mxu0 0.0
    %2572 = vmatpush1.msra.mxu0 0.0
    %2573 = vmatprep.subr.mxu0 0.0
    %2574 = vmatpush1.msra.mxu0 0.0
    %2575 = vmatprep.subr.mxu0 0.0
    %2576 = vmatpush1.msra.mxu0 0.0
    %2577 = vmatprep.mubr.f32.mxu0 0.0
    %2578 = vmatmul.mubr.f32.gmra.mrb[0].mxu0 %v2511
    %v2579 = vpop.f32.mrb[0].mxu0
    %v2580 = vadd.f32 0.0, %v2579
    %v2581 = vpop.f32.mrb[0].mxu0
    %2582 = vdwg.mxu0
    %2584 = vrot.lane.b32.xlu0 %v1994, 112
    %v2585 = vpop.permute.xlu0 %2584
    %v2588 = vsel %vm2155, %v2505, 0
    %2590 = vmatprep.subr.mxu0 0.0
    %2591 = vmatpush1.msra.mxu0 %v2585
    %2592 = vmatprep.subr.mxu0 0.0
    %2593 = vmatpush1.msra.mxu0 0.0
    %2594 = vmatprep.subr.mxu0 0.0
    %2595 = vmatpush1.msra.mxu0 0.0
    %2596 = vmatprep.subr.mxu0 0.0
    %2597 = vmatpush1.msra.mxu0 0.0
    %2598 = vmatprep.subr.mxu0 0.0
    %2599 = vmatpush1.msra.mxu0 0.0
    %2600 = vmatprep.subr.mxu0 0.0
    %2601 = vmatpush1.msra.mxu0 0.0
    %2602 = vmatprep.subr.mxu0 0.0
    %2603 = vmatpush1.msra.mxu0 0.0
    %2604 = vmatprep.subr.mxu0 0.0
    %2605 = vmatpush1.msra.mxu0 0.0
    %2606 = vmatprep.subr.mxu0 0.0
    %2607 = vmatpush1.msra.mxu0 0.0
    %2608 = vmatprep.subr.mxu0 0.0
    %2609 = vmatpush1.msra.mxu0 0.0
    %2610 = vmatprep.subr.mxu0 0.0
    %2611 = vmatpush1.msra.mxu0 0.0
    %2612 = vmatprep.subr.mxu0 0.0
    %2613 = vmatpush1.msra.mxu0 0.0
    %2614 = vmatprep.subr.mxu0 0.0
    %2615 = vmatpush1.msra.mxu0 0.0
    %2616 = vmatprep.subr.mxu0 0.0
    %2617 = vmatpush1.msra.mxu0 0.0
    %2618 = vmatprep.subr.mxu0 0.0
    %2619 = vmatpush1.msra.mxu0 0.0
    %2620 = vmatprep.subr.mxu0 0.0
    %2621 = vmatpush1.msra.mxu0 0.0
    %2622 = vmatprep.subr.mxu0 0.0
    %2623 = vmatpush1.msra.mxu0 0.0
    %2624 = vmatprep.subr.mxu0 0.0
    %2625 = vmatpush1.msra.mxu0 0.0
    %2626 = vmatprep.subr.mxu0 0.0
    %2627 = vmatpush1.msra.mxu0 0.0
    %2628 = vmatprep.subr.mxu0 0.0
    %2629 = vmatpush1.msra.mxu0 0.0
    %2630 = vmatprep.subr.mxu0 0.0
    %2631 = vmatpush1.msra.mxu0 0.0
    %2632 = vmatprep.subr.mxu0 0.0
    %2633 = vmatpush1.msra.mxu0 0.0
    %2634 = vmatprep.subr.mxu0 0.0
    %2635 = vmatpush1.msra.mxu0 0.0
    %2636 = vmatprep.subr.mxu0 0.0
    %2637 = vmatpush1.msra.mxu0 0.0
    %2638 = vmatprep.subr.mxu0 0.0
    %2639 = vmatpush1.msra.mxu0 0.0
    %2640 = vmatprep.subr.mxu0 0.0
    %2641 = vmatpush1.msra.mxu0 0.0
    %2642 = vmatprep.subr.mxu0 0.0
    %2643 = vmatpush1.msra.mxu0 0.0
    %2644 = vmatprep.subr.mxu0 0.0
    %2645 = vmatpush1.msra.mxu0 0.0
    %2646 = vmatprep.subr.mxu0 0.0
    %2647 = vmatpush1.msra.mxu0 0.0
    %2648 = vmatprep.subr.mxu0 0.0
    %2649 = vmatpush1.msra.mxu0 0.0
    %2650 = vmatprep.subr.mxu0 0.0
    %2651 = vmatpush1.msra.mxu0 0.0
    %2652 = vmatprep.subr.mxu0 0.0
    %2653 = vmatpush1.msra.mxu0 0.0
    %2654 = vmatprep.mubr.f32.mxu0 0.0
    %2655 = vmatmul.mubr.f32.gmra.mrb[0].mxu0 %v2588
    %v2656 = vpop.f32.mrb[0].mxu0
    %v2657 = vadd.f32 0.0, %v2656
    %v2658 = vpop.f32.mrb[0].mxu0
    %2659 = vdwg.mxu0
    %v2660 = vld [vmem:[%s1 + $0xc0] sm:$0xff]
    %v2661 = vld [vmem:[%s1 + $0xc8] sm:$0xff]
    %v2663 = vsel %vm1998, %v2580, 0
    %v2666 = vsel %vm1998, %v2657, 0
    %2668 = vmatprep.subr.mxu0 0.0
    %2669 = vmatpush1.msra.mxu0 %v2660
    %2670 = vmatprep.subr.mxu0 0.0
    %2671 = vmatpush1.msra.mxu0 %v2661
    %2672 = vmatprep.subr.mxu0 0.0
    %2673 = vmatpush1.msra.mxu0 0.0
    %2674 = vmatprep.subr.mxu0 0.0
    %2675 = vmatpush1.msra.mxu0 0.0
    %2676 = vmatprep.subr.mxu0 0.0
    %2677 = vmatpush1.msra.mxu0 0.0
    %2678 = vmatprep.subr.mxu0 0.0
    %2679 = vmatpush1.msra.mxu0 0.0
    %2680 = vmatprep.subr.mxu0 0.0
    %2681 = vmatpush1.msra.mxu0 0.0
    %2682 = vmatprep.subr.mxu0 0.0
    %2683 = vmatpush1.msra.mxu0 0.0
    %2684 = vmatprep.subr.mxu0 0.0
    %2685 = vmatpush1.msra.mxu0 0.0
    %2686 = vmatprep.subr.mxu0 0.0
    %2687 = vmatpush1.msra.mxu0 0.0
    %2688 = vmatprep.subr.mxu0 0.0
    %2689 = vmatpush1.msra.mxu0 0.0
    %2690 = vmatprep.subr.mxu0 0.0
    %2691 = vmatpush1.msra.mxu0 0.0
    %2692 = vmatprep.subr.mxu0 0.0
    %2693 = vmatpush1.msra.mxu0 0.0
    %2694 = vmatprep.subr.mxu0 0.0
    %2695 = vmatpush1.msra.mxu0 0.0
    %2696 = vmatprep.subr.mxu0 0.0
    %2697 = vmatpush1.msra.mxu0 0.0
    %2698 = vmatprep.subr.mxu0 0.0
    %2699 = vmatpush1.msra.mxu0 0.0
    %2700 = vmatprep.subr.mxu0 0.0
    %2701 = vmatpush1.msra.mxu0 0.0
    %2702 = vmatprep.subr.mxu0 0.0
    %2703 = vmatpush1.msra.mxu0 0.0
    %2704 = vmatprep.subr.mxu0 0.0
    %2705 = vmatpush1.msra.mxu0 0.0
    %2706 = vmatprep.subr.mxu0 0.0
    %2707 = vmatpush1.msra.mxu0 0.0
    %2708 = vmatprep.subr.mxu0 0.0
    %2709 = vmatpush1.msra.mxu0 0.0
    %2710 = vmatprep.subr.mxu0 0.0
    %2711 = vmatpush1.msra.mxu0 0.0
    %2712 = vmatprep.subr.mxu0 0.0
    %2713 = vmatpush1.msra.mxu0 0.0
    %2714 = vmatprep.subr.mxu0 0.0
    %2715 = vmatpush1.msra.mxu0 0.0
    %2716 = vmatprep.subr.mxu0 0.0
    %2717 = vmatpush1.msra.mxu0 0.0
    %2718 = vmatprep.subr.mxu0 0.0
    %2719 = vmatpush1.msra.mxu0 0.0
    %2720 = vmatprep.subr.mxu0 0.0
    %2721 = vmatpush1.msra.mxu0 0.0
    %2722 = vmatprep.subr.mxu0 0.0
    %2723 = vmatpush1.msra.mxu0 0.0
    %2724 = vmatprep.subr.mxu0 0.0
    %2725 = vmatpush1.msra.mxu0 0.0
    %2726 = vmatprep.subr.mxu0 0.0
    %2727 = vmatpush1.msra.mxu0 0.0
    %2728 = vmatprep.subr.mxu0 0.0
    %2729 = vmatpush1.msra.mxu0 0.0
    %2730 = vmatprep.subr.mxu0 0.0
    %2731 = vmatpush1.msra.mxu0 0.0
    %2732 = vmatprep.mubr.f32.mxu0 0.0
    %2733 = vmatmul.mubr.f32.gmra.mrb[0].mxu0 %v2663
    %v2734 = vpop.f32.mrb[0].mxu0
    %v2735 = vadd.f32 0.0, %v2734
    %v2736 = vpop.f32.mrb[0].mxu0
    %2737 = vmatprep.mubr.f32.mxu0 0.0
    %2738 = vmatmul.mubr.f32.gmra.mrb[0].mxu0 %v2666
    %v2739 = vpop.f32.mrb[0].mxu0
    %v2740 = vadd.f32 0.0, %v2739
    %v2741 = vpop.f32.mrb[0].mxu0
    %2742 = vdwg.mxu0
    %v2744 = vsel %vm1998, %v2248, 0
    %v2747 = vsel %vm1998, %v2321, 0
    %2749 = vmatprep.subr.mxu0 0.0
    %2750 = vmatpush1.msra.mxu0 %v2324
    %2751 = vmatprep.subr.mxu0 0.0
    %2752 = vmatpush1.msra.mxu0 %v2325
    %2753 = vmatprep.subr.mxu0 0.0
    %2754 = vmatpush1.msra.mxu0 0.0
    %2755 = vmatprep.subr.mxu0 0.0
    %2756 = vmatpush1.msra.mxu0 0.0
    %2757 = vmatprep.subr.mxu0 0.0
    %2758 = vmatpush1.msra.mxu0 0.0
    %2759 = vmatprep.subr.mxu0 0.0
    %2760 = vmatpush1.msra.mxu0 0.0
    %2761 = vmatprep.subr.mxu0 0.0
    %2762 = vmatpush1.msra.mxu0 0.0
    %2763 = vmatprep.subr.mxu0 0.0
    %2764 = vmatpush1.msra.mxu0 0.0
    %2765 = vmatprep.subr.mxu0 0.0
    %2766 = vmatpush1.msra.mxu0 0.0
    %2767 = vmatprep.subr.mxu0 0.0
    %2768 = vmatpush1.msra.mxu0 0.0
    %2769 = vmatprep.subr.mxu0 0.0
    %2770 = vmatpush1.msra.mxu0 0.0
    %2771 = vmatprep.subr.mxu0 0.0
    %2772 = vmatpush1.msra.mxu0 0.0
    %2773 = vmatprep.subr.mxu0 0.0
    %2774 = vmatpush1.msra.mxu0 0.0
    %2775 = vmatprep.subr.mxu0 0.0
    %2776 = vmatpush1.msra.mxu0 0.0
    %2777 = vmatprep.subr.mxu0 0.0
    %2778 = vmatpush1.msra.mxu0 0.0
    %2779 = vmatprep.subr.mxu0 0.0
    %2780 = vmatpush1.msra.mxu0 0.0
    %2781 = vmatprep.subr.mxu0 0.0
    %2782 = vmatpush1.msra.mxu0 0.0
    %2783 = vmatprep.subr.mxu0 0.0
    %2784 = vmatpush1.msra.mxu0 0.0
    %2785 = vmatprep.subr.mxu0 0.0
    %2786 = vmatpush1.msra.mxu0 0.0
    %2787 = vmatprep.subr.mxu0 0.0
    %2788 = vmatpush1.msra.mxu0 0.0
    %2789 = vmatprep.subr.mxu0 0.0
    %2790 = vmatpush1.msra.mxu0 0.0
    %2791 = vmatprep.subr.mxu0 0.0
    %2792 = vmatpush1.msra.mxu0 0.0
    %2793 = vmatprep.subr.mxu0 0.0
    %2794 = vmatpush1.msra.mxu0 0.0
    %2795 = vmatprep.subr.mxu0 0.0
    %2796 = vmatpush1.msra.mxu0 0.0
    %2797 = vmatprep.subr.mxu0 0.0
    %2798 = vmatpush1.msra.mxu0 0.0
    %2799 = vmatprep.subr.mxu0 0.0
    %2800 = vmatpush1.msra.mxu0 0.0
    %2801 = vmatprep.subr.mxu0 0.0
    %2802 = vmatpush1.msra.mxu0 0.0
    %2803 = vmatprep.subr.mxu0 0.0
    %2804 = vmatpush1.msra.mxu0 0.0
    %2805 = vmatprep.subr.mxu0 0.0
    %2806 = vmatpush1.msra.mxu0 0.0
    %2807 = vmatprep.subr.mxu0 0.0
    %2808 = vmatpush1.msra.mxu0 0.0
    %2809 = vmatprep.subr.mxu0 0.0
    %2810 = vmatpush1.msra.mxu0 0.0
    %2811 = vmatprep.subr.mxu0 0.0
    %2812 = vmatpush1.msra.mxu0 0.0
    %2813 = vmatprep.mubr.f32.mxu0 0.0
    %2814 = vmatmul.mubr.f32.gmra.mrb[0].mxu0 %v2744
    %v2815 = vpop.f32.mrb[0].mxu0
    %v2816 = vadd.f32 %v2735, %v2815
    %v2817 = vpop.f32.mrb[0].mxu0
    %2818 = vmatprep.mubr.f32.mxu0 0.0
    %2819 = vmatmul.mubr.f32.gmra.mrb[0].mxu0 %v2747
    %v2820 = vpop.f32.mrb[0].mxu0
    %v2821 = vadd.f32 %v2740, %v2820
    %v2822 = vpop.f32.mrb[0].mxu0
    %2823 = vdwg.mxu0
    %2824 = vst.msk [vmem:[%s4] sm:$0xff] %vm2155, %v2153
    %2825 = vst.msk [vmem:[%s4 + $0x8] sm:$0xff] %vm2155, %v2154
    %2826 = vst.msk [vmem:[%s4 + $0x10] sm:$0xff] %vm2155, %v2482
    %2827 = vst.msk [vmem:[%s4 + $0x18] sm:$0xff] %vm2155, %v2483
    %v2828 = vadd.f32 %v1719, %v2816
    %v2829 = vadd.f32 %v1720, %v2821
    %v2830 = vld [vmem:[%s1 + $0x4d] sm:$0x1]
    %v2831 = vsel %vm126, %v2828, 0.0
    %2832 = vadd.xlane.f32.xlu0 %v2831
    %v2833 = vpop.xlane.xlu0 %2832
    %v2834 = vsel %vm126, %v2829, 0.0
    %2835 = vadd.xlane.f32.xlu0 %v2834
    %v2836 = vpop.xlane.xlu0 %2835
    %v2837 = vmul.f32 %v2833, %v133
    %v2838 = vmul.f32 %v2836, %v133
    %v2839 = vsub.f32 %v2828, %v2837
    %v2840 = vsub.f32 %v2829, %v2838
    %v2841 = vmul.f32 %v2839, %v2839
    %v2842 = vmul.f32 %v2840, %v2840
    %v2843 = vsel %vm126, %v2841, 0.0
    %2844 = vadd.xlane.f32.xlu0 %v2843
    %v2845 = vpop.xlane.xlu0 %2844
    %v2846 = vsel %vm126, %v2842, 0.0
    %2847 = vadd.xlane.f32.xlu0 %v2846
    %v2848 = vpop.xlane.xlu0 %2847
    %v2849 = vmul.f32 %v2845, %v133
    %v2850 = vmul.f32 %v2848, %v133
    %v2851 = vadd.f32 %v2849, 1e-05
    %v2852 = vadd.f32 %v2850, 1e-05
    %v2853 = vrsqrt.pop %v2851
    %v2854 = vrsqrt.pop %v2852
    %v2855 = vmul.f32 %v2839, %v2853
    %v2856 = vmul.f32 %v2840, %v2854
    %v2857 = vlaneseq
    %v2858 = vshrl.u32 %v2857, 7
    %v2859 = vsub.s32 0, %v2858
    %v2860 = vrot.slane %v2830, %v2859
    %v2861 = vmul.f32 %v2855, %v2860
    %v2862 = vmul.f32 %v2856, %v2860
    %v2863 = vld [vmem:[%s2 + $0x68] sm:$0xff]
    %v2864 = vld [vmem:[%s2 + $0x70] sm:$0xff]
    %v2865 = vld [vmem:[%s2 + $0x78] sm:$0xff]
    %v2866 = vld [vmem:[%s2 + $0x80] sm:$0xff]
    %v2867 = vld [vmem:[%s1 + $0x150] sm:$0xff]
    %v2868 = vld [vmem:[%s1 + $0x158] sm:$0xff]
    %v2869 = vld [vmem:[%s1 + $0x160] sm:$0xff]
    %v2870 = vld [vmem:[%s1 + $0x168] sm:$0xff]
    %v2871 = vld [vmem:[%s1 + $0x170] sm:$0xff]
    %v2872 = vld [vmem:[%s1 + $0x178] sm:$0xff]
    %v2873 = vld [vmem:[%s1 + $0x180] sm:$0xff]
    %v2874 = vld [vmem:[%s1 + $0x188] sm:$0xff]
    %v2875 = vld [vmem:[%s1 + $0x190] sm:$0xff]
    %v2876 = vld [vmem:[%s1 + $0x198] sm:$0xff]
    %v2877 = vld [vmem:[%s1 + $0x1a0] sm:$0xff]
    %v2878 = vld [vmem:[%s1 + $0x1a8] sm:$0xff]
    %v2879 = vld [vmem:[%s1 + $0x1b0] sm:$0xff]
    %v2880 = vld [vmem:[%s1 + $0x1b8] sm:$0xff]
    %v2881 = vld [vmem:[%s1 + $0x1c0] sm:$0xff]
    %v2882 = vld [vmem:[%s1 + $0x1c8] sm:$0xff]
    %v2884 = vsel %vm126, %v2861, 0
    %v2887 = vsel %vm126, %v2862, 0
    %2889 = vmatprep.subr.mxu0 0.0
    %2890 = vmatpush1.msra.mxu0 %v2863
    %2891 = vmatprep.subr.mxu0 0.0
    %2892 = vmatpush1.msra.mxu0 %v2864
    %2893 = vmatprep.subr.mxu0 0.0
    %2894 = vmatpush1.msra.mxu0 %v2865
    %2895 = vmatprep.subr.mxu0 0.0
    %2896 = vmatpush1.msra.mxu0 %v2866
    %2897 = vmatprep.subr.mxu0 0.0
    %2898 = vmatpush1.msra.mxu0 0.0
    %2899 = vmatprep.subr.mxu0 0.0
    %2900 = vmatpush1.msra.mxu0 0.0
    %2901 = vmatprep.subr.mxu0 0.0
    %2902 = vmatpush1.msra.mxu0 0.0
    %2903 = vmatprep.subr.mxu0 0.0
    %2904 = vmatpush1.msra.mxu0 0.0
    %2905 = vmatprep.subr.mxu0 0.0
    %2906 = vmatpush1.msra.mxu0 0.0
    %2907 = vmatprep.subr.mxu0 0.0
    %2908 = vmatpush1.msra.mxu0 0.0
    %2909 = vmatprep.subr.mxu0 0.0
    %2910 = vmatpush1.msra.mxu0 0.0
    %2911 = vmatprep.subr.mxu0 0.0
    %2912 = vmatpush1.msra.mxu0 0.0
    %2913 = vmatprep.subr.mxu0 0.0
    %2914 = vmatpush1.msra.mxu0 0.0
    %2915 = vmatprep.subr.mxu0 0.0
    %2916 = vmatpush1.msra.mxu0 0.0
    %2917 = vmatprep.subr.mxu0 0.0
    %2918 = vmatpush1.msra.mxu0 0.0
    %2919 = vmatprep.subr.mxu0 0.0
    %2920 = vmatpush1.msra.mxu0 0.0
    %2921 = vmatprep.subr.mxu0 0.0
    %2922 = vmatpush1.msra.mxu0 0.0
    %2923 = vmatprep.subr.mxu0 0.0
    %2924 = vmatpush1.msra.mxu0 0.0
    %2925 = vmatprep.subr.mxu0 0.0
    %2926 = vmatpush1.msra.mxu0 0.0
    %2927 = vmatprep.subr.mxu0 0.0
    %2928 = vmatpush1.msra.mxu0 0.0
    %2929 = vmatprep.subr.mxu0 0.0
    %2930 = vmatpush1.msra.mxu0 0.0
    %2931 = vmatprep.subr.mxu0 0.0
    %2932 = vmatpush1.msra.mxu0 0.0
    %2933 = vmatprep.subr.mxu0 0.0
    %2934 = vmatpush1.msra.mxu0 0.0
    %2935 = vmatprep.subr.mxu0 0.0
    %2936 = vmatpush1.msra.mxu0 0.0
    %2937 = vmatprep.subr.mxu0 0.0
    %2938 = vmatpush1.msra.mxu0 0.0
    %2939 = vmatprep.subr.mxu0 0.0
    %2940 = vmatpush1.msra.mxu0 0.0
    %2941 = vmatprep.subr.mxu0 0.0
    %2942 = vmatpush1.msra.mxu0 0.0
    %2943 = vmatprep.subr.mxu0 0.0
    %2944 = vmatpush1.msra.mxu0 0.0
    %2945 = vmatprep.subr.mxu0 0.0
    %2946 = vmatpush1.msra.mxu0 0.0
    %2947 = vmatprep.subr.mxu0 0.0
    %2948 = vmatpush1.msra.mxu0 0.0
    %2949 = vmatprep.subr.mxu0 0.0
    %2950 = vmatpush1.msra.mxu0 0.0
    %2951 = vmatprep.subr.mxu0 0.0
    %2952 = vmatpush1.msra.mxu0 0.0
    %2953 = vmatprep.mubr.f32.mxu0 0.0
    %2954 = vmatmul.mubr.f32.gmra.mrb[0].mxu0 %v2884
    %v2955 = vpop.f32.mrb[0].mxu0
    %v2956 = vadd.f32 0.0, %v2955
    %v2957 = vpop.f32.mrb[0].mxu0
    %2958 = vmatprep.mubr.f32.mxu0 0.0
    %2959 = vmatmul.mubr.f32.gmra.mrb[0].mxu0 %v2887
    %v2960 = vpop.f32.mrb[0].mxu0
    %v2961 = vadd.f32 0.0, %v2960
    %v2962 = vpop.f32.mrb[0].mxu0
    %2963 = vdwg.mxu0
    %v2964 = vmul.f32 %v2956, 0.5
    %v2965 = vmul.f32 %v2961, 0.5
    %v2966 = vmul.f32 %v2956, 0.70710677
    %v2967 = vmul.f32 %v2961, 0.70710677
    %vm2968 = vcmp.ge.f32.partialorder %v2966, 0.0
    %vm2969 = vcmp.ge.f32.partialorder %v2967, 0.0
    %v2970 = vsel %vm2968, 1.0, -1.0
    %v2971 = vsel %vm2969, 1.0, -1.0
    %v2972 = vand.u32 2147483647, %v2966
    %v2973 = vand.u32 2147483647, %v2967
    %v2974 = vmul.f32 %v2972, 0.3275911
    %v2975 = vmul.f32 %v2973, 0.3275911
    %v2976 = vadd.f32 %v2974, 1.0
    %v2977 = vadd.f32 %v2975, 1.0
    %v2978 = vrcp.pop %v2976
    %v2979 = vmul.f32 1.0, %v2978
    %v2980 = vrcp.pop %v2977
    %v2981 = vmul.f32 1.0, %v2980
    %v2982 = vmul.f32 %v2979, 1.0614054
    %v2983 = vmul.f32 %v2981, 1.0614054
    %v2984 = vadd.f32 %v2982, -1.4531521
    %v2985 = vadd.f32 %v2983, -1.4531521
    %v2986 = vmul.f32 %v2984, %v2979
    %v2987 = vmul.f32 %v2985, %v2981
    %v2988 = vadd.f32 %v2986, 1.4214138
    %v2989 = vadd.f32 %v2987, 1.4214138
    %v2990 = vmul.f32 %v2988, %v2979
    %v2991 = vmul.f32 %v2989, %v2981
    %v2992 = vadd.f32 %v2990, -0.28449672
    %v2993 = vadd.f32 %v2991, -0.28449672
    %v2994 = vmul.f32 %v2992, %v2979
    %v2995 = vmul.f32 %v2993, %v2981
    %v2996 = vadd.f32 %v2994, 0.2548296
    %v2997 = vadd.f32 %v2995, 0.2548296
    %v2998 = vmul.f32 %v2996, %v2979
    %v2999 = vmul.f32 %v2997, %v2981
    %v3000 = vsub.f32 0.0, %v2972
    %v3001 = vsub.f32 0.0, %v2973
    %v3002 = vmul.f32 %v3000, %v2972
    %v3003 = vmul.f32 %v3001, %v2973
    %v3004 = vmul.f32 %v3002, 1.442695
    %v3005 = vpow.pop %v3004
    %v3006 = vmul.f32 %v3003, 1.442695
    %v3007 = vpow.pop %v3006
    %v3008 = vmul.f32 %v2998, %v3005
    %v3009 = vmul.f32 %v2999, %v3007
    %v3010 = vsub.f32 1.0, %v3008
    %v3011 = vsub.f32 1.0, %v3009
    %v3012 = vmul.f32 %v2970, %v3010
    %v3013 = vmul.f32 %v2971, %v3011
    %v3014 = vadd.f32 %v3012, 1.0
    %v3015 = vadd.f32 %v3013, 1.0
    %v3016 = vmul.f32 %v2964, %v3014
    %v3017 = vmul.f32 %v2965, %v3015
    %3018 = vmatprep.subr.mxu0 0.0
    %3019 = vmatpush1.msra.mxu0 %v2867
    %3020 = vmatprep.subr.mxu0 0.0
    %3021 = vmatpush1.msra.mxu0 %v2868
    %3022 = vmatprep.subr.mxu0 0.0
    %3023 = vmatpush1.msra.mxu0 %v2869
    %3024 = vmatprep.subr.mxu0 0.0
    %3025 = vmatpush1.msra.mxu0 %v2870
    %3026 = vmatprep.subr.mxu0 0.0
    %3027 = vmatpush1.msra.mxu0 %v2871
    %3028 = vmatprep.subr.mxu0 0.0
    %3029 = vmatpush1.msra.mxu0 %v2872
    %3030 = vmatprep.subr.mxu0 0.0
    %3031 = vmatpush1.msra.mxu0 %v2873
    %3032 = vmatprep.subr.mxu0 0.0
    %3033 = vmatpush1.msra.mxu0 %v2874
    %3034 = vmatprep.subr.mxu0 0.0
    %3035 = vmatpush1.msra.mxu0 %v2875
    %3036 = vmatprep.subr.mxu0 0.0
    %3037 = vmatpush1.msra.mxu0 %v2876
    %3038 = vmatprep.subr.mxu0 0.0
    %3039 = vmatpush1.msra.mxu0 %v2877
    %3040 = vmatprep.subr.mxu0 0.0
    %3041 = vmatpush1.msra.mxu0 %v2878
    %3042 = vmatprep.subr.mxu0 0.0
    %3043 = vmatpush1.msra.mxu0 %v2879
    %3044 = vmatprep.subr.mxu0 0.0
    %3045 = vmatpush1.msra.mxu0 %v2880
    %3046 = vmatprep.subr.mxu0 0.0
    %3047 = vmatpush1.msra.mxu0 %v2881
    %3048 = vmatprep.subr.mxu0 0.0
    %3049 = vmatpush1.msra.mxu0 %v2882
    %3050 = vmatprep.subr.mxu0 0.0
    %3051 = vmatpush1.msra.mxu0 0.0
    %3052 = vmatprep.subr.mxu0 0.0
    %3053 = vmatpush1.msra.mxu0 0.0
    %3054 = vmatprep.subr.mxu0 0.0
    %3055 = vmatpush1.msra.mxu0 0.0
    %3056 = vmatprep.subr.mxu0 0.0
    %3057 = vmatpush1.msra.mxu0 0.0
    %3058 = vmatprep.subr.mxu0 0.0
    %3059 = vmatpush1.msra.mxu0 0.0
    %3060 = vmatprep.subr.mxu0 0.0
    %3061 = vmatpush1.msra.mxu0 0.0
    %3062 = vmatprep.subr.mxu0 0.0
    %3063 = vmatpush1.msra.mxu0 0.0
    %3064 = vmatprep.subr.mxu0 0.0
    %3065 = vmatpush1.msra.mxu0 0.0
    %3066 = vmatprep.subr.mxu0 0.0
    %3067 = vmatpush1.msra.mxu0 0.0
    %3068 = vmatprep.subr.mxu0 0.0
    %3069 = vmatpush1.msra.mxu0 0.0
    %3070 = vmatprep.subr.mxu0 0.0
    %3071 = vmatpush1.msra.mxu0 0.0
    %3072 = vmatprep.subr.mxu0 0.0
    %3073 = vmatpush1.msra.mxu0 0.0
    %3074 = vmatprep.subr.mxu0 0.0
    %3075 = vmatpush1.msra.mxu0 0.0
    %3076 = vmatprep.subr.mxu0 0.0
    %3077 = vmatpush1.msra.mxu0 0.0
    %3078 = vmatprep.subr.mxu0 0.0
    %3079 = vmatpush1.msra.mxu0 0.0
    %3080 = vmatprep.subr.mxu0 0.0
    %3081 = vmatpush1.msra.mxu0 0.0
    %3082 = vmatprep.mubr.f32.mxu0 0.0
    %3083 = vmatmul.mubr.f32.gmra.mrb[0].mxu0 %v3016
    %v3084 = vpop.f32.mrb[0].mxu0
    %v3085 = vadd.f32 0.0, %v3084
    %v3086 = vpop.f32.mrb[0].mxu0
    %3087 = vmatprep.mubr.f32.mxu0 0.0
    %3088 = vmatmul.mubr.f32.gmra.mrb[0].mxu0 %v3017
    %v3089 = vpop.f32.mrb[0].mxu0
    %v3090 = vadd.f32 0.0, %v3089
    %v3091 = vpop.f32.mrb[0].mxu0
    %3092 = vdwg.mxu0
    %v3093 = vadd.f32 %v2828, %v3085
    %v3094 = vadd.f32 %v2829, %v3090
    %3095 = vst.msk [vmem:[#allocation2] sm:$0xff] %vm126, %v3093
    %3096 = vst.msk [vmem:[#allocation2 + $0x8] sm:$0xff] %vm126, %v3094
    // Predicated region
    $region14: #{mitransformer_forward.1} parent=1 // pred_check
      _
    $region15: #{mitransformer_forward.1} parent=1 // pred_check_branch
      %3098 = sbr.rel (0) target = $region17
    $region16: #{mitransformer_forward.1} parent=1 // pred_region
      %s3100 = ssub.s32 256, 256
      %3101 = vsyncadd [#allocation3], %s3100
      %s3102 = sshll.u32 [#allocation2], 4
      %s3103 = int_to_ptr.vmem [resolvable:$true] %s3102
      %3108 = dma.vmem_to_hbm [thread:$0]  %s3103, 256, %s3, [#allocation3], 128, 128, 8
    $region17: #{mitransformer_forward.1} parent=1 // pred_fallthru
      _
    // Predicated region
    $region18: #{mitransformer_forward.1} parent=1 // pred_check
      _
    $region19: #{mitransformer_forward.1} parent=1 // pred_check_branch
      %3110 = sbr.rel (0) target = $region21
    $region20: #{mitransformer_forward.1} parent=1 // pred_region
      _
    $region21: #{mitransformer_forward.1} parent=1 // pred_fallthru
      _
    // Predicated region
    $region22: #{mitransformer_forward.1} parent=1 // pred_check
      _
    $region23: #{mitransformer_forward.1} parent=1 // pred_check_branch
      %3112 = sbr.rel (0) target = $region25
    $region24: #{mitransformer_forward.1} parent=1 // pred_region
      %3113 = dma.done [#allocation3], 256
    $region25: #{mitransformer_forward.1} parent=1 // pred_fallthru
      _
    // Predicated region
    $region26: #{mitransformer_forward.1} parent=1 // pred_check
      _
    $region27: #{mitransformer_forward.1} parent=1 // pred_check_branch
      %3115 = sbr.rel (0) target = $region29
    $region28: #{mitransformer_forward.1} parent=1 // pred_region
      _
    $region29: #{mitransformer_forward.1} parent=1 // pred_fallthru
      _
    %3116 = vsyncpa [#allocation3], 1

</llo_original>
